<compile_context>
chip_gen: v7x
topology: tpu7x:2x2x1
jax: 0.10.0
libtpu: 0.0.40
codegen_flags: <defaults>
</compile_context>

<pallas_src>
import jax
import jax.numpy as jnp
from jax import lax
from jax.experimental import pallas as pl
from jax.experimental.pallas import tpu as pltpu


def _lora_linear_kernel(x_ref, w_ref, b_ref, xa_ref, bb_ref, o_ref, acc_ref):
    """One (tm, tn) output tile, accumulated over the K grid axis (axis 2).

    x_ref:  (tm, tk) bf16   activation tile
    w_ref:  (tn, tk) bf16   weight tile, native PyTorch (out, in) layout
    b_ref:  (1, tn)  f32    bias tile
    xa_ref: (tm, r)  bf16   precomputed LoRA down-projection tile (x @ A)
    bb_ref: (r, tn)  bf16   LoRA up-projection tile, pre-scaled by alpha
    acc_ref:(tm, tn) f32    base-matmul accumulator (VMEM scratch)
    """
    k = pl.program_id(2)

    @pl.when(k == 0)
    def _init():
        acc_ref[...] = jnp.zeros_like(acc_ref)

    # Base linear: x @ W.T, contracting dim 1 of both operands. The MXU takes
    # either operand orientation, so no transpose/relayout of W is needed.
    acc_ref[...] += lax.dot_general(
        x_ref[...], w_ref[...], (((1,), (1,)), ((), ())),
        preferred_element_type=jnp.float32)

    @pl.when(k == pl.num_programs(2) - 1)
    def _finalize():
        # LoRA up-projection: bf16 inputs, f32 accumulation. alpha is already
        # folded into bb_ref by the wrapper.
        lora = jnp.dot(xa_ref[...], bb_ref[...],
                       preferred_element_type=jnp.float32)
        o_ref[...] = (acc_ref[...] + b_ref[...] + lora).astype(o_ref.dtype)


def linear_with_lora(x, w, bias, a, b, alpha, *,
                     tm=512, tn=512, tk=512,
                     compute_dtype=jnp.bfloat16,
                     out_dtype=jnp.float32):
    """y = x @ w.T + bias + alpha * ((x @ a) @ b).

    x: (M, in), w: (out, in), bias: (out,), a: (in, r), b: (r, out).

    MXU inputs are consumed in `compute_dtype` (bf16); accumulation and the
    bias/LoRA epilogue are f32. Store w / a / b in `compute_dtype` at init to
    avoid any per-call cast traffic. Pass out_dtype=jnp.bfloat16 when the
    consumer accepts bf16 to halve output writeback.
    """
    M, K = x.shape
    N, Kw = w.shape
    assert Kw == K, "weight in_features mismatch"
    r = a.shape[1]
    assert b.shape == (r, N), "LoRA B shape mismatch"

    tm = min(tm, M)
    tn = min(tn, N)
    tk = min(tk, K)
    assert M % tm == 0 and N % tn == 0 and K % tk == 0, (
        "shapes must be divisible by tile sizes (pad inputs otherwise)")

    # Cast only if needed — ideally weights already live in compute_dtype so no
    # per-call HBM round-trip is spent re-quantizing the largest tensor.
    x_c = x if x.dtype == compute_dtype else x.astype(compute_dtype)
    w_c = w if w.dtype == compute_dtype else w.astype(compute_dtype)
    a_c = a if a.dtype == compute_dtype else a.astype(compute_dtype)

    # Bake alpha into the (tiny) up-projection weight once, keep it bf16.
    b_scaled = (jnp.asarray(alpha, jnp.float32)
                * b.astype(jnp.float32)).astype(compute_dtype)

    bias2d = bias.reshape(1, N).astype(jnp.float32)

    # Hoisted LoRA down-projection: one (M, K) @ (K, r) matmul instead of
    # recomputing it inside the kernel for every (j, k) grid step.
    xa = jnp.dot(x_c, a_c,
                 preferred_element_type=jnp.float32).astype(compute_dtype)

    grid = (M // tm, N // tn, K // tk)  # reduction axis (K) last

    return pl.pallas_call(
        _lora_linear_kernel,
        out_shape=jax.ShapeDtypeStruct((M, N), out_dtype),
        grid_spec=pltpu.PrefetchScalarGridSpec(
            num_scalar_prefetch=0,
            grid=grid,
            in_specs=[
                pl.BlockSpec((tm, tk), lambda i, j, k: (i, k)),  # x
                pl.BlockSpec((tn, tk), lambda i, j, k: (j, k)),  # W (out, in)
                pl.BlockSpec((1, tn), lambda i, j, k: (0, j)),   # bias
                pl.BlockSpec((tm, r), lambda i, j, k: (i, 0)),   # x @ A
                pl.BlockSpec((r, tn), lambda i, j, k: (0, j)),   # alpha * B
            ],
            out_specs=pl.BlockSpec((tm, tn), lambda i, j, k: (i, j)),
            scratch_shapes=[
                pltpu.VMEM((tm, tn), jnp.float32),  # base-matmul accumulator
            ],
        ),
        compiler_params=pltpu.CompilerParams(
            dimension_semantics=("parallel", "parallel", "arbitrary"),
            # ~5 MiB actually used at 512^3 tiles; 48 MiB leaves headroom on
            # v5e/v6e (128 MiB) and stays safely inside v7x's 64 MiB.
            vmem_limit_bytes=48 * 1024 * 1024,
        ),
    )(x_c, w_c, bias2d, xa, b_scaled)


if __name__ == "__main__":
    # Linear(in=512, out=512) with rank-16 LoRA. Shapes chosen so an explicit
    # small-tile call produces a (2, 2, 2) grid, exercising the accumulator
    # init / accumulate / finalize paths and multi-j reuse of the hoisted x@A.
    batch, in_dim, out_dim, rank, alpha = 256, 512, 512, 16, 4.0

    key = jax.random.PRNGKey(0)
    kx, kw, kb, ka, kbb = jax.random.split(key, 5)

    x = jax.random.normal(kx, (batch, in_dim), dtype=jnp.float32)

    # torch.nn.Linear-style init: weight (out, in), bias (out,), U(+-1/sqrt(in)).
    bound = 1.0 / jnp.sqrt(in_dim)
    w = jax.random.uniform(kw, (out_dim, in_dim), minval=-bound, maxval=bound,
                           dtype=jnp.float32)
    bias = jax.random.uniform(kb, (out_dim,), minval=-bound, maxval=bound,
                              dtype=jnp.float32)

    # LoRA init per the module: A = randn(in, rank) / sqrt(rank); B = zeros.
    A = jax.random.normal(ka, (in_dim, rank), dtype=jnp.float32) / jnp.sqrt(
        jnp.float32(rank))
    # The module initializes B to zeros (LoRA delta starts at 0); use a nonzero
    # B here so the LoRA branch is actually validated numerically.
    B = 0.01 * jax.random.normal(kbb, (rank, out_dim), dtype=jnp.float32)

    # Store the static weights in bf16 once ("at init"), so the per-call path
    # pays no cast traffic for W / A (alpha*B is also bf16 inside the wrapper).
    w_bf16 = w.astype(jnp.bfloat16)
    A_bf16 = A.astype(jnp.bfloat16)
    B_bf16 = B.astype(jnp.bfloat16)

    # 1) Default (large) tiles — here they clamp to the full arrays, grid (1,1,1).
    out_default = linear_with_lora(x, w_bf16, bias, A_bf16, B_bf16, alpha)
    out_default = jax.block_until_ready(out_default)

    # 2) Explicit smaller tiles — grid (2, 2, 2), exercises the pipelined
    #    multi-step reduction and multi-(i, j) paths.
    out_tiled = linear_with_lora(x, w_bf16, bias, A_bf16, B_bf16, alpha,
                                 tm=128, tn=256, tk=256)
    out_tiled = jax.block_until_ready(out_tiled)

    # Pure-JAX f32 reference. Tolerance accounts for the intentional bf16
    # quantization of the MXU inputs (all accumulation is f32).
    with jax.default_matmul_precision("highest"):
        ref = x @ w.T + bias + alpha * ((x @ A) @ B)

    assert jnp.allclose(out_default, ref, atol=5e-2, rtol=5e-2), \
        "mismatch vs reference (default tiles)"
    assert jnp.allclose(out_tiled, ref, atol=5e-2, rtol=5e-2), \
        "mismatch vs reference (explicit tiles)"

    print("KERNEL_OK")
</pallas_src>

<mosaic_0001>
module attributes {stable_mosaic.version = 11 : i64} {
  func.func @_lora_linear_kernel(%arg0: i32, %arg1: i32, %arg2: i32, %arg3: memref<256x512xbf16, #tpu.memory_space<vmem>>, %arg4: memref<512x512xbf16, #tpu.memory_space<vmem>>, %arg5: memref<1x512xf32, #tpu.memory_space<vmem>>, %arg6: memref<256x16xbf16, #tpu.memory_space<vmem>>, %arg7: memref<16x512xbf16, #tpu.memory_space<vmem>>, %arg8: memref<256x512xf32, #tpu.memory_space<vmem>>, %arg9: memref<256x512xf32, #tpu.memory_space<vmem>>) attributes {dimension_semantics = [#tpu.dimension_semantics<parallel>, #tpu.dimension_semantics<parallel>, #tpu.dimension_semantics<arbitrary>], iteration_bounds = array<i64: 1, 1, 1>, scalar_prefetch = 0 : i64, scratch_operands = 1 : i64, tpu.core_type = #tpu.core_type<tc>, window_params = [{transform_indices = @transform_0, window_bounds = array<i64: 256, 512>}, {transform_indices = @transform_1, window_bounds = array<i64: 512, 512>}, {transform_indices = @transform_2, window_bounds = array<i64: 1, 512>}, {transform_indices = @transform_3, window_bounds = array<i64: 256, 16>}, {transform_indices = @transform_4, window_bounds = array<i64: 16, 512>}, {transform_indices = @transform_5, window_bounds = array<i64: 256, 512>}]} {
    %c0_i32 = arith.constant 0 : i32
    %0 = arith.cmpi eq, %arg2, %c0_i32 : i32
    %1 = arith.extui %0 : i1 to i32
    %c0_i32_0 = arith.constant 0 : i32
    %2 = arith.cmpi ne, %1, %c0_i32_0 : i32
    scf.if %2 {
      %cst_10 = arith.constant 0.000000e+00 : f32
      %12 = vector.broadcast %cst_10 : f32 to vector<256x512xf32>
      %c0_11 = arith.constant 0 : index
      %c0_12 = arith.constant 0 : index
      %13 = vector.load %arg9[%c0_11, %c0_12] : memref<256x512xf32, #tpu.memory_space<vmem>>, vector<256x512xf32>
      tpu.vector_store %arg9[%c0_11, %c0_12], %12 {strides = array<i32>} : memref<256x512xf32, #tpu.memory_space<vmem>>, vector<256x512xf32>,
    } else {
    }
    %c0 = arith.constant 0 : index
    %c0_1 = arith.constant 0 : index
    %3 = vector.load %arg9[%c0, %c0_1] : memref<256x512xf32, #tpu.memory_space<vmem>>, vector<256x512xf32>
    %c0_2 = arith.constant 0 : index
    %c0_3 = arith.constant 0 : index
    %4 = vector.load %arg3[%c0_2, %c0_3] : memref<256x512xbf16, #tpu.memory_space<vmem>>, vector<256x512xbf16>
    %c0_4 = arith.constant 0 : index
    %c0_5 = arith.constant 0 : index
    %5 = vector.load %arg4[%c0_4, %c0_5] : memref<512x512xbf16, #tpu.memory_space<vmem>>, vector<512x512xbf16>
    %cst = arith.constant dense<0.000000e+00> : vector<256x512xf32>
    %6 = tpu.matmul %4, %5, %cst {dimension_numbers = #tpu.dot_dimension_numbers<[1], [1], [0], [0], [0, 0, 1, 0], [], []>} : vector<256x512xbf16>, vector<512x512xbf16>, vector<256x512xf32> -> vector<256x512xf32>
    %7 = arith.addf %3, %6 : vector<256x512xf32>
    %c0_6 = arith.constant 0 : index
    %c0_7 = arith.constant 0 : index
    %8 = vector.load %arg9[%c0_6, %c0_7] : memref<256x512xf32, #tpu.memory_space<vmem>>, vector<256x512xf32>
    tpu.vector_store %arg9[%c0_6, %c0_7], %7 {strides = array<i32>} : memref<256x512xf32, #tpu.memory_space<vmem>>, vector<256x512xf32>,
    %c0_i32_8 = arith.constant 0 : i32
    %9 = arith.cmpi eq, %arg2, %c0_i32_8 : i32
    %10 = arith.extui %9 : i1 to i32
    %c0_i32_9 = arith.constant 0 : i32
    %11 = arith.cmpi ne, %10, %c0_i32_9 : i32
    scf.if %11 {
      %c0_10 = arith.constant 0 : index
      %c0_11 = arith.constant 0 : index
      %12 = vector.load %arg6[%c0_10, %c0_11] : memref<256x16xbf16, #tpu.memory_space<vmem>>, vector<256x16xbf16>
      %c0_12 = arith.constant 0 : index
      %c0_13 = arith.constant 0 : index
      %13 = vector.load %arg7[%c0_12, %c0_13] : memref<16x512xbf16, #tpu.memory_space<vmem>>, vector<16x512xbf16>
      %cst_14 = arith.constant dense<0.000000e+00> : vector<256x512xf32>
      %14 = tpu.matmul %12, %13, %cst_14 {dimension_numbers = #tpu.dot_dimension_numbers<[1], [0], [0], [1], [0, 0, 1, 1], [], []>} : vector<256x16xbf16>, vector<16x512xbf16>, vector<256x512xf32> -> vector<256x512xf32>
      %c0_15 = arith.constant 0 : index
      %c0_16 = arith.constant 0 : index
      %15 = vector.load %arg9[%c0_15, %c0_16] : memref<256x512xf32, #tpu.memory_space<vmem>>, vector<256x512xf32>
      %c0_17 = arith.constant 0 : index
      %c0_18 = arith.constant 0 : index
      %16 = vector.load %arg5[%c0_17, %c0_18] : memref<1x512xf32, #tpu.memory_space<vmem>>, vector<1x512xf32>
      %17 = vector.broadcast %16 : vector<1x512xf32> to vector<256x512xf32>
      %18 = arith.addf %15, %17 : vector<256x512xf32>
      %19 = arith.addf %18, %14 : vector<256x512xf32>
      %c0_19 = arith.constant 0 : index
      %c0_20 = arith.constant 0 : index
      %20 = vector.load %arg8[%c0_19, %c0_20] : memref<256x512xf32, #tpu.memory_space<vmem>>, vector<256x512xf32>
      tpu.vector_store %arg8[%c0_19, %c0_20], %19 {strides = array<i32>} : memref<256x512xf32, #tpu.memory_space<vmem>>, vector<256x512xf32>,
    } else {
    }
    return
  }
  func.func @transform_0(%arg0: i32, %arg1: i32, %arg2: i32) -> (i32, i32) {
    %c0_i32 = arith.constant 0 : i32
    return %arg0, %arg2 : i32, i32
  }
  func.func @transform_1(%arg0: i32, %arg1: i32, %arg2: i32) -> (i32, i32) {
    %c0_i32 = arith.constant 0 : i32
    return %arg1, %arg2 : i32, i32
  }
  func.func @transform_2(%arg0: i32, %arg1: i32, %arg2: i32) -> (i32, i32) {
    %c0_i32 = arith.constant 0 : i32
    %c0_i32_0 = arith.constant 0 : i32
    return %c0_i32, %arg1 : i32, i32
  }
  func.func @transform_3(%arg0: i32, %arg1: i32, %arg2: i32) -> (i32, i32) {
    %c0_i32 = arith.constant 0 : i32
    %c0_i32_0 = arith.constant 0 : i32
    return %arg0, %c0_i32 : i32, i32
  }
  func.func @transform_4(%arg0: i32, %arg1: i32, %arg2: i32) -> (i32, i32) {
    %c0_i32 = arith.constant 0 : i32
    %c0_i32_0 = arith.constant 0 : i32
    return %c0_i32, %arg1 : i32, i32
  }
  func.func @transform_5(%arg0: i32, %arg1: i32, %arg2: i32) -> (i32, i32) {
    %c0_i32 = arith.constant 0 : i32
    return %arg0, %arg1 : i32, i32
  }
}

</mosaic_0001>

<llo_original>
// kernel: tpu_custom_call.1
$region0: #{tpu_custom_call.1}
  #allocation0 [shape = 'u32[]', space=smem, size = 0x4, offset = 0x4, fixed_abs, tag = 'smem constant byte address 0x4 - core index']
  #allocation1 [shape = 'u32[144,128]{1,0:T(1,128)}', space=vmem, size = 0x12000, scoped, tag = 'internal scratch']
  #allocation2 [shape = 'f32[256,512]{1,0:T(8,128)}', space=vmem, size = 0x80000, scoped, tag = 'scratch operand']
  %s0 = inlined_call_operand.hbm [shape: bf16[256,512], index: 0, kind: input, shape index: {}]
  %s1 = inlined_call_operand.hbm [shape: bf16[512,512], index: 1, kind: input, shape index: {}]
  %s2 = inlined_call_operand.vmem [shape: f32[1,512], index: 2, kind: input, shape index: {}]
  %s3 = inlined_call_operand.vmem [shape: bf16[256,16], index: 3, kind: input, shape index: {}]
  %s4 = inlined_call_operand.vmem [shape: bf16[16,512], index: 4, kind: input, shape index: {}]
  %s5 = inlined_call_operand.hbm [shape: f32[256,512], index: 5, kind: output, shape index: {}]
  %s6 = sld [smem:[#allocation0]]
  $region46: #{tpu_custom_call.1} parent=0
    _
  %s8 = ssub.s32 1, %s6
  %s9 = scalar_select 0, %s8, %s6
  $region1: #{tpu_custom_call.1} parent=0
    #allocation3 [shape = 'u8[262144]{0}', space=vmem, size = 0x40000, scoped, tag = 'input window, operand 0, single buffered']
    #allocation4 [shape = 's32[1]{0}', space=sflag, size = 0x4, scoped, tag = 'scoped memory for tpu_custom_call.1']
    #allocation5 [shape = 's32[1]{0}', space=sflag, size = 0x4, scoped, tag = 'scoped memory for tpu_custom_call.1']
    #allocation6 [shape = 'u8[524288]{0}', space=vmem, size = 0x80000, scoped, tag = 'input window, operand 1, single buffered']
    #allocation7 [shape = 's32[1]{0}', space=sflag, size = 0x4, scoped, tag = 'scoped memory for tpu_custom_call.1']
    #allocation8 [shape = 'u8[524288]{0}', space=vmem, size = 0x80000, scoped, tag = 'output window, operand 0, single buffered']
    %10 = vsyncpa [#allocation4], 0
    %11 = vsyncpa [#allocation7], 0
    %12 = vsyncpa [#allocation5], 0
    // Predicated region
    $region2: #{tpu_custom_call.1} parent=1 // pred_check
      _
    $region3: #{tpu_custom_call.1} parent=1 // pred_check_branch
      %14 = sbr.rel (0) target = $region5
    $region4: #{tpu_custom_call.1} parent=1 // pred_region
      %s16 = ssub.s32 8192, 8192
      %17 = vsyncadd [#allocation4], %s16
      %s18 = sshll.u32 [#allocation3], 4
      %s19 = int_to_ptr.vmem [resolvable:$true] %s18
      %24 = dma.hbm_to_vmem [thread:$0]  %s0, 8192, %s19, [#allocation4], 256, 256, 16
    $region5: #{tpu_custom_call.1} parent=1 // pred_fallthru
      _
    // Predicated region
    $region6: #{tpu_custom_call.1} parent=1 // pred_check
      _
    $region7: #{tpu_custom_call.1} parent=1 // pred_check_branch
      %26 = sbr.rel (0) target = $region9
    $region8: #{tpu_custom_call.1} parent=1 // pred_region
      %s28 = ssub.s32 16384, 16384
      %29 = vsyncadd [#allocation7], %s28
      %s30 = sshll.u32 [#allocation6], 4
      %s31 = int_to_ptr.vmem [resolvable:$true] %s30
      %36 = dma.hbm_to_vmem [thread:$0]  %s1, 16384, %s31, [#allocation7], 256, 256, 16
    $region9: #{tpu_custom_call.1} parent=1 // pred_fallthru
      _
    // Predicated region
    $region10: #{tpu_custom_call.1} parent=1 // pred_check
      _
    $region11: #{tpu_custom_call.1} parent=1 // pred_check_branch
      %38 = sbr.rel (0) target = $region13
    $region12: #{tpu_custom_call.1} parent=1 // pred_region
      _
    $region13: #{tpu_custom_call.1} parent=1 // pred_fallthru
      _
    // Predicated region
    $region14: #{tpu_custom_call.1} parent=1 // pred_check
      _
    $region15: #{tpu_custom_call.1} parent=1 // pred_check_branch
      %40 = sbr.rel (0) target = $region17
    $region16: #{tpu_custom_call.1} parent=1 // pred_region
      _
    $region17: #{tpu_custom_call.1} parent=1 // pred_fallthru
      _
    // Predicated region
    $region18: #{tpu_custom_call.1} parent=1 // pred_check
      _
    $region19: #{tpu_custom_call.1} parent=1 // pred_check_branch
      %42 = sbr.rel (0) target = $region21
    $region20: #{tpu_custom_call.1} parent=1 // pred_region
      _
    $region21: #{tpu_custom_call.1} parent=1 // pred_fallthru
      _
    // Predicated region
    $region22: #{tpu_custom_call.1} parent=1 // pred_check
      _
    $region23: #{tpu_custom_call.1} parent=1 // pred_check_branch
      %44 = sbr.rel (0) target = $region25
    $region24: #{tpu_custom_call.1} parent=1 // pred_region
      %45 = dma.done [#allocation4], 8192
    $region25: #{tpu_custom_call.1} parent=1 // pred_fallthru
      _
    // Predicated region
    $region26: #{tpu_custom_call.1} parent=1 // pred_check
      _
    $region27: #{tpu_custom_call.1} parent=1 // pred_check_branch
      %47 = sbr.rel (0) target = $region29
    $region28: #{tpu_custom_call.1} parent=1 // pred_region
      %48 = dma.done [#allocation7], 16384
    $region29: #{tpu_custom_call.1} parent=1 // pred_fallthru
      _
    %p50 = scmp.eq.s32.totalorder 0, 0
    // Predicated region
    $region30: #{tpu_custom_call.1} parent=1 // pred_check
      %p51 = pneg %p50
    $region31: #{tpu_custom_call.1} parent=1 // pred_check_branch
      %53 = sbr.rel (%p51) target = $region33
    $region32: #{tpu_custom_call.1} parent=1 // pred_region
      %54 = vst [vmem:[#allocation2] sm:$0xff] 0.0
      %55 = vst [vmem:[#allocation2 + $0x8] sm:$0xff] 0.0
      %56 = vst [vmem:[#allocation2 + $0x10] sm:$0xff] 0.0
      %57 = vst [vmem:[#allocation2 + $0x18] sm:$0xff] 0.0
      %58 = vst [vmem:[#allocation2 + $0x20] sm:$0xff] 0.0
      %59 = vst [vmem:[#allocation2 + $0x28] sm:$0xff] 0.0
      %60 = vst [vmem:[#allocation2 + $0x30] sm:$0xff] 0.0
      %61 = vst [vmem:[#allocation2 + $0x38] sm:$0xff] 0.0
      %62 = vst [vmem:[#allocation2 + $0x40] sm:$0xff] 0.0
      %63 = vst [vmem:[#allocation2 + $0x48] sm:$0xff] 0.0
      %64 = vst [vmem:[#allocation2 + $0x50] sm:$0xff] 0.0
      %65 = vst [vmem:[#allocation2 + $0x58] sm:$0xff] 0.0
      %66 = vst [vmem:[#allocation2 + $0x60] sm:$0xff] 0.0
      %67 = vst [vmem:[#allocation2 + $0x68] sm:$0xff] 0.0
      %68 = vst [vmem:[#allocation2 + $0x70] sm:$0xff] 0.0
      %69 = vst [vmem:[#allocation2 + $0x78] sm:$0xff] 0.0
      %70 = vst [vmem:[#allocation2 + $0x80] sm:$0xff] 0.0
      %71 = vst [vmem:[#allocation2 + $0x88] sm:$0xff] 0.0
      %72 = vst [vmem:[#allocation2 + $0x90] sm:$0xff] 0.0
      %73 = vst [vmem:[#allocation2 + $0x98] sm:$0xff] 0.0
      %74 = vst [vmem:[#allocation2 + $0xa0] sm:$0xff] 0.0
      %75 = vst [vmem:[#allocation2 + $0xa8] sm:$0xff] 0.0
      %76 = vst [vmem:[#allocation2 + $0xb0] sm:$0xff] 0.0
      %77 = vst [vmem:[#allocation2 + $0xb8] sm:$0xff] 0.0
      %78 = vst [vmem:[#allocation2 + $0xc0] sm:$0xff] 0.0
      %79 = vst [vmem:[#allocation2 + $0xc8] sm:$0xff] 0.0
      %80 = vst [vmem:[#allocation2 + $0xd0] sm:$0xff] 0.0
      %81 = vst [vmem:[#allocation2 + $0xd8] sm:$0xff] 0.0
      %82 = vst [vmem:[#allocation2 + $0xe0] sm:$0xff] 0.0
      %83 = vst [vmem:[#allocation2 + $0xe8] sm:$0xff] 0.0
      %84 = vst [vmem:[#allocation2 + $0xf0] sm:$0xff] 0.0
      %85 = vst [vmem:[#allocation2 + $0xf8] sm:$0xff] 0.0
      %86 = vst [vmem:[#allocation2 + $0x100] sm:$0xff] 0.0
      %87 = vst [vmem:[#allocation2 + $0x108] sm:$0xff] 0.0
      %88 = vst [vmem:[#allocation2 + $0x110] sm:$0xff] 0.0
      %89 = vst [vmem:[#allocation2 + $0x118] sm:$0xff] 0.0
      %90 = vst [vmem:[#allocation2 + $0x120] sm:$0xff] 0.0
      %91 = vst [vmem:[#allocation2 + $0x128] sm:$0xff] 0.0
      %92 = vst [vmem:[#allocation2 + $0x130] sm:$0xff] 0.0
      %93 = vst [vmem:[#allocation2 + $0x138] sm:$0xff] 0.0
      %94 = vst [vmem:[#allocation2 + $0x140] sm:$0xff] 0.0
      %95 = vst [vmem:[#allocation2 + $0x148] sm:$0xff] 0.0
      %96 = vst [vmem:[#allocation2 + $0x150] sm:$0xff] 0.0
      %97 = vst [vmem:[#allocation2 + $0x158] sm:$0xff] 0.0
      %98 = vst [vmem:[#allocation2 + $0x160] sm:$0xff] 0.0
      %99 = vst [vmem:[#allocation2 + $0x168] sm:$0xff] 0.0
      %100 = vst [vmem:[#allocation2 + $0x170] sm:$0xff] 0.0
      %101 = vst [vmem:[#allocation2 + $0x178] sm:$0xff] 0.0
      %102 = vst [vmem:[#allocation2 + $0x180] sm:$0xff] 0.0
      %103 = vst [vmem:[#allocation2 + $0x188] sm:$0xff] 0.0
      %104 = vst [vmem:[#allocation2 + $0x190] sm:$0xff] 0.0
      %105 = vst [vmem:[#allocation2 + $0x198] sm:$0xff] 0.0
      %106 = vst [vmem:[#allocation2 + $0x1a0] sm:$0xff] 0.0
      %107 = vst [vmem:[#allocation2 + $0x1a8] sm:$0xff] 0.0
      %108 = vst [vmem:[#allocation2 + $0x1b0] sm:$0xff] 0.0
      %109 = vst [vmem:[#allocation2 + $0x1b8] sm:$0xff] 0.0
      %110 = vst [vmem:[#allocation2 + $0x1c0] sm:$0xff] 0.0
      %111 = vst [vmem:[#allocation2 + $0x1c8] sm:$0xff] 0.0
      %112 = vst [vmem:[#allocation2 + $0x1d0] sm:$0xff] 0.0
      %113 = vst [vmem:[#allocation2 + $0x1d8] sm:$0xff] 0.0
      %114 = vst [vmem:[#allocation2 + $0x1e0] sm:$0xff] 0.0
      %115 = vst [vmem:[#allocation2 + $0x1e8] sm:$0xff] 0.0
      %116 = vst [vmem:[#allocation2 + $0x1f0] sm:$0xff] 0.0
      %117 = vst [vmem:[#allocation2 + $0x1f8] sm:$0xff] 0.0
      %118 = vst [vmem:[#allocation2 + $0x200] sm:$0xff] 0.0
      %119 = vst [vmem:[#allocation2 + $0x208] sm:$0xff] 0.0
      %120 = vst [vmem:[#allocation2 + $0x210] sm:$0xff] 0.0
      %121 = vst [vmem:[#allocation2 + $0x218] sm:$0xff] 0.0
      %122 = vst [vmem:[#allocation2 + $0x220] sm:$0xff] 0.0
      %123 = vst [vmem:[#allocation2 + $0x228] sm:$0xff] 0.0
      %124 = vst [vmem:[#allocation2 + $0x230] sm:$0xff] 0.0
      %125 = vst [vmem:[#allocation2 + $0x238] sm:$0xff] 0.0
      %126 = vst [vmem:[#allocation2 + $0x240] sm:$0xff] 0.0
      %127 = vst [vmem:[#allocation2 + $0x248] sm:$0xff] 0.0
      %128 = vst [vmem:[#allocation2 + $0x250] sm:$0xff] 0.0
      %129 = vst [vmem:[#allocation2 + $0x258] sm:$0xff] 0.0
      %130 = vst [vmem:[#allocation2 + $0x260] sm:$0xff] 0.0
      %131 = vst [vmem:[#allocation2 + $0x268] sm:$0xff] 0.0
      %132 = vst [vmem:[#allocation2 + $0x270] sm:$0xff] 0.0
      %133 = vst [vmem:[#allocation2 + $0x278] sm:$0xff] 0.0
      %134 = vst [vmem:[#allocation2 + $0x280] sm:$0xff] 0.0
      %135 = vst [vmem:[#allocation2 + $0x288] sm:$0xff] 0.0
      %136 = vst [vmem:[#allocation2 + $0x290] sm:$0xff] 0.0
      %137 = vst [vmem:[#allocation2 + $0x298] sm:$0xff] 0.0
      %138 = vst [vmem:[#allocation2 + $0x2a0] sm:$0xff] 0.0
      %139 = vst [vmem:[#allocation2 + $0x2a8] sm:$0xff] 0.0
      %140 = vst [vmem:[#allocation2 + $0x2b0] sm:$0xff] 0.0
      %141 = vst [vmem:[#allocation2 + $0x2b8] sm:$0xff] 0.0
      %142 = vst [vmem:[#allocation2 + $0x2c0] sm:$0xff] 0.0
      %143 = vst [vmem:[#allocation2 + $0x2c8] sm:$0xff] 0.0
      %144 = vst [vmem:[#allocation2 + $0x2d0] sm:$0xff] 0.0
      %145 = vst [vmem:[#allocation2 + $0x2d8] sm:$0xff] 0.0
      %146 = vst [vmem:[#allocation2 + $0x2e0] sm:$0xff] 0.0
      %147 = vst [vmem:[#allocation2 + $0x2e8] sm:$0xff] 0.0
      %148 = vst [vmem:[#allocation2 + $0x2f0] sm:$0xff] 0.0
      %149 = vst [vmem:[#allocation2 + $0x2f8] sm:$0xff] 0.0
      %150 = vst [vmem:[#allocation2 + $0x300] sm:$0xff] 0.0
      %151 = vst [vmem:[#allocation2 + $0x308] sm:$0xff] 0.0
      %152 = vst [vmem:[#allocation2 + $0x310] sm:$0xff] 0.0
      %153 = vst [vmem:[#allocation2 + $0x318] sm:$0xff] 0.0
      %154 = vst [vmem:[#allocation2 + $0x320] sm:$0xff] 0.0
      %155 = vst [vmem:[#allocation2 + $0x328] sm:$0xff] 0.0
      %156 = vst [vmem:[#allocation2 + $0x330] sm:$0xff] 0.0
      %157 = vst [vmem:[#allocation2 + $0x338] sm:$0xff] 0.0
      %158 = vst [vmem:[#allocation2 + $0x340] sm:$0xff] 0.0
      %159 = vst [vmem:[#allocation2 + $0x348] sm:$0xff] 0.0
      %160 = vst [vmem:[#allocation2 + $0x350] sm:$0xff] 0.0
      %161 = vst [vmem:[#allocation2 + $0x358] sm:$0xff] 0.0
      %162 = vst [vmem:[#allocation2 + $0x360] sm:$0xff] 0.0
      %163 = vst [vmem:[#allocation2 + $0x368] sm:$0xff] 0.0
      %164 = vst [vmem:[#allocation2 + $0x370] sm:$0xff] 0.0
      %165 = vst [vmem:[#allocation2 + $0x378] sm:$0xff] 0.0
      %166 = vst [vmem:[#allocation2 + $0x380] sm:$0xff] 0.0
      %167 = vst [vmem:[#allocation2 + $0x388] sm:$0xff] 0.0
      %168 = vst [vmem:[#allocation2 + $0x390] sm:$0xff] 0.0
      %169 = vst [vmem:[#allocation2 + $0x398] sm:$0xff] 0.0
      %170 = vst [vmem:[#allocation2 + $0x3a0] sm:$0xff] 0.0
      %171 = vst [vmem:[#allocation2 + $0x3a8] sm:$0xff] 0.0
      %172 = vst [vmem:[#allocation2 + $0x3b0] sm:$0xff] 0.0
      %173 = vst [vmem:[#allocation2 + $0x3b8] sm:$0xff] 0.0
      %174 = vst [vmem:[#allocation2 + $0x3c0] sm:$0xff] 0.0
      %175 = vst [vmem:[#allocation2 + $0x3c8] sm:$0xff] 0.0
      %176 = vst [vmem:[#allocation2 + $0x3d0] sm:$0xff] 0.0
      %177 = vst [vmem:[#allocation2 + $0x3d8] sm:$0xff] 0.0
      %178 = vst [vmem:[#allocation2 + $0x3e0] sm:$0xff] 0.0
      %179 = vst [vmem:[#allocation2 + $0x3e8] sm:$0xff] 0.0
      %180 = vst [vmem:[#allocation2 + $0x3f0] sm:$0xff] 0.0
      %181 = vst [vmem:[#allocation2 + $0x3f8] sm:$0xff] 0.0
    $region33: #{tpu_custom_call.1} parent=1 // pred_fallthru
      _
    %v182 = vld [vmem:[#allocation2] sm:$0xff]
    %v183 = vld [vmem:[#allocation2 + $0x8] sm:$0xff]
    %v184 = vld [vmem:[#allocation2 + $0x10] sm:$0xff]
    %v185 = vld [vmem:[#allocation2 + $0x18] sm:$0xff]
    %v186 = vld [vmem:[#allocation2 + $0x20] sm:$0xff]
    %v187 = vld [vmem:[#allocation2 + $0x28] sm:$0xff]
    %v188 = vld [vmem:[#allocation2 + $0x30] sm:$0xff]
    %v189 = vld [vmem:[#allocation2 + $0x38] sm:$0xff]
    %v190 = vld [vmem:[#allocation2 + $0x40] sm:$0xff]
    %v191 = vld [vmem:[#allocation2 + $0x48] sm:$0xff]
    %v192 = vld [vmem:[#allocation2 + $0x50] sm:$0xff]
    %v193 = vld [vmem:[#allocation2 + $0x58] sm:$0xff]
    %v194 = vld [vmem:[#allocation2 + $0x60] sm:$0xff]
    %v195 = vld [vmem:[#allocation2 + $0x68] sm:$0xff]
    %v196 = vld [vmem:[#allocation2 + $0x70] sm:$0xff]
    %v197 = vld [vmem:[#allocation2 + $0x78] sm:$0xff]
    %v198 = vld [vmem:[#allocation2 + $0x80] sm:$0xff]
    %v199 = vld [vmem:[#allocation2 + $0x88] sm:$0xff]
    %v200 = vld [vmem:[#allocation2 + $0x90] sm:$0xff]
    %v201 = vld [vmem:[#allocation2 + $0x98] sm:$0xff]
    %v202 = vld [vmem:[#allocation2 + $0xa0] sm:$0xff]
    %v203 = vld [vmem:[#allocation2 + $0xa8] sm:$0xff]
    %v204 = vld [vmem:[#allocation2 + $0xb0] sm:$0xff]
    %v205 = vld [vmem:[#allocation2 + $0xb8] sm:$0xff]
    %v206 = vld [vmem:[#allocation2 + $0xc0] sm:$0xff]
    %v207 = vld [vmem:[#allocation2 + $0xc8] sm:$0xff]
    %v208 = vld [vmem:[#allocation2 + $0xd0] sm:$0xff]
    %v209 = vld [vmem:[#allocation2 + $0xd8] sm:$0xff]
    %v210 = vld [vmem:[#allocation2 + $0xe0] sm:$0xff]
    %v211 = vld [vmem:[#allocation2 + $0xe8] sm:$0xff]
    %v212 = vld [vmem:[#allocation2 + $0xf0] sm:$0xff]
    %v213 = vld [vmem:[#allocation2 + $0xf8] sm:$0xff]
    %v214 = vld [vmem:[#allocation2 + $0x100] sm:$0xff]
    %v215 = vld [vmem:[#allocation2 + $0x108] sm:$0xff]
    %v216 = vld [vmem:[#allocation2 + $0x110] sm:$0xff]
    %v217 = vld [vmem:[#allocation2 + $0x118] sm:$0xff]
    %v218 = vld [vmem:[#allocation2 + $0x120] sm:$0xff]
    %v219 = vld [vmem:[#allocation2 + $0x128] sm:$0xff]
    %v220 = vld [vmem:[#allocation2 + $0x130] sm:$0xff]
    %v221 = vld [vmem:[#allocation2 + $0x138] sm:$0xff]
    %v222 = vld [vmem:[#allocation2 + $0x140] sm:$0xff]
    %v223 = vld [vmem:[#allocation2 + $0x148] sm:$0xff]
    %v224 = vld [vmem:[#allocation2 + $0x150] sm:$0xff]
    %v225 = vld [vmem:[#allocation2 + $0x158] sm:$0xff]
    %v226 = vld [vmem:[#allocation2 + $0x160] sm:$0xff]
    %v227 = vld [vmem:[#allocation2 + $0x168] sm:$0xff]
    %v228 = vld [vmem:[#allocation2 + $0x170] sm:$0xff]
    %v229 = vld [vmem:[#allocation2 + $0x178] sm:$0xff]
    %v230 = vld [vmem:[#allocation2 + $0x180] sm:$0xff]
    %v231 = vld [vmem:[#allocation2 + $0x188] sm:$0xff]
    %v232 = vld [vmem:[#allocation2 + $0x190] sm:$0xff]
    %v233 = vld [vmem:[#allocation2 + $0x198] sm:$0xff]
    %v234 = vld [vmem:[#allocation2 + $0x1a0] sm:$0xff]
    %v235 = vld [vmem:[#allocation2 + $0x1a8] sm:$0xff]
    %v236 = vld [vmem:[#allocation2 + $0x1b0] sm:$0xff]
    %v237 = vld [vmem:[#allocation2 + $0x1b8] sm:$0xff]
    %v238 = vld [vmem:[#allocation2 + $0x1c0] sm:$0xff]
    %v239 = vld [vmem:[#allocation2 + $0x1c8] sm:$0xff]
    %v240 = vld [vmem:[#allocation2 + $0x1d0] sm:$0xff]
    %v241 = vld [vmem:[#allocation2 + $0x1d8] sm:$0xff]
    %v242 = vld [vmem:[#allocation2 + $0x1e0] sm:$0xff]
    %v243 = vld [vmem:[#allocation2 + $0x1e8] sm:$0xff]
    %v244 = vld [vmem:[#allocation2 + $0x1f0] sm:$0xff]
    %v245 = vld [vmem:[#allocation2 + $0x1f8] sm:$0xff]
    %v246 = vld [vmem:[#allocation2 + $0x200] sm:$0xff]
    %v247 = vld [vmem:[#allocation2 + $0x208] sm:$0xff]
    %v248 = vld [vmem:[#allocation2 + $0x210] sm:$0xff]
    %v249 = vld [vmem:[#allocation2 + $0x218] sm:$0xff]
    %v250 = vld [vmem:[#allocation2 + $0x220] sm:$0xff]
    %v251 = vld [vmem:[#allocation2 + $0x228] sm:$0xff]
    %v252 = vld [vmem:[#allocation2 + $0x230] sm:$0xff]
    %v253 = vld [vmem:[#allocation2 + $0x238] sm:$0xff]
    %v254 = vld [vmem:[#allocation2 + $0x240] sm:$0xff]
    %v255 = vld [vmem:[#allocation2 + $0x248] sm:$0xff]
    %v256 = vld [vmem:[#allocation2 + $0x250] sm:$0xff]
    %v257 = vld [vmem:[#allocation2 + $0x258] sm:$0xff]
    %v258 = vld [vmem:[#allocation2 + $0x260] sm:$0xff]
    %v259 = vld [vmem:[#allocation2 + $0x268] sm:$0xff]
    %v260 = vld [vmem:[#allocation2 + $0x270] sm:$0xff]
    %v261 = vld [vmem:[#allocation2 + $0x278] sm:$0xff]
    %v262 = vld [vmem:[#allocation2 + $0x280] sm:$0xff]
    %v263 = vld [vmem:[#allocation2 + $0x288] sm:$0xff]
    %v264 = vld [vmem:[#allocation2 + $0x290] sm:$0xff]
    %v265 = vld [vmem:[#allocation2 + $0x298] sm:$0xff]
    %v266 = vld [vmem:[#allocation2 + $0x2a0] sm:$0xff]
    %v267 = vld [vmem:[#allocation2 + $0x2a8] sm:$0xff]
    %v268 = vld [vmem:[#allocation2 + $0x2b0] sm:$0xff]
    %v269 = vld [vmem:[#allocation2 + $0x2b8] sm:$0xff]
    %v270 = vld [vmem:[#allocation2 + $0x2c0] sm:$0xff]
    %v271 = vld [vmem:[#allocation2 + $0x2c8] sm:$0xff]
    %v272 = vld [vmem:[#allocation2 + $0x2d0] sm:$0xff]
    %v273 = vld [vmem:[#allocation2 + $0x2d8] sm:$0xff]
    %v274 = vld [vmem:[#allocation2 + $0x2e0] sm:$0xff]
    %v275 = vld [vmem:[#allocation2 + $0x2e8] sm:$0xff]
    %v276 = vld [vmem:[#allocation2 + $0x2f0] sm:$0xff]
    %v277 = vld [vmem:[#allocation2 + $0x2f8] sm:$0xff]
    %v278 = vld [vmem:[#allocation2 + $0x300] sm:$0xff]
    %v279 = vld [vmem:[#allocation2 + $0x308] sm:$0xff]
    %v280 = vld [vmem:[#allocation2 + $0x310] sm:$0xff]
    %v281 = vld [vmem:[#allocation2 + $0x318] sm:$0xff]
    %v282 = vld [vmem:[#allocation2 + $0x320] sm:$0xff]
    %v283 = vld [vmem:[#allocation2 + $0x328] sm:$0xff]
    %v284 = vld [vmem:[#allocation2 + $0x330] sm:$0xff]
    %v285 = vld [vmem:[#allocation2 + $0x338] sm:$0xff]
    %v286 = vld [vmem:[#allocation2 + $0x340] sm:$0xff]
    %v287 = vld [vmem:[#allocation2 + $0x348] sm:$0xff]
    %v288 = vld [vmem:[#allocation2 + $0x350] sm:$0xff]
    %v289 = vld [vmem:[#allocation2 + $0x358] sm:$0xff]
    %v290 = vld [vmem:[#allocation2 + $0x360] sm:$0xff]
    %v291 = vld [vmem:[#allocation2 + $0x368] sm:$0xff]
    %v292 = vld [vmem:[#allocation2 + $0x370] sm:$0xff]
    %v293 = vld [vmem:[#allocation2 + $0x378] sm:$0xff]
    %v294 = vld [vmem:[#allocation2 + $0x380] sm:$0xff]
    %v295 = vld [vmem:[#allocation2 + $0x388] sm:$0xff]
    %v296 = vld [vmem:[#allocation2 + $0x390] sm:$0xff]
    %v297 = vld [vmem:[#allocation2 + $0x398] sm:$0xff]
    %v298 = vld [vmem:[#allocation2 + $0x3a0] sm:$0xff]
    %v299 = vld [vmem:[#allocation2 + $0x3a8] sm:$0xff]
    %v300 = vld [vmem:[#allocation2 + $0x3b0] sm:$0xff]
    %v301 = vld [vmem:[#allocation2 + $0x3b8] sm:$0xff]
    %v302 = vld [vmem:[#allocation2 + $0x3c0] sm:$0xff]
    %v303 = vld [vmem:[#allocation2 + $0x3c8] sm:$0xff]
    %v304 = vld [vmem:[#allocation2 + $0x3d0] sm:$0xff]
    %v305 = vld [vmem:[#allocation2 + $0x3d8] sm:$0xff]
    %v306 = vld [vmem:[#allocation2 + $0x3e0] sm:$0xff]
    %v307 = vld [vmem:[#allocation2 + $0x3e8] sm:$0xff]
    %v308 = vld [vmem:[#allocation2 + $0x3f0] sm:$0xff]
    %v309 = vld [vmem:[#allocation2 + $0x3f8] sm:$0xff]
    %v310 = vld [vmem:[#allocation3] sm:$0xff]
    %v311 = vld [vmem:[#allocation3 + $0x8] sm:$0xff]
    %v312 = vld [vmem:[#allocation3 + $0x10] sm:$0xff]
    %v313 = vld [vmem:[#allocation3 + $0x18] sm:$0xff]
    %v314 = vld [vmem:[#allocation3 + $0x20] sm:$0xff]
    %v315 = vld [vmem:[#allocation3 + $0x28] sm:$0xff]
    %v316 = vld [vmem:[#allocation3 + $0x30] sm:$0xff]
    %v317 = vld [vmem:[#allocation3 + $0x38] sm:$0xff]
    %v318 = vld [vmem:[#allocation3 + $0x40] sm:$0xff]
    %v319 = vld [vmem:[#allocation3 + $0x48] sm:$0xff]
    %v320 = vld [vmem:[#allocation3 + $0x50] sm:$0xff]
    %v321 = vld [vmem:[#allocation3 + $0x58] sm:$0xff]
    %v322 = vld [vmem:[#allocation3 + $0x60] sm:$0xff]
    %v323 = vld [vmem:[#allocation3 + $0x68] sm:$0xff]
    %v324 = vld [vmem:[#allocation3 + $0x70] sm:$0xff]
    %v325 = vld [vmem:[#allocation3 + $0x78] sm:$0xff]
    %v326 = vld [vmem:[#allocation3 + $0x80] sm:$0xff]
    %v327 = vld [vmem:[#allocation3 + $0x88] sm:$0xff]
    %v328 = vld [vmem:[#allocation3 + $0x90] sm:$0xff]
    %v329 = vld [vmem:[#allocation3 + $0x98] sm:$0xff]
    %v330 = vld [vmem:[#allocation3 + $0xa0] sm:$0xff]
    %v331 = vld [vmem:[#allocation3 + $0xa8] sm:$0xff]
    %v332 = vld [vmem:[#allocation3 + $0xb0] sm:$0xff]
    %v333 = vld [vmem:[#allocation3 + $0xb8] sm:$0xff]
    %v334 = vld [vmem:[#allocation3 + $0xc0] sm:$0xff]
    %v335 = vld [vmem:[#allocation3 + $0xc8] sm:$0xff]
    %v336 = vld [vmem:[#allocation3 + $0xd0] sm:$0xff]
    %v337 = vld [vmem:[#allocation3 + $0xd8] sm:$0xff]
    %v338 = vld [vmem:[#allocation3 + $0xe0] sm:$0xff]
    %v339 = vld [vmem:[#allocation3 + $0xe8] sm:$0xff]
    %v340 = vld [vmem:[#allocation3 + $0xf0] sm:$0xff]
    %v341 = vld [vmem:[#allocation3 + $0xf8] sm:$0xff]
    %v342 = vld [vmem:[#allocation3 + $0x100] sm:$0xff]
    %v343 = vld [vmem:[#allocation3 + $0x108] sm:$0xff]
    %v344 = vld [vmem:[#allocation3 + $0x110] sm:$0xff]
    %v345 = vld [vmem:[#allocation3 + $0x118] sm:$0xff]
    %v346 = vld [vmem:[#allocation3 + $0x120] sm:$0xff]
    %v347 = vld [vmem:[#allocation3 + $0x128] sm:$0xff]
    %v348 = vld [vmem:[#allocation3 + $0x130] sm:$0xff]
    %v349 = vld [vmem:[#allocation3 + $0x138] sm:$0xff]
    %v350 = vld [vmem:[#allocation3 + $0x140] sm:$0xff]
    %v351 = vld [vmem:[#allocation3 + $0x148] sm:$0xff]
    %v352 = vld [vmem:[#allocation3 + $0x150] sm:$0xff]
    %v353 = vld [vmem:[#allocation3 + $0x158] sm:$0xff]
    %v354 = vld [vmem:[#allocation3 + $0x160] sm:$0xff]
    %v355 = vld [vmem:[#allocation3 + $0x168] sm:$0xff]
    %v356 = vld [vmem:[#allocation3 + $0x170] sm:$0xff]
    %v357 = vld [vmem:[#allocation3 + $0x178] sm:$0xff]
    %v358 = vld [vmem:[#allocation3 + $0x180] sm:$0xff]
    %v359 = vld [vmem:[#allocation3 + $0x188] sm:$0xff]
    %v360 = vld [vmem:[#allocation3 + $0x190] sm:$0xff]
    %v361 = vld [vmem:[#allocation3 + $0x198] sm:$0xff]
    %v362 = vld [vmem:[#allocation3 + $0x1a0] sm:$0xff]
    %v363 = vld [vmem:[#allocation3 + $0x1a8] sm:$0xff]
    %v364 = vld [vmem:[#allocation3 + $0x1b0] sm:$0xff]
    %v365 = vld [vmem:[#allocation3 + $0x1b8] sm:$0xff]
    %v366 = vld [vmem:[#allocation3 + $0x1c0] sm:$0xff]
    %v367 = vld [vmem:[#allocation3 + $0x1c8] sm:$0xff]
    %v368 = vld [vmem:[#allocation3 + $0x1d0] sm:$0xff]
    %v369 = vld [vmem:[#allocation3 + $0x1d8] sm:$0xff]
    %v370 = vld [vmem:[#allocation3 + $0x1e0] sm:$0xff]
    %v371 = vld [vmem:[#allocation3 + $0x1e8] sm:$0xff]
    %v372 = vld [vmem:[#allocation3 + $0x1f0] sm:$0xff]
    %v373 = vld [vmem:[#allocation3 + $0x1f8] sm:$0xff]
    %v374 = vld [vmem:[#allocation6] sm:$0xff]
    %v375 = vld [vmem:[#allocation6 + $0x8] sm:$0xff]
    %v376 = vld [vmem:[#allocation6 + $0x10] sm:$0xff]
    %v377 = vld [vmem:[#allocation6 + $0x18] sm:$0xff]
    %v378 = vld [vmem:[#allocation6 + $0x20] sm:$0xff]
    %v379 = vld [vmem:[#allocation6 + $0x28] sm:$0xff]
    %v380 = vld [vmem:[#allocation6 + $0x30] sm:$0xff]
    %v381 = vld [vmem:[#allocation6 + $0x38] sm:$0xff]
    %v382 = vld [vmem:[#allocation6 + $0x40] sm:$0xff]
    %v383 = vld [vmem:[#allocation6 + $0x48] sm:$0xff]
    %v384 = vld [vmem:[#allocation6 + $0x50] sm:$0xff]
    %v385 = vld [vmem:[#allocation6 + $0x58] sm:$0xff]
    %v386 = vld [vmem:[#allocation6 + $0x60] sm:$0xff]
    %v387 = vld [vmem:[#allocation6 + $0x68] sm:$0xff]
    %v388 = vld [vmem:[#allocation6 + $0x70] sm:$0xff]
    %v389 = vld [vmem:[#allocation6 + $0x78] sm:$0xff]
    %v390 = vld [vmem:[#allocation6 + $0x80] sm:$0xff]
    %v391 = vld [vmem:[#allocation6 + $0x88] sm:$0xff]
    %v392 = vld [vmem:[#allocation6 + $0x90] sm:$0xff]
    %v393 = vld [vmem:[#allocation6 + $0x98] sm:$0xff]
    %v394 = vld [vmem:[#allocation6 + $0xa0] sm:$0xff]
    %v395 = vld [vmem:[#allocation6 + $0xa8] sm:$0xff]
    %v396 = vld [vmem:[#allocation6 + $0xb0] sm:$0xff]
    %v397 = vld [vmem:[#allocation6 + $0xb8] sm:$0xff]
    %v398 = vld [vmem:[#allocation6 + $0xc0] sm:$0xff]
    %v399 = vld [vmem:[#allocation6 + $0xc8] sm:$0xff]
    %v400 = vld [vmem:[#allocation6 + $0xd0] sm:$0xff]
    %v401 = vld [vmem:[#allocation6 + $0xd8] sm:$0xff]
    %v402 = vld [vmem:[#allocation6 + $0xe0] sm:$0xff]
    %v403 = vld [vmem:[#allocation6 + $0xe8] sm:$0xff]
    %v404 = vld [vmem:[#allocation6 + $0xf0] sm:$0xff]
    %v405 = vld [vmem:[#allocation6 + $0xf8] sm:$0xff]
    %v406 = vld [vmem:[#allocation6 + $0x100] sm:$0xff]
    %v407 = vld [vmem:[#allocation6 + $0x108] sm:$0xff]
    %v408 = vld [vmem:[#allocation6 + $0x110] sm:$0xff]
    %v409 = vld [vmem:[#allocation6 + $0x118] sm:$0xff]
    %v410 = vld [vmem:[#allocation6 + $0x120] sm:$0xff]
    %v411 = vld [vmem:[#allocation6 + $0x128] sm:$0xff]
    %v412 = vld [vmem:[#allocation6 + $0x130] sm:$0xff]
    %v413 = vld [vmem:[#allocation6 + $0x138] sm:$0xff]
    %v414 = vld [vmem:[#allocation6 + $0x140] sm:$0xff]
    %v415 = vld [vmem:[#allocation6 + $0x148] sm:$0xff]
    %v416 = vld [vmem:[#allocation6 + $0x150] sm:$0xff]
    %v417 = vld [vmem:[#allocation6 + $0x158] sm:$0xff]
    %v418 = vld [vmem:[#allocation6 + $0x160] sm:$0xff]
    %v419 = vld [vmem:[#allocation6 + $0x168] sm:$0xff]
    %v420 = vld [vmem:[#allocation6 + $0x170] sm:$0xff]
    %v421 = vld [vmem:[#allocation6 + $0x178] sm:$0xff]
    %v422 = vld [vmem:[#allocation6 + $0x180] sm:$0xff]
    %v423 = vld [vmem:[#allocation6 + $0x188] sm:$0xff]
    %v424 = vld [vmem:[#allocation6 + $0x190] sm:$0xff]
    %v425 = vld [vmem:[#allocation6 + $0x198] sm:$0xff]
    %v426 = vld [vmem:[#allocation6 + $0x1a0] sm:$0xff]
    %v427 = vld [vmem:[#allocation6 + $0x1a8] sm:$0xff]
    %v428 = vld [vmem:[#allocation6 + $0x1b0] sm:$0xff]
    %v429 = vld [vmem:[#allocation6 + $0x1b8] sm:$0xff]
    %v430 = vld [vmem:[#allocation6 + $0x1c0] sm:$0xff]
    %v431 = vld [vmem:[#allocation6 + $0x1c8] sm:$0xff]
    %v432 = vld [vmem:[#allocation6 + $0x1d0] sm:$0xff]
    %v433 = vld [vmem:[#allocation6 + $0x1d8] sm:$0xff]
    %v434 = vld [vmem:[#allocation6 + $0x1e0] sm:$0xff]
    %v435 = vld [vmem:[#allocation6 + $0x1e8] sm:$0xff]
    %v436 = vld [vmem:[#allocation6 + $0x1f0] sm:$0xff]
    %v437 = vld [vmem:[#allocation6 + $0x1f8] sm:$0xff]
    %v438 = vld [vmem:[#allocation6 + $0x200] sm:$0xff]
    %v439 = vld [vmem:[#allocation6 + $0x208] sm:$0xff]
    %v440 = vld [vmem:[#allocation6 + $0x210] sm:$0xff]
    %v441 = vld [vmem:[#allocation6 + $0x218] sm:$0xff]
    %v442 = vld [vmem:[#allocation6 + $0x220] sm:$0xff]
    %v443 = vld [vmem:[#allocation6 + $0x228] sm:$0xff]
    %v444 = vld [vmem:[#allocation6 + $0x230] sm:$0xff]
    %v445 = vld [vmem:[#allocation6 + $0x238] sm:$0xff]
    %v446 = vld [vmem:[#allocation6 + $0x240] sm:$0xff]
    %v447 = vld [vmem:[#allocation6 + $0x248] sm:$0xff]
    %v448 = vld [vmem:[#allocation6 + $0x250] sm:$0xff]
    %v449 = vld [vmem:[#allocation6 + $0x258] sm:$0xff]
    %v450 = vld [vmem:[#allocation6 + $0x260] sm:$0xff]
    %v451 = vld [vmem:[#allocation6 + $0x268] sm:$0xff]
    %v452 = vld [vmem:[#allocation6 + $0x270] sm:$0xff]
    %v453 = vld [vmem:[#allocation6 + $0x278] sm:$0xff]
    %v454 = vld [vmem:[#allocation6 + $0x280] sm:$0xff]
    %v455 = vld [vmem:[#allocation6 + $0x288] sm:$0xff]
    %v456 = vld [vmem:[#allocation6 + $0x290] sm:$0xff]
    %v457 = vld [vmem:[#allocation6 + $0x298] sm:$0xff]
    %v458 = vld [vmem:[#allocation6 + $0x2a0] sm:$0xff]
    %v459 = vld [vmem:[#allocation6 + $0x2a8] sm:$0xff]
    %v460 = vld [vmem:[#allocation6 + $0x2b0] sm:$0xff]
    %v461 = vld [vmem:[#allocation6 + $0x2b8] sm:$0xff]
    %v462 = vld [vmem:[#allocation6 + $0x2c0] sm:$0xff]
    %v463 = vld [vmem:[#allocation6 + $0x2c8] sm:$0xff]
    %v464 = vld [vmem:[#allocation6 + $0x2d0] sm:$0xff]
    %v465 = vld [vmem:[#allocation6 + $0x2d8] sm:$0xff]
    %v466 = vld [vmem:[#allocation6 + $0x2e0] sm:$0xff]
    %v467 = vld [vmem:[#allocation6 + $0x2e8] sm:$0xff]
    %v468 = vld [vmem:[#allocation6 + $0x2f0] sm:$0xff]
    %v469 = vld [vmem:[#allocation6 + $0x2f8] sm:$0xff]
    %v470 = vld [vmem:[#allocation6 + $0x300] sm:$0xff]
    %v471 = vld [vmem:[#allocation6 + $0x308] sm:$0xff]
    %v472 = vld [vmem:[#allocation6 + $0x310] sm:$0xff]
    %v473 = vld [vmem:[#allocation6 + $0x318] sm:$0xff]
    %v474 = vld [vmem:[#allocation6 + $0x320] sm:$0xff]
    %v475 = vld [vmem:[#allocation6 + $0x328] sm:$0xff]
    %v476 = vld [vmem:[#allocation6 + $0x330] sm:$0xff]
    %v477 = vld [vmem:[#allocation6 + $0x338] sm:$0xff]
    %v478 = vld [vmem:[#allocation6 + $0x340] sm:$0xff]
    %v479 = vld [vmem:[#allocation6 + $0x348] sm:$0xff]
    %v480 = vld [vmem:[#allocation6 + $0x350] sm:$0xff]
    %v481 = vld [vmem:[#allocation6 + $0x358] sm:$0xff]
    %v482 = vld [vmem:[#allocation6 + $0x360] sm:$0xff]
    %v483 = vld [vmem:[#allocation6 + $0x368] sm:$0xff]
    %v484 = vld [vmem:[#allocation6 + $0x370] sm:$0xff]
    %v485 = vld [vmem:[#allocation6 + $0x378] sm:$0xff]
    %v486 = vld [vmem:[#allocation6 + $0x380] sm:$0xff]
    %v487 = vld [vmem:[#allocation6 + $0x388] sm:$0xff]
    %v488 = vld [vmem:[#allocation6 + $0x390] sm:$0xff]
    %v489 = vld [vmem:[#allocation6 + $0x398] sm:$0xff]
    %v490 = vld [vmem:[#allocation6 + $0x3a0] sm:$0xff]
    %v491 = vld [vmem:[#allocation6 + $0x3a8] sm:$0xff]
    %v492 = vld [vmem:[#allocation6 + $0x3b0] sm:$0xff]
    %v493 = vld [vmem:[#allocation6 + $0x3b8] sm:$0xff]
    %v494 = vld [vmem:[#allocation6 + $0x3c0] sm:$0xff]
    %v495 = vld [vmem:[#allocation6 + $0x3c8] sm:$0xff]
    %v496 = vld [vmem:[#allocation6 + $0x3d0] sm:$0xff]
    %v497 = vld [vmem:[#allocation6 + $0x3d8] sm:$0xff]
    %v498 = vld [vmem:[#allocation6 + $0x3e0] sm:$0xff]
    %v499 = vld [vmem:[#allocation6 + $0x3e8] sm:$0xff]
    %v500 = vld [vmem:[#allocation6 + $0x3f0] sm:$0xff]
    %v501 = vld [vmem:[#allocation6 + $0x3f8] sm:$0xff]
    %v566 = vunpack.c.l.b16 %v310
    %v567 = vunpack.c.h.b16 %v310
    %v568 = vunpack.c.l.b16 %v311
    %v569 = vunpack.c.h.b16 %v311
    %v570 = vunpack.c.l.b16 %v312
    %v571 = vunpack.c.h.b16 %v312
    %v572 = vunpack.c.l.b16 %v313
    %v573 = vunpack.c.h.b16 %v313
    %v574 = vunpack.c.l.b16 %v314
    %v575 = vunpack.c.h.b16 %v314
    %v576 = vunpack.c.l.b16 %v315
    %v577 = vunpack.c.h.b16 %v315
    %v578 = vunpack.c.l.b16 %v316
    %v579 = vunpack.c.h.b16 %v316
    %v580 = vunpack.c.l.b16 %v317
    %v581 = vunpack.c.h.b16 %v317
    %v582 = vunpack.c.l.b16 %v318
    %v583 = vunpack.c.h.b16 %v318
    %v584 = vunpack.c.l.b16 %v319
    %v585 = vunpack.c.h.b16 %v319
    %v586 = vunpack.c.l.b16 %v320
    %v587 = vunpack.c.h.b16 %v320
    %v588 = vunpack.c.l.b16 %v321
    %v589 = vunpack.c.h.b16 %v321
    %v590 = vunpack.c.l.b16 %v322
    %v591 = vunpack.c.h.b16 %v322
    %v592 = vunpack.c.l.b16 %v323
    %v593 = vunpack.c.h.b16 %v323
    %v594 = vunpack.c.l.b16 %v324
    %v595 = vunpack.c.h.b16 %v324
    %v596 = vunpack.c.l.b16 %v325
    %v597 = vunpack.c.h.b16 %v325
    %v598 = vunpack.c.l.b16 %v326
    %v599 = vunpack.c.h.b16 %v326
    %v600 = vunpack.c.l.b16 %v327
    %v601 = vunpack.c.h.b16 %v327
    %v602 = vunpack.c.l.b16 %v328
    %v603 = vunpack.c.h.b16 %v328
    %v604 = vunpack.c.l.b16 %v329
    %v605 = vunpack.c.h.b16 %v329
    %v606 = vunpack.c.l.b16 %v330
    %v607 = vunpack.c.h.b16 %v330
    %v608 = vunpack.c.l.b16 %v331
    %v609 = vunpack.c.h.b16 %v331
    %v610 = vunpack.c.l.b16 %v332
    %v611 = vunpack.c.h.b16 %v332
    %v612 = vunpack.c.l.b16 %v333
    %v613 = vunpack.c.h.b16 %v333
    %v614 = vunpack.c.l.b16 %v334
    %v615 = vunpack.c.h.b16 %v334
    %v616 = vunpack.c.l.b16 %v335
    %v617 = vunpack.c.h.b16 %v335
    %v618 = vunpack.c.l.b16 %v336
    %v619 = vunpack.c.h.b16 %v336
    %v620 = vunpack.c.l.b16 %v337
    %v621 = vunpack.c.h.b16 %v337
    %v622 = vunpack.c.l.b16 %v338
    %v623 = vunpack.c.h.b16 %v338
    %v624 = vunpack.c.l.b16 %v339
    %v625 = vunpack.c.h.b16 %v339
    %v626 = vunpack.c.l.b16 %v340
    %v627 = vunpack.c.h.b16 %v340
    %v628 = vunpack.c.l.b16 %v341
    %v629 = vunpack.c.h.b16 %v341
    %v630 = vunpack.c.l.b16 %v342
    %v631 = vunpack.c.h.b16 %v342
    %v632 = vunpack.c.l.b16 %v343
    %v633 = vunpack.c.h.b16 %v343
    %v634 = vunpack.c.l.b16 %v344
    %v635 = vunpack.c.h.b16 %v344
    %v636 = vunpack.c.l.b16 %v345
    %v637 = vunpack.c.h.b16 %v345
    %v638 = vunpack.c.l.b16 %v346
    %v639 = vunpack.c.h.b16 %v346
    %v640 = vunpack.c.l.b16 %v347
    %v641 = vunpack.c.h.b16 %v347
    %v642 = vunpack.c.l.b16 %v348
    %v643 = vunpack.c.h.b16 %v348
    %v644 = vunpack.c.l.b16 %v349
    %v645 = vunpack.c.h.b16 %v349
    %v646 = vunpack.c.l.b16 %v350
    %v647 = vunpack.c.h.b16 %v350
    %v648 = vunpack.c.l.b16 %v351
    %v649 = vunpack.c.h.b16 %v351
    %v650 = vunpack.c.l.b16 %v352
    %v651 = vunpack.c.h.b16 %v352
    %v652 = vunpack.c.l.b16 %v353
    %v653 = vunpack.c.h.b16 %v353
    %v654 = vunpack.c.l.b16 %v354
    %v655 = vunpack.c.h.b16 %v354
    %v656 = vunpack.c.l.b16 %v355
    %v657 = vunpack.c.h.b16 %v355
    %v658 = vunpack.c.l.b16 %v356
    %v659 = vunpack.c.h.b16 %v356
    %v660 = vunpack.c.l.b16 %v357
    %v661 = vunpack.c.h.b16 %v357
    %v662 = vunpack.c.l.b16 %v358
    %v663 = vunpack.c.h.b16 %v358
    %v664 = vunpack.c.l.b16 %v359
    %v665 = vunpack.c.h.b16 %v359
    %v666 = vunpack.c.l.b16 %v360
    %v667 = vunpack.c.h.b16 %v360
    %v668 = vunpack.c.l.b16 %v361
    %v669 = vunpack.c.h.b16 %v361
    %v670 = vunpack.c.l.b16 %v362
    %v671 = vunpack.c.h.b16 %v362
    %v672 = vunpack.c.l.b16 %v363
    %v673 = vunpack.c.h.b16 %v363
    %v674 = vunpack.c.l.b16 %v364
    %v675 = vunpack.c.h.b16 %v364
    %v676 = vunpack.c.l.b16 %v365
    %v677 = vunpack.c.h.b16 %v365
    %v678 = vunpack.c.l.b16 %v366
    %v679 = vunpack.c.h.b16 %v366
    %v680 = vunpack.c.l.b16 %v367
    %v681 = vunpack.c.h.b16 %v367
    %v682 = vunpack.c.l.b16 %v368
    %v683 = vunpack.c.h.b16 %v368
    %v684 = vunpack.c.l.b16 %v369
    %v685 = vunpack.c.h.b16 %v369
    %v686 = vunpack.c.l.b16 %v370
    %v687 = vunpack.c.h.b16 %v370
    %v688 = vunpack.c.l.b16 %v371
    %v689 = vunpack.c.h.b16 %v371
    %v690 = vunpack.c.l.b16 %v372
    %v691 = vunpack.c.h.b16 %v372
    %v692 = vunpack.c.l.b16 %v373
    %v693 = vunpack.c.h.b16 %v373
    %v694 = vpack.c.b16 %v570, %v566
    %v695 = vpack.c.b16 %v571, %v567
    %v696 = vpack.c.b16 %v572, %v568
    %v697 = vpack.c.b16 %v573, %v569
    %v698 = vpack.c.b16 %v578, %v574
    %v699 = vpack.c.b16 %v579, %v575
    %v700 = vpack.c.b16 %v580, %v576
    %v701 = vpack.c.b16 %v581, %v577
    %v702 = vpack.c.b16 %v586, %v582
    %v703 = vpack.c.b16 %v587, %v583
    %v704 = vpack.c.b16 %v588, %v584
    %v705 = vpack.c.b16 %v589, %v585
    %v706 = vpack.c.b16 %v594, %v590
    %v707 = vpack.c.b16 %v595, %v591
    %v708 = vpack.c.b16 %v596, %v592
    %v709 = vpack.c.b16 %v597, %v593
    %v710 = vpack.c.b16 %v602, %v598
    %v711 = vpack.c.b16 %v603, %v599
    %v712 = vpack.c.b16 %v604, %v600
    %v713 = vpack.c.b16 %v605, %v601
    %v714 = vpack.c.b16 %v610, %v606
    %v715 = vpack.c.b16 %v611, %v607
    %v716 = vpack.c.b16 %v612, %v608
    %v717 = vpack.c.b16 %v613, %v609
    %v718 = vpack.c.b16 %v618, %v614
    %v719 = vpack.c.b16 %v619, %v615
    %v720 = vpack.c.b16 %v620, %v616
    %v721 = vpack.c.b16 %v621, %v617
    %v722 = vpack.c.b16 %v626, %v622
    %v723 = vpack.c.b16 %v627, %v623
    %v724 = vpack.c.b16 %v628, %v624
    %v725 = vpack.c.b16 %v629, %v625
    %v726 = vpack.c.b16 %v634, %v630
    %v727 = vpack.c.b16 %v635, %v631
    %v728 = vpack.c.b16 %v636, %v632
    %v729 = vpack.c.b16 %v637, %v633
    %v730 = vpack.c.b16 %v642, %v638
    %v731 = vpack.c.b16 %v643, %v639
    %v732 = vpack.c.b16 %v644, %v640
    %v733 = vpack.c.b16 %v645, %v641
    %v734 = vpack.c.b16 %v650, %v646
    %v735 = vpack.c.b16 %v651, %v647
    %v736 = vpack.c.b16 %v652, %v648
    %v737 = vpack.c.b16 %v653, %v649
    %v738 = vpack.c.b16 %v658, %v654
    %v739 = vpack.c.b16 %v659, %v655
    %v740 = vpack.c.b16 %v660, %v656
    %v741 = vpack.c.b16 %v661, %v657
    %v742 = vpack.c.b16 %v666, %v662
    %v743 = vpack.c.b16 %v667, %v663
    %v744 = vpack.c.b16 %v668, %v664
    %v745 = vpack.c.b16 %v669, %v665
    %v746 = vpack.c.b16 %v674, %v670
    %v747 = vpack.c.b16 %v675, %v671
    %v748 = vpack.c.b16 %v676, %v672
    %v749 = vpack.c.b16 %v677, %v673
    %v750 = vpack.c.b16 %v682, %v678
    %v751 = vpack.c.b16 %v683, %v679
    %v752 = vpack.c.b16 %v684, %v680
    %v753 = vpack.c.b16 %v685, %v681
    %v754 = vpack.c.b16 %v690, %v686
    %v755 = vpack.c.b16 %v691, %v687
    %v756 = vpack.c.b16 %v692, %v688
    %v757 = vpack.c.b16 %v693, %v689
    %v950 = vunpack.c.l.b16 %v374
    %v951 = vunpack.c.h.b16 %v374
    %v952 = vunpack.c.l.b16 %v375
    %v953 = vunpack.c.h.b16 %v375
    %v954 = vunpack.c.l.b16 %v376
    %v955 = vunpack.c.h.b16 %v376
    %v956 = vunpack.c.l.b16 %v377
    %v957 = vunpack.c.h.b16 %v377
    %v958 = vunpack.c.l.b16 %v378
    %v959 = vunpack.c.h.b16 %v378
    %v960 = vunpack.c.l.b16 %v379
    %v961 = vunpack.c.h.b16 %v379
    %v962 = vunpack.c.l.b16 %v380
    %v963 = vunpack.c.h.b16 %v380
    %v964 = vunpack.c.l.b16 %v381
    %v965 = vunpack.c.h.b16 %v381
    %v966 = vunpack.c.l.b16 %v382
    %v967 = vunpack.c.h.b16 %v382
    %v968 = vunpack.c.l.b16 %v383
    %v969 = vunpack.c.h.b16 %v383
    %v970 = vunpack.c.l.b16 %v384
    %v971 = vunpack.c.h.b16 %v384
    %v972 = vunpack.c.l.b16 %v385
    %v973 = vunpack.c.h.b16 %v385
    %v974 = vunpack.c.l.b16 %v386
    %v975 = vunpack.c.h.b16 %v386
    %v976 = vunpack.c.l.b16 %v387
    %v977 = vunpack.c.h.b16 %v387
    %v978 = vunpack.c.l.b16 %v388
    %v979 = vunpack.c.h.b16 %v388
    %v980 = vunpack.c.l.b16 %v389
    %v981 = vunpack.c.h.b16 %v389
    %v982 = vunpack.c.l.b16 %v390
    %v983 = vunpack.c.h.b16 %v390
    %v984 = vunpack.c.l.b16 %v391
    %v985 = vunpack.c.h.b16 %v391
    %v986 = vunpack.c.l.b16 %v392
    %v987 = vunpack.c.h.b16 %v392
    %v988 = vunpack.c.l.b16 %v393
    %v989 = vunpack.c.h.b16 %v393
    %v990 = vunpack.c.l.b16 %v394
    %v991 = vunpack.c.h.b16 %v394
    %v992 = vunpack.c.l.b16 %v395
    %v993 = vunpack.c.h.b16 %v395
    %v994 = vunpack.c.l.b16 %v396
    %v995 = vunpack.c.h.b16 %v396
    %v996 = vunpack.c.l.b16 %v397
    %v997 = vunpack.c.h.b16 %v397
    %v998 = vunpack.c.l.b16 %v398
    %v999 = vunpack.c.h.b16 %v398
    %v1000 = vunpack.c.l.b16 %v399
    %v1001 = vunpack.c.h.b16 %v399
    %v1002 = vunpack.c.l.b16 %v400
    %v1003 = vunpack.c.h.b16 %v400
    %v1004 = vunpack.c.l.b16 %v401
    %v1005 = vunpack.c.h.b16 %v401
    %v1006 = vunpack.c.l.b16 %v402
    %v1007 = vunpack.c.h.b16 %v402
    %v1008 = vunpack.c.l.b16 %v403
    %v1009 = vunpack.c.h.b16 %v403
    %v1010 = vunpack.c.l.b16 %v404
    %v1011 = vunpack.c.h.b16 %v404
    %v1012 = vunpack.c.l.b16 %v405
    %v1013 = vunpack.c.h.b16 %v405
    %v1014 = vunpack.c.l.b16 %v406
    %v1015 = vunpack.c.h.b16 %v406
    %v1016 = vunpack.c.l.b16 %v407
    %v1017 = vunpack.c.h.b16 %v407
    %v1018 = vunpack.c.l.b16 %v408
    %v1019 = vunpack.c.h.b16 %v408
    %v1020 = vunpack.c.l.b16 %v409
    %v1021 = vunpack.c.h.b16 %v409
    %v1022 = vunpack.c.l.b16 %v410
    %v1023 = vunpack.c.h.b16 %v410
    %v1024 = vunpack.c.l.b16 %v411
    %v1025 = vunpack.c.h.b16 %v411
    %v1026 = vunpack.c.l.b16 %v412
    %v1027 = vunpack.c.h.b16 %v412
    %v1028 = vunpack.c.l.b16 %v413
    %v1029 = vunpack.c.h.b16 %v413
    %v1030 = vunpack.c.l.b16 %v414
    %v1031 = vunpack.c.h.b16 %v414
    %v1032 = vunpack.c.l.b16 %v415
    %v1033 = vunpack.c.h.b16 %v415
    %v1034 = vunpack.c.l.b16 %v416
    %v1035 = vunpack.c.h.b16 %v416
    %v1036 = vunpack.c.l.b16 %v417
    %v1037 = vunpack.c.h.b16 %v417
    %v1038 = vunpack.c.l.b16 %v418
    %v1039 = vunpack.c.h.b16 %v418
    %v1040 = vunpack.c.l.b16 %v419
    %v1041 = vunpack.c.h.b16 %v419
    %v1042 = vunpack.c.l.b16 %v420
    %v1043 = vunpack.c.h.b16 %v420
    %v1044 = vunpack.c.l.b16 %v421
    %v1045 = vunpack.c.h.b16 %v421
    %v1046 = vunpack.c.l.b16 %v422
    %v1047 = vunpack.c.h.b16 %v422
    %v1048 = vunpack.c.l.b16 %v423
    %v1049 = vunpack.c.h.b16 %v423
    %v1050 = vunpack.c.l.b16 %v424
    %v1051 = vunpack.c.h.b16 %v424
    %v1052 = vunpack.c.l.b16 %v425
    %v1053 = vunpack.c.h.b16 %v425
    %v1054 = vunpack.c.l.b16 %v426
    %v1055 = vunpack.c.h.b16 %v426
    %v1056 = vunpack.c.l.b16 %v427
    %v1057 = vunpack.c.h.b16 %v427
    %v1058 = vunpack.c.l.b16 %v428
    %v1059 = vunpack.c.h.b16 %v428
    %v1060 = vunpack.c.l.b16 %v429
    %v1061 = vunpack.c.h.b16 %v429
    %v1062 = vunpack.c.l.b16 %v430
    %v1063 = vunpack.c.h.b16 %v430
    %v1064 = vunpack.c.l.b16 %v431
    %v1065 = vunpack.c.h.b16 %v431
    %v1066 = vunpack.c.l.b16 %v432
    %v1067 = vunpack.c.h.b16 %v432
    %v1068 = vunpack.c.l.b16 %v433
    %v1069 = vunpack.c.h.b16 %v433
    %v1070 = vunpack.c.l.b16 %v434
    %v1071 = vunpack.c.h.b16 %v434
    %v1072 = vunpack.c.l.b16 %v435
    %v1073 = vunpack.c.h.b16 %v435
    %v1074 = vunpack.c.l.b16 %v436
    %v1075 = vunpack.c.h.b16 %v436
    %v1076 = vunpack.c.l.b16 %v437
    %v1077 = vunpack.c.h.b16 %v437
    %v1078 = vunpack.c.l.b16 %v438
    %v1079 = vunpack.c.h.b16 %v438
    %v1080 = vunpack.c.l.b16 %v439
    %v1081 = vunpack.c.h.b16 %v439
    %v1082 = vunpack.c.l.b16 %v440
    %v1083 = vunpack.c.h.b16 %v440
    %v1084 = vunpack.c.l.b16 %v441
    %v1085 = vunpack.c.h.b16 %v441
    %v1086 = vunpack.c.l.b16 %v442
    %v1087 = vunpack.c.h.b16 %v442
    %v1088 = vunpack.c.l.b16 %v443
    %v1089 = vunpack.c.h.b16 %v443
    %v1090 = vunpack.c.l.b16 %v444
    %v1091 = vunpack.c.h.b16 %v444
    %v1092 = vunpack.c.l.b16 %v445
    %v1093 = vunpack.c.h.b16 %v445
    %v1094 = vunpack.c.l.b16 %v446
    %v1095 = vunpack.c.h.b16 %v446
    %v1096 = vunpack.c.l.b16 %v447
    %v1097 = vunpack.c.h.b16 %v447
    %v1098 = vunpack.c.l.b16 %v448
    %v1099 = vunpack.c.h.b16 %v448
    %v1100 = vunpack.c.l.b16 %v449
    %v1101 = vunpack.c.h.b16 %v449
    %v1102 = vunpack.c.l.b16 %v450
    %v1103 = vunpack.c.h.b16 %v450
    %v1104 = vunpack.c.l.b16 %v451
    %v1105 = vunpack.c.h.b16 %v451
    %v1106 = vunpack.c.l.b16 %v452
    %v1107 = vunpack.c.h.b16 %v452
    %v1108 = vunpack.c.l.b16 %v453
    %v1109 = vunpack.c.h.b16 %v453
    %v1110 = vunpack.c.l.b16 %v454
    %v1111 = vunpack.c.h.b16 %v454
    %v1112 = vunpack.c.l.b16 %v455
    %v1113 = vunpack.c.h.b16 %v455
    %v1114 = vunpack.c.l.b16 %v456
    %v1115 = vunpack.c.h.b16 %v456
    %v1116 = vunpack.c.l.b16 %v457
    %v1117 = vunpack.c.h.b16 %v457
    %v1118 = vunpack.c.l.b16 %v458
    %v1119 = vunpack.c.h.b16 %v458
    %v1120 = vunpack.c.l.b16 %v459
    %v1121 = vunpack.c.h.b16 %v459
    %v1122 = vunpack.c.l.b16 %v460
    %v1123 = vunpack.c.h.b16 %v460
    %v1124 = vunpack.c.l.b16 %v461
    %v1125 = vunpack.c.h.b16 %v461
    %v1126 = vunpack.c.l.b16 %v462
    %v1127 = vunpack.c.h.b16 %v462
    %v1128 = vunpack.c.l.b16 %v463
    %v1129 = vunpack.c.h.b16 %v463
    %v1130 = vunpack.c.l.b16 %v464
    %v1131 = vunpack.c.h.b16 %v464
    %v1132 = vunpack.c.l.b16 %v465
    %v1133 = vunpack.c.h.b16 %v465
    %v1134 = vunpack.c.l.b16 %v466
    %v1135 = vunpack.c.h.b16 %v466
    %v1136 = vunpack.c.l.b16 %v467
    %v1137 = vunpack.c.h.b16 %v467
    %v1138 = vunpack.c.l.b16 %v468
    %v1139 = vunpack.c.h.b16 %v468
    %v1140 = vunpack.c.l.b16 %v469
    %v1141 = vunpack.c.h.b16 %v469
    %v1142 = vunpack.c.l.b16 %v470
    %v1143 = vunpack.c.h.b16 %v470
    %v1144 = vunpack.c.l.b16 %v471
    %v1145 = vunpack.c.h.b16 %v471
    %v1146 = vunpack.c.l.b16 %v472
    %v1147 = vunpack.c.h.b16 %v472
    %v1148 = vunpack.c.l.b16 %v473
    %v1149 = vunpack.c.h.b16 %v473
    %v1150 = vunpack.c.l.b16 %v474
    %v1151 = vunpack.c.h.b16 %v474
    %v1152 = vunpack.c.l.b16 %v475
    %v1153 = vunpack.c.h.b16 %v475
    %v1154 = vunpack.c.l.b16 %v476
    %v1155 = vunpack.c.h.b16 %v476
    %v1156 = vunpack.c.l.b16 %v477
    %v1157 = vunpack.c.h.b16 %v477
    %v1158 = vunpack.c.l.b16 %v478
    %v1159 = vunpack.c.h.b16 %v478
    %v1160 = vunpack.c.l.b16 %v479
    %v1161 = vunpack.c.h.b16 %v479
    %v1162 = vunpack.c.l.b16 %v480
    %v1163 = vunpack.c.h.b16 %v480
    %v1164 = vunpack.c.l.b16 %v481
    %v1165 = vunpack.c.h.b16 %v481
    %v1166 = vunpack.c.l.b16 %v482
    %v1167 = vunpack.c.h.b16 %v482
    %v1168 = vunpack.c.l.b16 %v483
    %v1169 = vunpack.c.h.b16 %v483
    %v1170 = vunpack.c.l.b16 %v484
    %v1171 = vunpack.c.h.b16 %v484
    %v1172 = vunpack.c.l.b16 %v485
    %v1173 = vunpack.c.h.b16 %v485
    %v1174 = vunpack.c.l.b16 %v486
    %v1175 = vunpack.c.h.b16 %v486
    %v1176 = vunpack.c.l.b16 %v487
    %v1177 = vunpack.c.h.b16 %v487
    %v1178 = vunpack.c.l.b16 %v488
    %v1179 = vunpack.c.h.b16 %v488
    %v1180 = vunpack.c.l.b16 %v489
    %v1181 = vunpack.c.h.b16 %v489
    %v1182 = vunpack.c.l.b16 %v490
    %v1183 = vunpack.c.h.b16 %v490
    %v1184 = vunpack.c.l.b16 %v491
    %v1185 = vunpack.c.h.b16 %v491
    %v1186 = vunpack.c.l.b16 %v492
    %v1187 = vunpack.c.h.b16 %v492
    %v1188 = vunpack.c.l.b16 %v493
    %v1189 = vunpack.c.h.b16 %v493
    %v1190 = vunpack.c.l.b16 %v494
    %v1191 = vunpack.c.h.b16 %v494
    %v1192 = vunpack.c.l.b16 %v495
    %v1193 = vunpack.c.h.b16 %v495
    %v1194 = vunpack.c.l.b16 %v496
    %v1195 = vunpack.c.h.b16 %v496
    %v1196 = vunpack.c.l.b16 %v497
    %v1197 = vunpack.c.h.b16 %v497
    %v1198 = vunpack.c.l.b16 %v498
    %v1199 = vunpack.c.h.b16 %v498
    %v1200 = vunpack.c.l.b16 %v499
    %v1201 = vunpack.c.h.b16 %v499
    %v1202 = vunpack.c.l.b16 %v500
    %v1203 = vunpack.c.h.b16 %v500
    %v1204 = vunpack.c.l.b16 %v501
    %v1205 = vunpack.c.h.b16 %v501
    %v1206 = vpack.c.b16 %v954, %v950
    %v1207 = vpack.c.b16 %v955, %v951
    %v1208 = vpack.c.b16 %v956, %v952
    %v1209 = vpack.c.b16 %v957, %v953
    %v1210 = vpack.c.b16 %v962, %v958
    %v1211 = vpack.c.b16 %v963, %v959
    %v1212 = vpack.c.b16 %v964, %v960
    %v1213 = vpack.c.b16 %v965, %v961
    %v1214 = vpack.c.b16 %v970, %v966
    %v1215 = vpack.c.b16 %v971, %v967
    %v1216 = vpack.c.b16 %v972, %v968
    %v1217 = vpack.c.b16 %v973, %v969
    %v1218 = vpack.c.b16 %v978, %v974
    %v1219 = vpack.c.b16 %v979, %v975
    %v1220 = vpack.c.b16 %v980, %v976
    %v1221 = vpack.c.b16 %v981, %v977
    %v1222 = vpack.c.b16 %v986, %v982
    %v1223 = vpack.c.b16 %v987, %v983
    %v1224 = vpack.c.b16 %v988, %v984
    %v1225 = vpack.c.b16 %v989, %v985
    %v1226 = vpack.c.b16 %v994, %v990
    %v1227 = vpack.c.b16 %v995, %v991
    %v1228 = vpack.c.b16 %v996, %v992
    %v1229 = vpack.c.b16 %v997, %v993
    %v1230 = vpack.c.b16 %v1002, %v998
    %v1231 = vpack.c.b16 %v1003, %v999
    %v1232 = vpack.c.b16 %v1004, %v1000
    %v1233 = vpack.c.b16 %v1005, %v1001
    %v1234 = vpack.c.b16 %v1010, %v1006
    %v1235 = vpack.c.b16 %v1011, %v1007
    %v1236 = vpack.c.b16 %v1012, %v1008
    %v1237 = vpack.c.b16 %v1013, %v1009
    %v1238 = vpack.c.b16 %v1018, %v1014
    %v1239 = vpack.c.b16 %v1019, %v1015
    %v1240 = vpack.c.b16 %v1020, %v1016
    %v1241 = vpack.c.b16 %v1021, %v1017
    %v1242 = vpack.c.b16 %v1026, %v1022
    %v1243 = vpack.c.b16 %v1027, %v1023
    %v1244 = vpack.c.b16 %v1028, %v1024
    %v1245 = vpack.c.b16 %v1029, %v1025
    %v1246 = vpack.c.b16 %v1034, %v1030
    %v1247 = vpack.c.b16 %v1035, %v1031
    %v1248 = vpack.c.b16 %v1036, %v1032
    %v1249 = vpack.c.b16 %v1037, %v1033
    %v1250 = vpack.c.b16 %v1042, %v1038
    %v1251 = vpack.c.b16 %v1043, %v1039
    %v1252 = vpack.c.b16 %v1044, %v1040
    %v1253 = vpack.c.b16 %v1045, %v1041
    %v1254 = vpack.c.b16 %v1050, %v1046
    %v1255 = vpack.c.b16 %v1051, %v1047
    %v1256 = vpack.c.b16 %v1052, %v1048
    %v1257 = vpack.c.b16 %v1053, %v1049
    %v1258 = vpack.c.b16 %v1058, %v1054
    %v1259 = vpack.c.b16 %v1059, %v1055
    %v1260 = vpack.c.b16 %v1060, %v1056
    %v1261 = vpack.c.b16 %v1061, %v1057
    %v1262 = vpack.c.b16 %v1066, %v1062
    %v1263 = vpack.c.b16 %v1067, %v1063
    %v1264 = vpack.c.b16 %v1068, %v1064
    %v1265 = vpack.c.b16 %v1069, %v1065
    %v1266 = vpack.c.b16 %v1074, %v1070
    %v1267 = vpack.c.b16 %v1075, %v1071
    %v1268 = vpack.c.b16 %v1076, %v1072
    %v1269 = vpack.c.b16 %v1077, %v1073
    %v1270 = vpack.c.b16 %v1082, %v1078
    %v1271 = vpack.c.b16 %v1083, %v1079
    %v1272 = vpack.c.b16 %v1084, %v1080
    %v1273 = vpack.c.b16 %v1085, %v1081
    %v1274 = vpack.c.b16 %v1090, %v1086
    %v1275 = vpack.c.b16 %v1091, %v1087
    %v1276 = vpack.c.b16 %v1092, %v1088
    %v1277 = vpack.c.b16 %v1093, %v1089
    %v1278 = vpack.c.b16 %v1098, %v1094
    %v1279 = vpack.c.b16 %v1099, %v1095
    %v1280 = vpack.c.b16 %v1100, %v1096
    %v1281 = vpack.c.b16 %v1101, %v1097
    %v1282 = vpack.c.b16 %v1106, %v1102
    %v1283 = vpack.c.b16 %v1107, %v1103
    %v1284 = vpack.c.b16 %v1108, %v1104
    %v1285 = vpack.c.b16 %v1109, %v1105
    %v1286 = vpack.c.b16 %v1114, %v1110
    %v1287 = vpack.c.b16 %v1115, %v1111
    %v1288 = vpack.c.b16 %v1116, %v1112
    %v1289 = vpack.c.b16 %v1117, %v1113
    %v1290 = vpack.c.b16 %v1122, %v1118
    %v1291 = vpack.c.b16 %v1123, %v1119
    %v1292 = vpack.c.b16 %v1124, %v1120
    %v1293 = vpack.c.b16 %v1125, %v1121
    %v1294 = vpack.c.b16 %v1130, %v1126
    %v1295 = vpack.c.b16 %v1131, %v1127
    %v1296 = vpack.c.b16 %v1132, %v1128
    %v1297 = vpack.c.b16 %v1133, %v1129
    %v1298 = vpack.c.b16 %v1138, %v1134
    %v1299 = vpack.c.b16 %v1139, %v1135
    %v1300 = vpack.c.b16 %v1140, %v1136
    %v1301 = vpack.c.b16 %v1141, %v1137
    %v1302 = vpack.c.b16 %v1146, %v1142
    %v1303 = vpack.c.b16 %v1147, %v1143
    %v1304 = vpack.c.b16 %v1148, %v1144
    %v1305 = vpack.c.b16 %v1149, %v1145
    %v1306 = vpack.c.b16 %v1154, %v1150
    %v1307 = vpack.c.b16 %v1155, %v1151
    %v1308 = vpack.c.b16 %v1156, %v1152
    %v1309 = vpack.c.b16 %v1157, %v1153
    %v1310 = vpack.c.b16 %v1162, %v1158
    %v1311 = vpack.c.b16 %v1163, %v1159
    %v1312 = vpack.c.b16 %v1164, %v1160
    %v1313 = vpack.c.b16 %v1165, %v1161
    %v1314 = vpack.c.b16 %v1170, %v1166
    %v1315 = vpack.c.b16 %v1171, %v1167
    %v1316 = vpack.c.b16 %v1172, %v1168
    %v1317 = vpack.c.b16 %v1173, %v1169
    %v1318 = vpack.c.b16 %v1178, %v1174
    %v1319 = vpack.c.b16 %v1179, %v1175
    %v1320 = vpack.c.b16 %v1180, %v1176
    %v1321 = vpack.c.b16 %v1181, %v1177
    %v1322 = vpack.c.b16 %v1186, %v1182
    %v1323 = vpack.c.b16 %v1187, %v1183
    %v1324 = vpack.c.b16 %v1188, %v1184
    %v1325 = vpack.c.b16 %v1189, %v1185
    %v1326 = vpack.c.b16 %v1194, %v1190
    %v1327 = vpack.c.b16 %v1195, %v1191
    %v1328 = vpack.c.b16 %v1196, %v1192
    %v1329 = vpack.c.b16 %v1197, %v1193
    %v1330 = vpack.c.b16 %v1202, %v1198
    %v1331 = vpack.c.b16 %v1203, %v1199
    %v1332 = vpack.c.b16 %v1204, %v1200
    %v1333 = vpack.c.b16 %v1205, %v1201
    %1462 = vmatprep.subr.bf16.mxu0 %v1207
    %1463 = vmatpush1.bf16.xpose.msra.mxu0 %v1206
    %1464 = vmatprep.subr.bf16.mxu0 %v1211
    %1465 = vmatpush1.bf16.xpose.msra.mxu0 %v1210
    %1466 = vmatprep.subr.bf16.mxu0 %v1215
    %1467 = vmatpush1.bf16.xpose.msra.mxu0 %v1214
    %1468 = vmatprep.subr.bf16.mxu0 %v1219
    %1469 = vmatpush1.bf16.xpose.msra.mxu0 %v1218
    %1470 = vmatprep.subr.bf16.mxu0 %v1223
    %1471 = vmatpush1.bf16.xpose.msra.mxu0 %v1222
    %1472 = vmatprep.subr.bf16.mxu0 %v1227
    %1473 = vmatpush1.bf16.xpose.msra.mxu0 %v1226
    %1474 = vmatprep.subr.bf16.mxu0 %v1231
    %1475 = vmatpush1.bf16.xpose.msra.mxu0 %v1230
    %1476 = vmatprep.subr.bf16.mxu0 %v1235
    %1477 = vmatpush1.bf16.xpose.msra.mxu0 %v1234
    %1478 = vmatprep.subr.bf16.mxu0 %v1239
    %1479 = vmatpush1.bf16.xpose.msra.mxu0 %v1238
    %1480 = vmatprep.subr.bf16.mxu0 %v1243
    %1481 = vmatpush1.bf16.xpose.msra.mxu0 %v1242
    %1482 = vmatprep.subr.bf16.mxu0 %v1247
    %1483 = vmatpush1.bf16.xpose.msra.mxu0 %v1246
    %1484 = vmatprep.subr.bf16.mxu0 %v1251
    %1485 = vmatpush1.bf16.xpose.msra.mxu0 %v1250
    %1486 = vmatprep.subr.bf16.mxu0 %v1255
    %1487 = vmatpush1.bf16.xpose.msra.mxu0 %v1254
    %1488 = vmatprep.subr.bf16.mxu0 %v1259
    %1489 = vmatpush1.bf16.xpose.msra.mxu0 %v1258
    %1490 = vmatprep.subr.bf16.mxu0 %v1263
    %1491 = vmatpush1.bf16.xpose.msra.mxu0 %v1262
    %1492 = vmatprep.subr.bf16.mxu0 %v1267
    %1493 = vmatpush1.bf16.xpose.msra.mxu0 %v1266
    %1494 = vmatprep.mubr.bf16.mxu0 %v695
    %1495 = vmatmul.mubr.bf16.gmra.mrb[0].mxu0 %v694
    %v1496 = vpop.f32.mrb[0].mxu0
    %v1497 = vadd.f32 0.0, %v1496
    %v1498 = vpop.f32.mrb[0].mxu0
    %v1499 = vadd.f32 0.0, %v1498
    %v1500 = vpop.f32.mrb[0].mxu0
    %v1501 = vadd.f32 0.0, %v1500
    %v1502 = vpop.f32.mrb[0].mxu0
    %v1503 = vadd.f32 0.0, %v1502
    %1504 = vmatprep.mubr.bf16.mxu0 %v699
    %1505 = vmatmul.mubr.bf16.gmra.mrb[0].mxu0 %v698
    %v1506 = vpop.f32.mrb[0].mxu0
    %v1507 = vadd.f32 0.0, %v1506
    %v1508 = vpop.f32.mrb[0].mxu0
    %v1509 = vadd.f32 0.0, %v1508
    %v1510 = vpop.f32.mrb[0].mxu0
    %v1511 = vadd.f32 0.0, %v1510
    %v1512 = vpop.f32.mrb[0].mxu0
    %v1513 = vadd.f32 0.0, %v1512
    %1514 = vmatprep.mubr.bf16.mxu0 %v703
    %1515 = vmatmul.mubr.bf16.gmra.mrb[0].mxu0 %v702
    %v1516 = vpop.f32.mrb[0].mxu0
    %v1517 = vadd.f32 0.0, %v1516
    %v1518 = vpop.f32.mrb[0].mxu0
    %v1519 = vadd.f32 0.0, %v1518
    %v1520 = vpop.f32.mrb[0].mxu0
    %v1521 = vadd.f32 0.0, %v1520
    %v1522 = vpop.f32.mrb[0].mxu0
    %v1523 = vadd.f32 0.0, %v1522
    %1524 = vmatprep.mubr.bf16.mxu0 %v707
    %1525 = vmatmul.mubr.bf16.gmra.mrb[0].mxu0 %v706
    %v1526 = vpop.f32.mrb[0].mxu0
    %v1527 = vadd.f32 0.0, %v1526
    %v1528 = vpop.f32.mrb[0].mxu0
    %v1529 = vadd.f32 0.0, %v1528
    %v1530 = vpop.f32.mrb[0].mxu0
    %v1531 = vadd.f32 0.0, %v1530
    %v1532 = vpop.f32.mrb[0].mxu0
    %v1533 = vadd.f32 0.0, %v1532
    %1534 = vmatprep.mubr.bf16.mxu0 %v711
    %1535 = vmatmul.mubr.bf16.gmra.mrb[0].mxu0 %v710
    %v1536 = vpop.f32.mrb[0].mxu0
    %v1537 = vadd.f32 0.0, %v1536
    %v1538 = vpop.f32.mrb[0].mxu0
    %v1539 = vadd.f32 0.0, %v1538
    %v1540 = vpop.f32.mrb[0].mxu0
    %v1541 = vadd.f32 0.0, %v1540
    %v1542 = vpop.f32.mrb[0].mxu0
    %v1543 = vadd.f32 0.0, %v1542
    %1544 = vmatprep.mubr.bf16.mxu0 %v715
    %1545 = vmatmul.mubr.bf16.gmra.mrb[0].mxu0 %v714
    %v1546 = vpop.f32.mrb[0].mxu0
    %v1547 = vadd.f32 0.0, %v1546
    %v1548 = vpop.f32.mrb[0].mxu0
    %v1549 = vadd.f32 0.0, %v1548
    %v1550 = vpop.f32.mrb[0].mxu0
    %v1551 = vadd.f32 0.0, %v1550
    %v1552 = vpop.f32.mrb[0].mxu0
    %v1553 = vadd.f32 0.0, %v1552
    %1554 = vmatprep.mubr.bf16.mxu0 %v719
    %1555 = vmatmul.mubr.bf16.gmra.mrb[0].mxu0 %v718
    %v1556 = vpop.f32.mrb[0].mxu0
    %v1557 = vadd.f32 0.0, %v1556
    %v1558 = vpop.f32.mrb[0].mxu0
    %v1559 = vadd.f32 0.0, %v1558
    %v1560 = vpop.f32.mrb[0].mxu0
    %v1561 = vadd.f32 0.0, %v1560
    %v1562 = vpop.f32.mrb[0].mxu0
    %v1563 = vadd.f32 0.0, %v1562
    %1564 = vmatprep.mubr.bf16.mxu0 %v723
    %1565 = vmatmul.mubr.bf16.gmra.mrb[0].mxu0 %v722
    %v1566 = vpop.f32.mrb[0].mxu0
    %v1567 = vadd.f32 0.0, %v1566
    %v1568 = vpop.f32.mrb[0].mxu0
    %v1569 = vadd.f32 0.0, %v1568
    %v1570 = vpop.f32.mrb[0].mxu0
    %v1571 = vadd.f32 0.0, %v1570
    %v1572 = vpop.f32.mrb[0].mxu0
    %v1573 = vadd.f32 0.0, %v1572
    %1574 = vmatprep.mubr.bf16.mxu0 %v727
    %1575 = vmatmul.mubr.bf16.gmra.mrb[0].mxu0 %v726
    %v1576 = vpop.f32.mrb[0].mxu0
    %v1577 = vadd.f32 0.0, %v1576
    %v1578 = vpop.f32.mrb[0].mxu0
    %v1579 = vadd.f32 0.0, %v1578
    %v1580 = vpop.f32.mrb[0].mxu0
    %v1581 = vadd.f32 0.0, %v1580
    %v1582 = vpop.f32.mrb[0].mxu0
    %v1583 = vadd.f32 0.0, %v1582
    %1584 = vmatprep.mubr.bf16.mxu0 %v731
    %1585 = vmatmul.mubr.bf16.gmra.mrb[0].mxu0 %v730
    %v1586 = vpop.f32.mrb[0].mxu0
    %v1587 = vadd.f32 0.0, %v1586
    %v1588 = vpop.f32.mrb[0].mxu0
    %v1589 = vadd.f32 0.0, %v1588
    %v1590 = vpop.f32.mrb[0].mxu0
    %v1591 = vadd.f32 0.0, %v1590
    %v1592 = vpop.f32.mrb[0].mxu0
    %v1593 = vadd.f32 0.0, %v1592
    %1594 = vmatprep.mubr.bf16.mxu0 %v735
    %1595 = vmatmul.mubr.bf16.gmra.mrb[0].mxu0 %v734
    %v1596 = vpop.f32.mrb[0].mxu0
    %v1597 = vadd.f32 0.0, %v1596
    %v1598 = vpop.f32.mrb[0].mxu0
    %v1599 = vadd.f32 0.0, %v1598
    %v1600 = vpop.f32.mrb[0].mxu0
    %v1601 = vadd.f32 0.0, %v1600
    %v1602 = vpop.f32.mrb[0].mxu0
    %v1603 = vadd.f32 0.0, %v1602
    %1604 = vmatprep.mubr.bf16.mxu0 %v739
    %1605 = vmatmul.mubr.bf16.gmra.mrb[0].mxu0 %v738
    %v1606 = vpop.f32.mrb[0].mxu0
    %v1607 = vadd.f32 0.0, %v1606
    %v1608 = vpop.f32.mrb[0].mxu0
    %v1609 = vadd.f32 0.0, %v1608
    %v1610 = vpop.f32.mrb[0].mxu0
    %v1611 = vadd.f32 0.0, %v1610
    %v1612 = vpop.f32.mrb[0].mxu0
    %v1613 = vadd.f32 0.0, %v1612
    %1614 = vmatprep.mubr.bf16.mxu0 %v743
    %1615 = vmatmul.mubr.bf16.gmra.mrb[0].mxu0 %v742
    %v1616 = vpop.f32.mrb[0].mxu0
    %v1617 = vadd.f32 0.0, %v1616
    %v1618 = vpop.f32.mrb[0].mxu0
    %v1619 = vadd.f32 0.0, %v1618
    %v1620 = vpop.f32.mrb[0].mxu0
    %v1621 = vadd.f32 0.0, %v1620
    %v1622 = vpop.f32.mrb[0].mxu0
    %v1623 = vadd.f32 0.0, %v1622
    %1624 = vmatprep.mubr.bf16.mxu0 %v747
    %1625 = vmatmul.mubr.bf16.gmra.mrb[0].mxu0 %v746
    %v1626 = vpop.f32.mrb[0].mxu0
    %v1627 = vadd.f32 0.0, %v1626
    %v1628 = vpop.f32.mrb[0].mxu0
    %v1629 = vadd.f32 0.0, %v1628
    %v1630 = vpop.f32.mrb[0].mxu0
    %v1631 = vadd.f32 0.0, %v1630
    %v1632 = vpop.f32.mrb[0].mxu0
    %v1633 = vadd.f32 0.0, %v1632
    %1634 = vmatprep.mubr.bf16.mxu0 %v751
    %1635 = vmatmul.mubr.bf16.gmra.mrb[0].mxu0 %v750
    %v1636 = vpop.f32.mrb[0].mxu0
    %v1637 = vadd.f32 0.0, %v1636
    %v1638 = vpop.f32.mrb[0].mxu0
    %v1639 = vadd.f32 0.0, %v1638
    %v1640 = vpop.f32.mrb[0].mxu0
    %v1641 = vadd.f32 0.0, %v1640
    %v1642 = vpop.f32.mrb[0].mxu0
    %v1643 = vadd.f32 0.0, %v1642
    %1644 = vmatprep.mubr.bf16.mxu0 %v755
    %1645 = vmatmul.mubr.bf16.gmra.mrb[0].mxu0 %v754
    %v1646 = vpop.f32.mrb[0].mxu0
    %v1647 = vadd.f32 0.0, %v1646
    %v1648 = vpop.f32.mrb[0].mxu0
    %v1649 = vadd.f32 0.0, %v1648
    %v1650 = vpop.f32.mrb[0].mxu0
    %v1651 = vadd.f32 0.0, %v1650
    %v1652 = vpop.f32.mrb[0].mxu0
    %v1653 = vadd.f32 0.0, %v1652
    %1654 = vdwg.mxu0
    %1655 = vmatprep.subr.bf16.mxu0 %v1209
    %1656 = vmatpush1.bf16.xpose.msra.mxu0 %v1208
    %1657 = vmatprep.subr.bf16.mxu0 %v1213
    %1658 = vmatpush1.bf16.xpose.msra.mxu0 %v1212
    %1659 = vmatprep.subr.bf16.mxu0 %v1217
    %1660 = vmatpush1.bf16.xpose.msra.mxu0 %v1216
    %1661 = vmatprep.subr.bf16.mxu0 %v1221
    %1662 = vmatpush1.bf16.xpose.msra.mxu0 %v1220
    %1663 = vmatprep.subr.bf16.mxu0 %v1225
    %1664 = vmatpush1.bf16.xpose.msra.mxu0 %v1224
    %1665 = vmatprep.subr.bf16.mxu0 %v1229
    %1666 = vmatpush1.bf16.xpose.msra.mxu0 %v1228
    %1667 = vmatprep.subr.bf16.mxu0 %v1233
    %1668 = vmatpush1.bf16.xpose.msra.mxu0 %v1232
    %1669 = vmatprep.subr.bf16.mxu0 %v1237
    %1670 = vmatpush1.bf16.xpose.msra.mxu0 %v1236
    %1671 = vmatprep.subr.bf16.mxu0 %v1241
    %1672 = vmatpush1.bf16.xpose.msra.mxu0 %v1240
    %1673 = vmatprep.subr.bf16.mxu0 %v1245
    %1674 = vmatpush1.bf16.xpose.msra.mxu0 %v1244
    %1675 = vmatprep.subr.bf16.mxu0 %v1249
    %1676 = vmatpush1.bf16.xpose.msra.mxu0 %v1248
    %1677 = vmatprep.subr.bf16.mxu0 %v1253
    %1678 = vmatpush1.bf16.xpose.msra.mxu0 %v1252
    %1679 = vmatprep.subr.bf16.mxu0 %v1257
    %1680 = vmatpush1.bf16.xpose.msra.mxu0 %v1256
    %1681 = vmatprep.subr.bf16.mxu0 %v1261
    %1682 = vmatpush1.bf16.xpose.msra.mxu0 %v1260
    %1683 = vmatprep.subr.bf16.mxu0 %v1265
    %1684 = vmatpush1.bf16.xpose.msra.mxu0 %v1264
    %1685 = vmatprep.subr.bf16.mxu0 %v1269
    %1686 = vmatpush1.bf16.xpose.msra.mxu0 %v1268
    %1687 = vmatprep.mubr.bf16.mxu0 %v697
    %1688 = vmatmul.mubr.bf16.gmra.mrb[0].mxu0 %v696
    %v1689 = vpop.f32.mrb[0].mxu0
    %v1690 = vadd.f32 %v1497, %v1689
    %v1691 = vpop.f32.mrb[0].mxu0
    %v1692 = vadd.f32 %v1499, %v1691
    %v1693 = vpop.f32.mrb[0].mxu0
    %v1694 = vadd.f32 %v1501, %v1693
    %v1695 = vpop.f32.mrb[0].mxu0
    %v1696 = vadd.f32 %v1503, %v1695
    %1697 = vmatprep.mubr.bf16.mxu0 %v701
    %1698 = vmatmul.mubr.bf16.gmra.mrb[0].mxu0 %v700
    %v1699 = vpop.f32.mrb[0].mxu0
    %v1700 = vadd.f32 %v1507, %v1699
    %v1701 = vpop.f32.mrb[0].mxu0
    %v1702 = vadd.f32 %v1509, %v1701
    %v1703 = vpop.f32.mrb[0].mxu0
    %v1704 = vadd.f32 %v1511, %v1703
    %v1705 = vpop.f32.mrb[0].mxu0
    %v1706 = vadd.f32 %v1513, %v1705
    %1707 = vmatprep.mubr.bf16.mxu0 %v705
    %1708 = vmatmul.mubr.bf16.gmra.mrb[0].mxu0 %v704
    %v1709 = vpop.f32.mrb[0].mxu0
    %v1710 = vadd.f32 %v1517, %v1709
    %v1711 = vpop.f32.mrb[0].mxu0
    %v1712 = vadd.f32 %v1519, %v1711
    %v1713 = vpop.f32.mrb[0].mxu0
    %v1714 = vadd.f32 %v1521, %v1713
    %v1715 = vpop.f32.mrb[0].mxu0
    %v1716 = vadd.f32 %v1523, %v1715
    %1717 = vmatprep.mubr.bf16.mxu0 %v709
    %1718 = vmatmul.mubr.bf16.gmra.mrb[0].mxu0 %v708
    %v1719 = vpop.f32.mrb[0].mxu0
    %v1720 = vadd.f32 %v1527, %v1719
    %v1721 = vpop.f32.mrb[0].mxu0
    %v1722 = vadd.f32 %v1529, %v1721
    %v1723 = vpop.f32.mrb[0].mxu0
    %v1724 = vadd.f32 %v1531, %v1723
    %v1725 = vpop.f32.mrb[0].mxu0
    %v1726 = vadd.f32 %v1533, %v1725
    %1727 = vmatprep.mubr.bf16.mxu0 %v713
    %1728 = vmatmul.mubr.bf16.gmra.mrb[0].mxu0 %v712
    %v1729 = vpop.f32.mrb[0].mxu0
    %v1730 = vadd.f32 %v1537, %v1729
    %v1731 = vpop.f32.mrb[0].mxu0
    %v1732 = vadd.f32 %v1539, %v1731
    %v1733 = vpop.f32.mrb[0].mxu0
    %v1734 = vadd.f32 %v1541, %v1733
    %v1735 = vpop.f32.mrb[0].mxu0
    %v1736 = vadd.f32 %v1543, %v1735
    %1737 = vmatprep.mubr.bf16.mxu0 %v717
    %1738 = vmatmul.mubr.bf16.gmra.mrb[0].mxu0 %v716
    %v1739 = vpop.f32.mrb[0].mxu0
    %v1740 = vadd.f32 %v1547, %v1739
    %v1741 = vpop.f32.mrb[0].mxu0
    %v1742 = vadd.f32 %v1549, %v1741
    %v1743 = vpop.f32.mrb[0].mxu0
    %v1744 = vadd.f32 %v1551, %v1743
    %v1745 = vpop.f32.mrb[0].mxu0
    %v1746 = vadd.f32 %v1553, %v1745
    %1747 = vmatprep.mubr.bf16.mxu0 %v721
    %1748 = vmatmul.mubr.bf16.gmra.mrb[0].mxu0 %v720
    %v1749 = vpop.f32.mrb[0].mxu0
    %v1750 = vadd.f32 %v1557, %v1749
    %v1751 = vpop.f32.mrb[0].mxu0
    %v1752 = vadd.f32 %v1559, %v1751
    %v1753 = vpop.f32.mrb[0].mxu0
    %v1754 = vadd.f32 %v1561, %v1753
    %v1755 = vpop.f32.mrb[0].mxu0
    %v1756 = vadd.f32 %v1563, %v1755
    %1757 = vmatprep.mubr.bf16.mxu0 %v725
    %1758 = vmatmul.mubr.bf16.gmra.mrb[0].mxu0 %v724
    %v1759 = vpop.f32.mrb[0].mxu0
    %v1760 = vadd.f32 %v1567, %v1759
    %v1761 = vpop.f32.mrb[0].mxu0
    %v1762 = vadd.f32 %v1569, %v1761
    %v1763 = vpop.f32.mrb[0].mxu0
    %v1764 = vadd.f32 %v1571, %v1763
    %v1765 = vpop.f32.mrb[0].mxu0
    %v1766 = vadd.f32 %v1573, %v1765
    %1767 = vmatprep.mubr.bf16.mxu0 %v729
    %1768 = vmatmul.mubr.bf16.gmra.mrb[0].mxu0 %v728
    %v1769 = vpop.f32.mrb[0].mxu0
    %v1770 = vadd.f32 %v1577, %v1769
    %v1771 = vpop.f32.mrb[0].mxu0
    %v1772 = vadd.f32 %v1579, %v1771
    %v1773 = vpop.f32.mrb[0].mxu0
    %v1774 = vadd.f32 %v1581, %v1773
    %v1775 = vpop.f32.mrb[0].mxu0
    %v1776 = vadd.f32 %v1583, %v1775
    %1777 = vmatprep.mubr.bf16.mxu0 %v733
    %1778 = vmatmul.mubr.bf16.gmra.mrb[0].mxu0 %v732
    %v1779 = vpop.f32.mrb[0].mxu0
    %v1780 = vadd.f32 %v1587, %v1779
    %v1781 = vpop.f32.mrb[0].mxu0
    %v1782 = vadd.f32 %v1589, %v1781
    %v1783 = vpop.f32.mrb[0].mxu0
    %v1784 = vadd.f32 %v1591, %v1783
    %v1785 = vpop.f32.mrb[0].mxu0
    %v1786 = vadd.f32 %v1593, %v1785
    %1787 = vmatprep.mubr.bf16.mxu0 %v737
    %1788 = vmatmul.mubr.bf16.gmra.mrb[0].mxu0 %v736
    %v1789 = vpop.f32.mrb[0].mxu0
    %v1790 = vadd.f32 %v1597, %v1789
    %v1791 = vpop.f32.mrb[0].mxu0
    %v1792 = vadd.f32 %v1599, %v1791
    %v1793 = vpop.f32.mrb[0].mxu0
    %v1794 = vadd.f32 %v1601, %v1793
    %v1795 = vpop.f32.mrb[0].mxu0
    %v1796 = vadd.f32 %v1603, %v1795
    %1797 = vmatprep.mubr.bf16.mxu0 %v741
    %1798 = vmatmul.mubr.bf16.gmra.mrb[0].mxu0 %v740
    %v1799 = vpop.f32.mrb[0].mxu0
    %v1800 = vadd.f32 %v1607, %v1799
    %v1801 = vpop.f32.mrb[0].mxu0
    %v1802 = vadd.f32 %v1609, %v1801
    %v1803 = vpop.f32.mrb[0].mxu0
    %v1804 = vadd.f32 %v1611, %v1803
    %v1805 = vpop.f32.mrb[0].mxu0
    %v1806 = vadd.f32 %v1613, %v1805
    %1807 = vmatprep.mubr.bf16.mxu0 %v745
    %1808 = vmatmul.mubr.bf16.gmra.mrb[0].mxu0 %v744
    %v1809 = vpop.f32.mrb[0].mxu0
    %v1810 = vadd.f32 %v1617, %v1809
    %v1811 = vpop.f32.mrb[0].mxu0
    %v1812 = vadd.f32 %v1619, %v1811
    %v1813 = vpop.f32.mrb[0].mxu0
    %v1814 = vadd.f32 %v1621, %v1813
    %v1815 = vpop.f32.mrb[0].mxu0
    %v1816 = vadd.f32 %v1623, %v1815
    %1817 = vmatprep.mubr.bf16.mxu0 %v749
    %1818 = vmatmul.mubr.bf16.gmra.mrb[0].mxu0 %v748
    %v1819 = vpop.f32.mrb[0].mxu0
    %v1820 = vadd.f32 %v1627, %v1819
    %v1821 = vpop.f32.mrb[0].mxu0
    %v1822 = vadd.f32 %v1629, %v1821
    %v1823 = vpop.f32.mrb[0].mxu0
    %v1824 = vadd.f32 %v1631, %v1823
    %v1825 = vpop.f32.mrb[0].mxu0
    %v1826 = vadd.f32 %v1633, %v1825
    %1827 = vmatprep.mubr.bf16.mxu0 %v753
    %1828 = vmatmul.mubr.bf16.gmra.mrb[0].mxu0 %v752
    %v1829 = vpop.f32.mrb[0].mxu0
    %v1830 = vadd.f32 %v1637, %v1829
    %v1831 = vpop.f32.mrb[0].mxu0
    %v1832 = vadd.f32 %v1639, %v1831
    %v1833 = vpop.f32.mrb[0].mxu0
    %v1834 = vadd.f32 %v1641, %v1833
    %v1835 = vpop.f32.mrb[0].mxu0
    %v1836 = vadd.f32 %v1643, %v1835
    %1837 = vmatprep.mubr.bf16.mxu0 %v757
    %1838 = vmatmul.mubr.bf16.gmra.mrb[0].mxu0 %v756
    %v1839 = vpop.f32.mrb[0].mxu0
    %v1840 = vadd.f32 %v1647, %v1839
    %v1841 = vpop.f32.mrb[0].mxu0
    %v1842 = vadd.f32 %v1649, %v1841
    %v1843 = vpop.f32.mrb[0].mxu0
    %v1844 = vadd.f32 %v1651, %v1843
    %v1845 = vpop.f32.mrb[0].mxu0
    %v1846 = vadd.f32 %v1653, %v1845
    %1847 = vdwg.mxu0
    %1848 = vmatprep.subr.bf16.mxu0 %v1271
    %1849 = vmatpush1.bf16.xpose.msra.mxu0 %v1270
    %1850 = vmatprep.subr.bf16.mxu0 %v1275
    %1851 = vmatpush1.bf16.xpose.msra.mxu0 %v1274
    %1852 = vmatprep.subr.bf16.mxu0 %v1279
    %1853 = vmatpush1.bf16.xpose.msra.mxu0 %v1278
    %1854 = vmatprep.subr.bf16.mxu0 %v1283
    %1855 = vmatpush1.bf16.xpose.msra.mxu0 %v1282
    %1856 = vmatprep.subr.bf16.mxu0 %v1287
    %1857 = vmatpush1.bf16.xpose.msra.mxu0 %v1286
    %1858 = vmatprep.subr.bf16.mxu0 %v1291
    %1859 = vmatpush1.bf16.xpose.msra.mxu0 %v1290
    %1860 = vmatprep.subr.bf16.mxu0 %v1295
    %1861 = vmatpush1.bf16.xpose.msra.mxu0 %v1294
    %1862 = vmatprep.subr.bf16.mxu0 %v1299
    %1863 = vmatpush1.bf16.xpose.msra.mxu0 %v1298
    %1864 = vmatprep.subr.bf16.mxu0 %v1303
    %1865 = vmatpush1.bf16.xpose.msra.mxu0 %v1302
    %1866 = vmatprep.subr.bf16.mxu0 %v1307
    %1867 = vmatpush1.bf16.xpose.msra.mxu0 %v1306
    %1868 = vmatprep.subr.bf16.mxu0 %v1311
    %1869 = vmatpush1.bf16.xpose.msra.mxu0 %v1310
    %1870 = vmatprep.subr.bf16.mxu0 %v1315
    %1871 = vmatpush1.bf16.xpose.msra.mxu0 %v1314
    %1872 = vmatprep.subr.bf16.mxu0 %v1319
    %1873 = vmatpush1.bf16.xpose.msra.mxu0 %v1318
    %1874 = vmatprep.subr.bf16.mxu0 %v1323
    %1875 = vmatpush1.bf16.xpose.msra.mxu0 %v1322
    %1876 = vmatprep.subr.bf16.mxu0 %v1327
    %1877 = vmatpush1.bf16.xpose.msra.mxu0 %v1326
    %1878 = vmatprep.subr.bf16.mxu0 %v1331
    %1879 = vmatpush1.bf16.xpose.msra.mxu0 %v1330
    %1880 = vmatprep.mubr.bf16.mxu0 %v695
    %1881 = vmatmul.mubr.bf16.gmra.mrb[0].mxu0 %v694
    %v1882 = vpop.f32.mrb[0].mxu0
    %v1883 = vadd.f32 0.0, %v1882
    %v1884 = vpop.f32.mrb[0].mxu0
    %v1885 = vadd.f32 0.0, %v1884
    %v1886 = vpop.f32.mrb[0].mxu0
    %v1887 = vadd.f32 0.0, %v1886
    %v1888 = vpop.f32.mrb[0].mxu0
    %v1889 = vadd.f32 0.0, %v1888
    %1890 = vmatprep.mubr.bf16.mxu0 %v699
    %1891 = vmatmul.mubr.bf16.gmra.mrb[0].mxu0 %v698
    %v1892 = vpop.f32.mrb[0].mxu0
    %v1893 = vadd.f32 0.0, %v1892
    %v1894 = vpop.f32.mrb[0].mxu0
    %v1895 = vadd.f32 0.0, %v1894
    %v1896 = vpop.f32.mrb[0].mxu0
    %v1897 = vadd.f32 0.0, %v1896
    %v1898 = vpop.f32.mrb[0].mxu0
    %v1899 = vadd.f32 0.0, %v1898
    %1900 = vmatprep.mubr.bf16.mxu0 %v703
    %1901 = vmatmul.mubr.bf16.gmra.mrb[0].mxu0 %v702
    %v1902 = vpop.f32.mrb[0].mxu0
    %v1903 = vadd.f32 0.0, %v1902
    %v1904 = vpop.f32.mrb[0].mxu0
    %v1905 = vadd.f32 0.0, %v1904
    %v1906 = vpop.f32.mrb[0].mxu0
    %v1907 = vadd.f32 0.0, %v1906
    %v1908 = vpop.f32.mrb[0].mxu0
    %v1909 = vadd.f32 0.0, %v1908
    %1910 = vmatprep.mubr.bf16.mxu0 %v707
    %1911 = vmatmul.mubr.bf16.gmra.mrb[0].mxu0 %v706
    %v1912 = vpop.f32.mrb[0].mxu0
    %v1913 = vadd.f32 0.0, %v1912
    %v1914 = vpop.f32.mrb[0].mxu0
    %v1915 = vadd.f32 0.0, %v1914
    %v1916 = vpop.f32.mrb[0].mxu0
    %v1917 = vadd.f32 0.0, %v1916
    %v1918 = vpop.f32.mrb[0].mxu0
    %v1919 = vadd.f32 0.0, %v1918
    %1920 = vmatprep.mubr.bf16.mxu0 %v711
    %1921 = vmatmul.mubr.bf16.gmra.mrb[0].mxu0 %v710
    %v1922 = vpop.f32.mrb[0].mxu0
    %v1923 = vadd.f32 0.0, %v1922
    %v1924 = vpop.f32.mrb[0].mxu0
    %v1925 = vadd.f32 0.0, %v1924
    %v1926 = vpop.f32.mrb[0].mxu0
    %v1927 = vadd.f32 0.0, %v1926
    %v1928 = vpop.f32.mrb[0].mxu0
    %v1929 = vadd.f32 0.0, %v1928
    %1930 = vmatprep.mubr.bf16.mxu0 %v715
    %1931 = vmatmul.mubr.bf16.gmra.mrb[0].mxu0 %v714
    %v1932 = vpop.f32.mrb[0].mxu0
    %v1933 = vadd.f32 0.0, %v1932
    %v1934 = vpop.f32.mrb[0].mxu0
    %v1935 = vadd.f32 0.0, %v1934
    %v1936 = vpop.f32.mrb[0].mxu0
    %v1937 = vadd.f32 0.0, %v1936
    %v1938 = vpop.f32.mrb[0].mxu0
    %v1939 = vadd.f32 0.0, %v1938
    %1940 = vmatprep.mubr.bf16.mxu0 %v719
    %1941 = vmatmul.mubr.bf16.gmra.mrb[0].mxu0 %v718
    %v1942 = vpop.f32.mrb[0].mxu0
    %v1943 = vadd.f32 0.0, %v1942
    %v1944 = vpop.f32.mrb[0].mxu0
    %v1945 = vadd.f32 0.0, %v1944
    %v1946 = vpop.f32.mrb[0].mxu0
    %v1947 = vadd.f32 0.0, %v1946
    %v1948 = vpop.f32.mrb[0].mxu0
    %v1949 = vadd.f32 0.0, %v1948
    %1950 = vmatprep.mubr.bf16.mxu0 %v723
    %1951 = vmatmul.mubr.bf16.gmra.mrb[0].mxu0 %v722
    %v1952 = vpop.f32.mrb[0].mxu0
    %v1953 = vadd.f32 0.0, %v1952
    %v1954 = vpop.f32.mrb[0].mxu0
    %v1955 = vadd.f32 0.0, %v1954
    %v1956 = vpop.f32.mrb[0].mxu0
    %v1957 = vadd.f32 0.0, %v1956
    %v1958 = vpop.f32.mrb[0].mxu0
    %v1959 = vadd.f32 0.0, %v1958
    %1960 = vmatprep.mubr.bf16.mxu0 %v727
    %1961 = vmatmul.mubr.bf16.gmra.mrb[0].mxu0 %v726
    %v1962 = vpop.f32.mrb[0].mxu0
    %v1963 = vadd.f32 0.0, %v1962
    %v1964 = vpop.f32.mrb[0].mxu0
    %v1965 = vadd.f32 0.0, %v1964
    %v1966 = vpop.f32.mrb[0].mxu0
    %v1967 = vadd.f32 0.0, %v1966
    %v1968 = vpop.f32.mrb[0].mxu0
    %v1969 = vadd.f32 0.0, %v1968
    %1970 = vmatprep.mubr.bf16.mxu0 %v731
    %1971 = vmatmul.mubr.bf16.gmra.mrb[0].mxu0 %v730
    %v1972 = vpop.f32.mrb[0].mxu0
    %v1973 = vadd.f32 0.0, %v1972
    %v1974 = vpop.f32.mrb[0].mxu0
    %v1975 = vadd.f32 0.0, %v1974
    %v1976 = vpop.f32.mrb[0].mxu0
    %v1977 = vadd.f32 0.0, %v1976
    %v1978 = vpop.f32.mrb[0].mxu0
    %v1979 = vadd.f32 0.0, %v1978
    %1980 = vmatprep.mubr.bf16.mxu0 %v735
    %1981 = vmatmul.mubr.bf16.gmra.mrb[0].mxu0 %v734
    %v1982 = vpop.f32.mrb[0].mxu0
    %v1983 = vadd.f32 0.0, %v1982
    %v1984 = vpop.f32.mrb[0].mxu0
    %v1985 = vadd.f32 0.0, %v1984
    %v1986 = vpop.f32.mrb[0].mxu0
    %v1987 = vadd.f32 0.0, %v1986
    %v1988 = vpop.f32.mrb[0].mxu0
    %v1989 = vadd.f32 0.0, %v1988
    %1990 = vmatprep.mubr.bf16.mxu0 %v739
    %1991 = vmatmul.mubr.bf16.gmra.mrb[0].mxu0 %v738
    %v1992 = vpop.f32.mrb[0].mxu0
    %v1993 = vadd.f32 0.0, %v1992
    %v1994 = vpop.f32.mrb[0].mxu0
    %v1995 = vadd.f32 0.0, %v1994
    %v1996 = vpop.f32.mrb[0].mxu0
    %v1997 = vadd.f32 0.0, %v1996
    %v1998 = vpop.f32.mrb[0].mxu0
    %v1999 = vadd.f32 0.0, %v1998
    %2000 = vmatprep.mubr.bf16.mxu0 %v743
    %2001 = vmatmul.mubr.bf16.gmra.mrb[0].mxu0 %v742
    %v2002 = vpop.f32.mrb[0].mxu0
    %v2003 = vadd.f32 0.0, %v2002
    %v2004 = vpop.f32.mrb[0].mxu0
    %v2005 = vadd.f32 0.0, %v2004
    %v2006 = vpop.f32.mrb[0].mxu0
    %v2007 = vadd.f32 0.0, %v2006
    %v2008 = vpop.f32.mrb[0].mxu0
    %v2009 = vadd.f32 0.0, %v2008
    %2010 = vmatprep.mubr.bf16.mxu0 %v747
    %2011 = vmatmul.mubr.bf16.gmra.mrb[0].mxu0 %v746
    %v2012 = vpop.f32.mrb[0].mxu0
    %v2013 = vadd.f32 0.0, %v2012
    %v2014 = vpop.f32.mrb[0].mxu0
    %v2015 = vadd.f32 0.0, %v2014
    %v2016 = vpop.f32.mrb[0].mxu0
    %v2017 = vadd.f32 0.0, %v2016
    %v2018 = vpop.f32.mrb[0].mxu0
    %v2019 = vadd.f32 0.0, %v2018
    %2020 = vmatprep.mubr.bf16.mxu0 %v751
    %2021 = vmatmul.mubr.bf16.gmra.mrb[0].mxu0 %v750
    %v2022 = vpop.f32.mrb[0].mxu0
    %v2023 = vadd.f32 0.0, %v2022
    %v2024 = vpop.f32.mrb[0].mxu0
    %v2025 = vadd.f32 0.0, %v2024
    %v2026 = vpop.f32.mrb[0].mxu0
    %v2027 = vadd.f32 0.0, %v2026
    %v2028 = vpop.f32.mrb[0].mxu0
    %v2029 = vadd.f32 0.0, %v2028
    %2030 = vmatprep.mubr.bf16.mxu0 %v755
    %2031 = vmatmul.mubr.bf16.gmra.mrb[0].mxu0 %v754
    %v2032 = vpop.f32.mrb[0].mxu0
    %v2033 = vadd.f32 0.0, %v2032
    %v2034 = vpop.f32.mrb[0].mxu0
    %v2035 = vadd.f32 0.0, %v2034
    %v2036 = vpop.f32.mrb[0].mxu0
    %v2037 = vadd.f32 0.0, %v2036
    %v2038 = vpop.f32.mrb[0].mxu0
    %v2039 = vadd.f32 0.0, %v2038
    %2040 = vdwg.mxu0
    %2041 = vmatprep.subr.bf16.mxu0 %v1273
    %2042 = vmatpush1.bf16.xpose.msra.mxu0 %v1272
    %2043 = vmatprep.subr.bf16.mxu0 %v1277
    %2044 = vmatpush1.bf16.xpose.msra.mxu0 %v1276
    %2045 = vmatprep.subr.bf16.mxu0 %v1281
    %2046 = vmatpush1.bf16.xpose.msra.mxu0 %v1280
    %2047 = vmatprep.subr.bf16.mxu0 %v1285
    %2048 = vmatpush1.bf16.xpose.msra.mxu0 %v1284
    %2049 = vmatprep.subr.bf16.mxu0 %v1289
    %2050 = vmatpush1.bf16.xpose.msra.mxu0 %v1288
    %2051 = vmatprep.subr.bf16.mxu0 %v1293
    %2052 = vmatpush1.bf16.xpose.msra.mxu0 %v1292
    %2053 = vmatprep.subr.bf16.mxu0 %v1297
    %2054 = vmatpush1.bf16.xpose.msra.mxu0 %v1296
    %2055 = vmatprep.subr.bf16.mxu0 %v1301
    %2056 = vmatpush1.bf16.xpose.msra.mxu0 %v1300
    %2057 = vmatprep.subr.bf16.mxu0 %v1305
    %2058 = vmatpush1.bf16.xpose.msra.mxu0 %v1304
    %2059 = vmatprep.subr.bf16.mxu0 %v1309
    %2060 = vmatpush1.bf16.xpose.msra.mxu0 %v1308
    %2061 = vmatprep.subr.bf16.mxu0 %v1313
    %2062 = vmatpush1.bf16.xpose.msra.mxu0 %v1312
    %2063 = vmatprep.subr.bf16.mxu0 %v1317
    %2064 = vmatpush1.bf16.xpose.msra.mxu0 %v1316
    %2065 = vmatprep.subr.bf16.mxu0 %v1321
    %2066 = vmatpush1.bf16.xpose.msra.mxu0 %v1320
    %2067 = vmatprep.subr.bf16.mxu0 %v1325
    %2068 = vmatpush1.bf16.xpose.msra.mxu0 %v1324
    %2069 = vmatprep.subr.bf16.mxu0 %v1329
    %2070 = vmatpush1.bf16.xpose.msra.mxu0 %v1328
    %2071 = vmatprep.subr.bf16.mxu0 %v1333
    %2072 = vmatpush1.bf16.xpose.msra.mxu0 %v1332
    %2073 = vmatprep.mubr.bf16.mxu0 %v697
    %2074 = vmatmul.mubr.bf16.gmra.mrb[0].mxu0 %v696
    %v2075 = vpop.f32.mrb[0].mxu0
    %v2076 = vadd.f32 %v1883, %v2075
    %v2077 = vpop.f32.mrb[0].mxu0
    %v2078 = vadd.f32 %v1885, %v2077
    %v2079 = vpop.f32.mrb[0].mxu0
    %v2080 = vadd.f32 %v1887, %v2079
    %v2081 = vpop.f32.mrb[0].mxu0
    %v2082 = vadd.f32 %v1889, %v2081
    %2083 = vmatprep.mubr.bf16.mxu0 %v701
    %2084 = vmatmul.mubr.bf16.gmra.mrb[0].mxu0 %v700
    %v2085 = vpop.f32.mrb[0].mxu0
    %v2086 = vadd.f32 %v1893, %v2085
    %v2087 = vpop.f32.mrb[0].mxu0
    %v2088 = vadd.f32 %v1895, %v2087
    %v2089 = vpop.f32.mrb[0].mxu0
    %v2090 = vadd.f32 %v1897, %v2089
    %v2091 = vpop.f32.mrb[0].mxu0
    %v2092 = vadd.f32 %v1899, %v2091
    %2093 = vmatprep.mubr.bf16.mxu0 %v705
    %2094 = vmatmul.mubr.bf16.gmra.mrb[0].mxu0 %v704
    %v2095 = vpop.f32.mrb[0].mxu0
    %v2096 = vadd.f32 %v1903, %v2095
    %v2097 = vpop.f32.mrb[0].mxu0
    %v2098 = vadd.f32 %v1905, %v2097
    %v2099 = vpop.f32.mrb[0].mxu0
    %v2100 = vadd.f32 %v1907, %v2099
    %v2101 = vpop.f32.mrb[0].mxu0
    %v2102 = vadd.f32 %v1909, %v2101
    %2103 = vmatprep.mubr.bf16.mxu0 %v709
    %2104 = vmatmul.mubr.bf16.gmra.mrb[0].mxu0 %v708
    %v2105 = vpop.f32.mrb[0].mxu0
    %v2106 = vadd.f32 %v1913, %v2105
    %v2107 = vpop.f32.mrb[0].mxu0
    %v2108 = vadd.f32 %v1915, %v2107
    %v2109 = vpop.f32.mrb[0].mxu0
    %v2110 = vadd.f32 %v1917, %v2109
    %v2111 = vpop.f32.mrb[0].mxu0
    %v2112 = vadd.f32 %v1919, %v2111
    %2113 = vmatprep.mubr.bf16.mxu0 %v713
    %2114 = vmatmul.mubr.bf16.gmra.mrb[0].mxu0 %v712
    %v2115 = vpop.f32.mrb[0].mxu0
    %v2116 = vadd.f32 %v1923, %v2115
    %v2117 = vpop.f32.mrb[0].mxu0
    %v2118 = vadd.f32 %v1925, %v2117
    %v2119 = vpop.f32.mrb[0].mxu0
    %v2120 = vadd.f32 %v1927, %v2119
    %v2121 = vpop.f32.mrb[0].mxu0
    %v2122 = vadd.f32 %v1929, %v2121
    %2123 = vmatprep.mubr.bf16.mxu0 %v717
    %2124 = vmatmul.mubr.bf16.gmra.mrb[0].mxu0 %v716
    %v2125 = vpop.f32.mrb[0].mxu0
    %v2126 = vadd.f32 %v1933, %v2125
    %v2127 = vpop.f32.mrb[0].mxu0
    %v2128 = vadd.f32 %v1935, %v2127
    %v2129 = vpop.f32.mrb[0].mxu0
    %v2130 = vadd.f32 %v1937, %v2129
    %v2131 = vpop.f32.mrb[0].mxu0
    %v2132 = vadd.f32 %v1939, %v2131
    %2133 = vmatprep.mubr.bf16.mxu0 %v721
    %2134 = vmatmul.mubr.bf16.gmra.mrb[0].mxu0 %v720
    %v2135 = vpop.f32.mrb[0].mxu0
    %v2136 = vadd.f32 %v1943, %v2135
    %v2137 = vpop.f32.mrb[0].mxu0
    %v2138 = vadd.f32 %v1945, %v2137
    %v2139 = vpop.f32.mrb[0].mxu0
    %v2140 = vadd.f32 %v1947, %v2139
    %v2141 = vpop.f32.mrb[0].mxu0
    %v2142 = vadd.f32 %v1949, %v2141
    %2143 = vmatprep.mubr.bf16.mxu0 %v725
    %2144 = vmatmul.mubr.bf16.gmra.mrb[0].mxu0 %v724
    %v2145 = vpop.f32.mrb[0].mxu0
    %v2146 = vadd.f32 %v1953, %v2145
    %v2147 = vpop.f32.mrb[0].mxu0
    %v2148 = vadd.f32 %v1955, %v2147
    %v2149 = vpop.f32.mrb[0].mxu0
    %v2150 = vadd.f32 %v1957, %v2149
    %v2151 = vpop.f32.mrb[0].mxu0
    %v2152 = vadd.f32 %v1959, %v2151
    %2153 = vmatprep.mubr.bf16.mxu0 %v729
    %2154 = vmatmul.mubr.bf16.gmra.mrb[0].mxu0 %v728
    %v2155 = vpop.f32.mrb[0].mxu0
    %v2156 = vadd.f32 %v1963, %v2155
    %v2157 = vpop.f32.mrb[0].mxu0
    %v2158 = vadd.f32 %v1965, %v2157
    %v2159 = vpop.f32.mrb[0].mxu0
    %v2160 = vadd.f32 %v1967, %v2159
    %v2161 = vpop.f32.mrb[0].mxu0
    %v2162 = vadd.f32 %v1969, %v2161
    %2163 = vmatprep.mubr.bf16.mxu0 %v733
    %2164 = vmatmul.mubr.bf16.gmra.mrb[0].mxu0 %v732
    %v2165 = vpop.f32.mrb[0].mxu0
    %v2166 = vadd.f32 %v1973, %v2165
    %v2167 = vpop.f32.mrb[0].mxu0
    %v2168 = vadd.f32 %v1975, %v2167
    %v2169 = vpop.f32.mrb[0].mxu0
    %v2170 = vadd.f32 %v1977, %v2169
    %v2171 = vpop.f32.mrb[0].mxu0
    %v2172 = vadd.f32 %v1979, %v2171
    %2173 = vmatprep.mubr.bf16.mxu0 %v737
    %2174 = vmatmul.mubr.bf16.gmra.mrb[0].mxu0 %v736
    %v2175 = vpop.f32.mrb[0].mxu0
    %v2176 = vadd.f32 %v1983, %v2175
    %v2177 = vpop.f32.mrb[0].mxu0
    %v2178 = vadd.f32 %v1985, %v2177
    %v2179 = vpop.f32.mrb[0].mxu0
    %v2180 = vadd.f32 %v1987, %v2179
    %v2181 = vpop.f32.mrb[0].mxu0
    %v2182 = vadd.f32 %v1989, %v2181
    %2183 = vmatprep.mubr.bf16.mxu0 %v741
    %2184 = vmatmul.mubr.bf16.gmra.mrb[0].mxu0 %v740
    %v2185 = vpop.f32.mrb[0].mxu0
    %v2186 = vadd.f32 %v1993, %v2185
    %v2187 = vpop.f32.mrb[0].mxu0
    %v2188 = vadd.f32 %v1995, %v2187
    %v2189 = vpop.f32.mrb[0].mxu0
    %v2190 = vadd.f32 %v1997, %v2189
    %v2191 = vpop.f32.mrb[0].mxu0
    %v2192 = vadd.f32 %v1999, %v2191
    %2193 = vmatprep.mubr.bf16.mxu0 %v745
    %2194 = vmatmul.mubr.bf16.gmra.mrb[0].mxu0 %v744
    %v2195 = vpop.f32.mrb[0].mxu0
    %v2196 = vadd.f32 %v2003, %v2195
    %v2197 = vpop.f32.mrb[0].mxu0
    %v2198 = vadd.f32 %v2005, %v2197
    %v2199 = vpop.f32.mrb[0].mxu0
    %v2200 = vadd.f32 %v2007, %v2199
    %v2201 = vpop.f32.mrb[0].mxu0
    %v2202 = vadd.f32 %v2009, %v2201
    %2203 = vmatprep.mubr.bf16.mxu0 %v749
    %2204 = vmatmul.mubr.bf16.gmra.mrb[0].mxu0 %v748
    %v2205 = vpop.f32.mrb[0].mxu0
    %v2206 = vadd.f32 %v2013, %v2205
    %v2207 = vpop.f32.mrb[0].mxu0
    %v2208 = vadd.f32 %v2015, %v2207
    %v2209 = vpop.f32.mrb[0].mxu0
    %v2210 = vadd.f32 %v2017, %v2209
    %v2211 = vpop.f32.mrb[0].mxu0
    %v2212 = vadd.f32 %v2019, %v2211
    %2213 = vmatprep.mubr.bf16.mxu0 %v753
    %2214 = vmatmul.mubr.bf16.gmra.mrb[0].mxu0 %v752
    %v2215 = vpop.f32.mrb[0].mxu0
    %v2216 = vadd.f32 %v2023, %v2215
    %v2217 = vpop.f32.mrb[0].mxu0
    %v2218 = vadd.f32 %v2025, %v2217
    %v2219 = vpop.f32.mrb[0].mxu0
    %v2220 = vadd.f32 %v2027, %v2219
    %v2221 = vpop.f32.mrb[0].mxu0
    %v2222 = vadd.f32 %v2029, %v2221
    %2223 = vmatprep.mubr.bf16.mxu0 %v757
    %2224 = vmatmul.mubr.bf16.gmra.mrb[0].mxu0 %v756
    %v2225 = vpop.f32.mrb[0].mxu0
    %v2226 = vadd.f32 %v2033, %v2225
    %v2227 = vpop.f32.mrb[0].mxu0
    %v2228 = vadd.f32 %v2035, %v2227
    %v2229 = vpop.f32.mrb[0].mxu0
    %v2230 = vadd.f32 %v2037, %v2229
    %v2231 = vpop.f32.mrb[0].mxu0
    %v2232 = vadd.f32 %v2039, %v2231
    %2233 = vdwg.mxu0
    %v2234 = vadd.f32 %v182, %v1690
    %v2235 = vadd.f32 %v183, %v1692
    %v2236 = vadd.f32 %v184, %v2076
    %v2237 = vadd.f32 %v185, %v2078
    %v2238 = vadd.f32 %v186, %v1694
    %v2239 = vadd.f32 %v187, %v1696
    %v2240 = vadd.f32 %v188, %v2080
    %v2241 = vadd.f32 %v189, %v2082
    %v2242 = vadd.f32 %v190, %v1700
    %v2243 = vadd.f32 %v191, %v1702
    %v2244 = vadd.f32 %v192, %v2086
    %v2245 = vadd.f32 %v193, %v2088
    %v2246 = vadd.f32 %v194, %v1704
    %v2247 = vadd.f32 %v195, %v1706
    %v2248 = vadd.f32 %v196, %v2090
    %v2249 = vadd.f32 %v197, %v2092
    %v2250 = vadd.f32 %v198, %v1710
    %v2251 = vadd.f32 %v199, %v1712
    %v2252 = vadd.f32 %v200, %v2096
    %v2253 = vadd.f32 %v201, %v2098
    %v2254 = vadd.f32 %v202, %v1714
    %v2255 = vadd.f32 %v203, %v1716
    %v2256 = vadd.f32 %v204, %v2100
    %v2257 = vadd.f32 %v205, %v2102
    %v2258 = vadd.f32 %v206, %v1720
    %v2259 = vadd.f32 %v207, %v1722
    %v2260 = vadd.f32 %v208, %v2106
    %v2261 = vadd.f32 %v209, %v2108
    %v2262 = vadd.f32 %v210, %v1724
    %v2263 = vadd.f32 %v211, %v1726
    %v2264 = vadd.f32 %v212, %v2110
    %v2265 = vadd.f32 %v213, %v2112
    %v2266 = vadd.f32 %v214, %v1730
    %v2267 = vadd.f32 %v215, %v1732
    %v2268 = vadd.f32 %v216, %v2116
    %v2269 = vadd.f32 %v217, %v2118
    %v2270 = vadd.f32 %v218, %v1734
    %v2271 = vadd.f32 %v219, %v1736
    %v2272 = vadd.f32 %v220, %v2120
    %v2273 = vadd.f32 %v221, %v2122
    %v2274 = vadd.f32 %v222, %v1740
    %v2275 = vadd.f32 %v223, %v1742
    %v2276 = vadd.f32 %v224, %v2126
    %v2277 = vadd.f32 %v225, %v2128
    %v2278 = vadd.f32 %v226, %v1744
    %v2279 = vadd.f32 %v227, %v1746
    %v2280 = vadd.f32 %v228, %v2130
    %v2281 = vadd.f32 %v229, %v2132
    %v2282 = vadd.f32 %v230, %v1750
    %v2283 = vadd.f32 %v231, %v1752
    %v2284 = vadd.f32 %v232, %v2136
    %v2285 = vadd.f32 %v233, %v2138
    %v2286 = vadd.f32 %v234, %v1754
    %v2287 = vadd.f32 %v235, %v1756
    %v2288 = vadd.f32 %v236, %v2140
    %v2289 = vadd.f32 %v237, %v2142
    %v2290 = vadd.f32 %v238, %v1760
    %v2291 = vadd.f32 %v239, %v1762
    %v2292 = vadd.f32 %v240, %v2146
    %v2293 = vadd.f32 %v241, %v2148
    %v2294 = vadd.f32 %v242, %v1764
    %v2295 = vadd.f32 %v243, %v1766
    %v2296 = vadd.f32 %v244, %v2150
    %v2297 = vadd.f32 %v245, %v2152
    %v2298 = vadd.f32 %v246, %v1770
    %v2299 = vadd.f32 %v247, %v1772
    %v2300 = vadd.f32 %v248, %v2156
    %v2301 = vadd.f32 %v249, %v2158
    %v2302 = vadd.f32 %v250, %v1774
    %v2303 = vadd.f32 %v251, %v1776
    %v2304 = vadd.f32 %v252, %v2160
    %v2305 = vadd.f32 %v253, %v2162
    %v2306 = vadd.f32 %v254, %v1780
    %v2307 = vadd.f32 %v255, %v1782
    %v2308 = vadd.f32 %v256, %v2166
    %v2309 = vadd.f32 %v257, %v2168
    %v2310 = vadd.f32 %v258, %v1784
    %v2311 = vadd.f32 %v259, %v1786
    %v2312 = vadd.f32 %v260, %v2170
    %v2313 = vadd.f32 %v261, %v2172
    %v2314 = vadd.f32 %v262, %v1790
    %v2315 = vadd.f32 %v263, %v1792
    %v2316 = vadd.f32 %v264, %v2176
    %v2317 = vadd.f32 %v265, %v2178
    %v2318 = vadd.f32 %v266, %v1794
    %v2319 = vadd.f32 %v267, %v1796
    %v2320 = vadd.f32 %v268, %v2180
    %v2321 = vadd.f32 %v269, %v2182
    %v2322 = vadd.f32 %v270, %v1800
    %v2323 = vadd.f32 %v271, %v1802
    %v2324 = vadd.f32 %v272, %v2186
    %v2325 = vadd.f32 %v273, %v2188
    %v2326 = vadd.f32 %v274, %v1804
    %v2327 = vadd.f32 %v275, %v1806
    %v2328 = vadd.f32 %v276, %v2190
    %v2329 = vadd.f32 %v277, %v2192
    %v2330 = vadd.f32 %v278, %v1810
    %v2331 = vadd.f32 %v279, %v1812
    %v2332 = vadd.f32 %v280, %v2196
    %v2333 = vadd.f32 %v281, %v2198
    %v2334 = vadd.f32 %v282, %v1814
    %v2335 = vadd.f32 %v283, %v1816
    %v2336 = vadd.f32 %v284, %v2200
    %v2337 = vadd.f32 %v285, %v2202
    %v2338 = vadd.f32 %v286, %v1820
    %v2339 = vadd.f32 %v287, %v1822
    %v2340 = vadd.f32 %v288, %v2206
    %v2341 = vadd.f32 %v289, %v2208
    %v2342 = vadd.f32 %v290, %v1824
    %v2343 = vadd.f32 %v291, %v1826
    %v2344 = vadd.f32 %v292, %v2210
    %v2345 = vadd.f32 %v293, %v2212
    %v2346 = vadd.f32 %v294, %v1830
    %v2347 = vadd.f32 %v295, %v1832
    %v2348 = vadd.f32 %v296, %v2216
    %v2349 = vadd.f32 %v297, %v2218
    %v2350 = vadd.f32 %v298, %v1834
    %v2351 = vadd.f32 %v299, %v1836
    %v2352 = vadd.f32 %v300, %v2220
    %v2353 = vadd.f32 %v301, %v2222
    %v2354 = vadd.f32 %v302, %v1840
    %v2355 = vadd.f32 %v303, %v1842
    %v2356 = vadd.f32 %v304, %v2226
    %v2357 = vadd.f32 %v305, %v2228
    %v2358 = vadd.f32 %v306, %v1844
    %v2359 = vadd.f32 %v307, %v1846
    %v2360 = vadd.f32 %v308, %v2230
    %v2361 = vadd.f32 %v309, %v2232
    %2362 = vst [vmem:[#allocation2] sm:$0xff] %v2234
    %2363 = vst [vmem:[#allocation2 + $0x8] sm:$0xff] %v2235
    %2364 = vst [vmem:[#allocation2 + $0x10] sm:$0xff] %v2236
    %2365 = vst [vmem:[#allocation2 + $0x18] sm:$0xff] %v2237
    %2366 = vst [vmem:[#allocation2 + $0x20] sm:$0xff] %v2238
    %2367 = vst [vmem:[#allocation2 + $0x28] sm:$0xff] %v2239
    %2368 = vst [vmem:[#allocation2 + $0x30] sm:$0xff] %v2240
    %2369 = vst [vmem:[#allocation2 + $0x38] sm:$0xff] %v2241
    %2370 = vst [vmem:[#allocation2 + $0x40] sm:$0xff] %v2242
    %2371 = vst [vmem:[#allocation2 + $0x48] sm:$0xff] %v2243
    %2372 = vst [vmem:[#allocation2 + $0x50] sm:$0xff] %v2244
    %2373 = vst [vmem:[#allocation2 + $0x58] sm:$0xff] %v2245
    %2374 = vst [vmem:[#allocation2 + $0x60] sm:$0xff] %v2246
    %2375 = vst [vmem:[#allocation2 + $0x68] sm:$0xff] %v2247
    %2376 = vst [vmem:[#allocation2 + $0x70] sm:$0xff] %v2248
    %2377 = vst [vmem:[#allocation2 + $0x78] sm:$0xff] %v2249
    %2378 = vst [vmem:[#allocation2 + $0x80] sm:$0xff] %v2250
    %2379 = vst [vmem:[#allocation2 + $0x88] sm:$0xff] %v2251
    %2380 = vst [vmem:[#allocation2 + $0x90] sm:$0xff] %v2252
    %2381 = vst [vmem:[#allocation2 + $0x98] sm:$0xff] %v2253
    %2382 = vst [vmem:[#allocation2 + $0xa0] sm:$0xff] %v2254
    %2383 = vst [vmem:[#allocation2 + $0xa8] sm:$0xff] %v2255
    %2384 = vst [vmem:[#allocation2 + $0xb0] sm:$0xff] %v2256
    %2385 = vst [vmem:[#allocation2 + $0xb8] sm:$0xff] %v2257
    %2386 = vst [vmem:[#allocation2 + $0xc0] sm:$0xff] %v2258
    %2387 = vst [vmem:[#allocation2 + $0xc8] sm:$0xff] %v2259
    %2388 = vst [vmem:[#allocation2 + $0xd0] sm:$0xff] %v2260
    %2389 = vst [vmem:[#allocation2 + $0xd8] sm:$0xff] %v2261
    %2390 = vst [vmem:[#allocation2 + $0xe0] sm:$0xff] %v2262
    %2391 = vst [vmem:[#allocation2 + $0xe8] sm:$0xff] %v2263
    %2392 = vst [vmem:[#allocation2 + $0xf0] sm:$0xff] %v2264
    %2393 = vst [vmem:[#allocation2 + $0xf8] sm:$0xff] %v2265
    %2394 = vst [vmem:[#allocation2 + $0x100] sm:$0xff] %v2266
    %2395 = vst [vmem:[#allocation2 + $0x108] sm:$0xff] %v2267
    %2396 = vst [vmem:[#allocation2 + $0x110] sm:$0xff] %v2268
    %2397 = vst [vmem:[#allocation2 + $0x118] sm:$0xff] %v2269
    %2398 = vst [vmem:[#allocation2 + $0x120] sm:$0xff] %v2270
    %2399 = vst [vmem:[#allocation2 + $0x128] sm:$0xff] %v2271
    %2400 = vst [vmem:[#allocation2 + $0x130] sm:$0xff] %v2272
    %2401 = vst [vmem:[#allocation2 + $0x138] sm:$0xff] %v2273
    %2402 = vst [vmem:[#allocation2 + $0x140] sm:$0xff] %v2274
    %2403 = vst [vmem:[#allocation2 + $0x148] sm:$0xff] %v2275
    %2404 = vst [vmem:[#allocation2 + $0x150] sm:$0xff] %v2276
    %2405 = vst [vmem:[#allocation2 + $0x158] sm:$0xff] %v2277
    %2406 = vst [vmem:[#allocation2 + $0x160] sm:$0xff] %v2278
    %2407 = vst [vmem:[#allocation2 + $0x168] sm:$0xff] %v2279
    %2408 = vst [vmem:[#allocation2 + $0x170] sm:$0xff] %v2280
    %2409 = vst [vmem:[#allocation2 + $0x178] sm:$0xff] %v2281
    %2410 = vst [vmem:[#allocation2 + $0x180] sm:$0xff] %v2282
    %2411 = vst [vmem:[#allocation2 + $0x188] sm:$0xff] %v2283
    %2412 = vst [vmem:[#allocation2 + $0x190] sm:$0xff] %v2284
    %2413 = vst [vmem:[#allocation2 + $0x198] sm:$0xff] %v2285
    %2414 = vst [vmem:[#allocation2 + $0x1a0] sm:$0xff] %v2286
    %2415 = vst [vmem:[#allocation2 + $0x1a8] sm:$0xff] %v2287
    %2416 = vst [vmem:[#allocation2 + $0x1b0] sm:$0xff] %v2288
    %2417 = vst [vmem:[#allocation2 + $0x1b8] sm:$0xff] %v2289
    %2418 = vst [vmem:[#allocation2 + $0x1c0] sm:$0xff] %v2290
    %2419 = vst [vmem:[#allocation2 + $0x1c8] sm:$0xff] %v2291
    %2420 = vst [vmem:[#allocation2 + $0x1d0] sm:$0xff] %v2292
    %2421 = vst [vmem:[#allocation2 + $0x1d8] sm:$0xff] %v2293
    %2422 = vst [vmem:[#allocation2 + $0x1e0] sm:$0xff] %v2294
    %2423 = vst [vmem:[#allocation2 + $0x1e8] sm:$0xff] %v2295
    %2424 = vst [vmem:[#allocation2 + $0x1f0] sm:$0xff] %v2296
    %2425 = vst [vmem:[#allocation2 + $0x1f8] sm:$0xff] %v2297
    %2426 = vst [vmem:[#allocation2 + $0x200] sm:$0xff] %v2298
    %2427 = vst [vmem:[#allocation2 + $0x208] sm:$0xff] %v2299
    %2428 = vst [vmem:[#allocation2 + $0x210] sm:$0xff] %v2300
    %2429 = vst [vmem:[#allocation2 + $0x218] sm:$0xff] %v2301
    %2430 = vst [vmem:[#allocation2 + $0x220] sm:$0xff] %v2302
    %2431 = vst [vmem:[#allocation2 + $0x228] sm:$0xff] %v2303
    %2432 = vst [vmem:[#allocation2 + $0x230] sm:$0xff] %v2304
    %2433 = vst [vmem:[#allocation2 + $0x238] sm:$0xff] %v2305
    %2434 = vst [vmem:[#allocation2 + $0x240] sm:$0xff] %v2306
    %2435 = vst [vmem:[#allocation2 + $0x248] sm:$0xff] %v2307
    %2436 = vst [vmem:[#allocation2 + $0x250] sm:$0xff] %v2308
    %2437 = vst [vmem:[#allocation2 + $0x258] sm:$0xff] %v2309
    %2438 = vst [vmem:[#allocation2 + $0x260] sm:$0xff] %v2310
    %2439 = vst [vmem:[#allocation2 + $0x268] sm:$0xff] %v2311
    %2440 = vst [vmem:[#allocation2 + $0x270] sm:$0xff] %v2312
    %2441 = vst [vmem:[#allocation2 + $0x278] sm:$0xff] %v2313
    %2442 = vst [vmem:[#allocation2 + $0x280] sm:$0xff] %v2314
    %2443 = vst [vmem:[#allocation2 + $0x288] sm:$0xff] %v2315
    %2444 = vst [vmem:[#allocation2 + $0x290] sm:$0xff] %v2316
    %2445 = vst [vmem:[#allocation2 + $0x298] sm:$0xff] %v2317
    %2446 = vst [vmem:[#allocation2 + $0x2a0] sm:$0xff] %v2318
    %2447 = vst [vmem:[#allocation2 + $0x2a8] sm:$0xff] %v2319
    %2448 = vst [vmem:[#allocation2 + $0x2b0] sm:$0xff] %v2320
    %2449 = vst [vmem:[#allocation2 + $0x2b8] sm:$0xff] %v2321
    %2450 = vst [vmem:[#allocation2 + $0x2c0] sm:$0xff] %v2322
    %2451 = vst [vmem:[#allocation2 + $0x2c8] sm:$0xff] %v2323
    %2452 = vst [vmem:[#allocation2 + $0x2d0] sm:$0xff] %v2324
    %2453 = vst [vmem:[#allocation2 + $0x2d8] sm:$0xff] %v2325
    %2454 = vst [vmem:[#allocation2 + $0x2e0] sm:$0xff] %v2326
    %2455 = vst [vmem:[#allocation2 + $0x2e8] sm:$0xff] %v2327
    %2456 = vst [vmem:[#allocation2 + $0x2f0] sm:$0xff] %v2328
    %2457 = vst [vmem:[#allocation2 + $0x2f8] sm:$0xff] %v2329
    %2458 = vst [vmem:[#allocation2 + $0x300] sm:$0xff] %v2330
    %2459 = vst [vmem:[#allocation2 + $0x308] sm:$0xff] %v2331
    %2460 = vst [vmem:[#allocation2 + $0x310] sm:$0xff] %v2332
    %2461 = vst [vmem:[#allocation2 + $0x318] sm:$0xff] %v2333
    %2462 = vst [vmem:[#allocation2 + $0x320] sm:$0xff] %v2334
    %2463 = vst [vmem:[#allocation2 + $0x328] sm:$0xff] %v2335
    %2464 = vst [vmem:[#allocation2 + $0x330] sm:$0xff] %v2336
    %2465 = vst [vmem:[#allocation2 + $0x338] sm:$0xff] %v2337
    %2466 = vst [vmem:[#allocation2 + $0x340] sm:$0xff] %v2338
    %2467 = vst [vmem:[#allocation2 + $0x348] sm:$0xff] %v2339
    %2468 = vst [vmem:[#allocation2 + $0x350] sm:$0xff] %v2340
    %2469 = vst [vmem:[#allocation2 + $0x358] sm:$0xff] %v2341
    %2470 = vst [vmem:[#allocation2 + $0x360] sm:$0xff] %v2342
    %2471 = vst [vmem:[#allocation2 + $0x368] sm:$0xff] %v2343
    %2472 = vst [vmem:[#allocation2 + $0x370] sm:$0xff] %v2344
    %2473 = vst [vmem:[#allocation2 + $0x378] sm:$0xff] %v2345
    %2474 = vst [vmem:[#allocation2 + $0x380] sm:$0xff] %v2346
    %2475 = vst [vmem:[#allocation2 + $0x388] sm:$0xff] %v2347
    %2476 = vst [vmem:[#allocation2 + $0x390] sm:$0xff] %v2348
    %2477 = vst [vmem:[#allocation2 + $0x398] sm:$0xff] %v2349
    %2478 = vst [vmem:[#allocation2 + $0x3a0] sm:$0xff] %v2350
    %2479 = vst [vmem:[#allocation2 + $0x3a8] sm:$0xff] %v2351
    %2480 = vst [vmem:[#allocation2 + $0x3b0] sm:$0xff] %v2352
    %2481 = vst [vmem:[#allocation2 + $0x3b8] sm:$0xff] %v2353
    %2482 = vst [vmem:[#allocation2 + $0x3c0] sm:$0xff] %v2354
    %2483 = vst [vmem:[#allocation2 + $0x3c8] sm:$0xff] %v2355
    %2484 = vst [vmem:[#allocation2 + $0x3d0] sm:$0xff] %v2356
    %2485 = vst [vmem:[#allocation2 + $0x3d8] sm:$0xff] %v2357
    %2486 = vst [vmem:[#allocation2 + $0x3e0] sm:$0xff] %v2358
    %2487 = vst [vmem:[#allocation2 + $0x3e8] sm:$0xff] %v2359
    %2488 = vst [vmem:[#allocation2 + $0x3f0] sm:$0xff] %v2360
    %2489 = vst [vmem:[#allocation2 + $0x3f8] sm:$0xff] %v2361
    // Predicated region
    $region34: #{tpu_custom_call.1} parent=1 // pred_check
      %p2490 = pneg %p50
    $region35: #{tpu_custom_call.1} parent=1 // pred_check_branch
      %2492 = sbr.rel (%p2490) target = $region37
    $region36: #{tpu_custom_call.1} parent=1 // pred_region
      %v2493 = vld [vmem:[%s3] sm:$0xf]
      %v2494 = vld [vmem:[%s3 + $0x4] sm:$0xf]
      %v2495 = vld [vmem:[%s3 + $0x8] sm:$0xf]
      %v2496 = vld [vmem:[%s3 + $0xc] sm:$0xf]
      %v2497 = vld [vmem:[%s3 + $0x10] sm:$0xf]
      %v2498 = vld [vmem:[%s3 + $0x14] sm:$0xf]
      %v2499 = vld [vmem:[%s3 + $0x18] sm:$0xf]
      %v2500 = vld [vmem:[%s3 + $0x1c] sm:$0xf]
      %v2501 = vld [vmem:[%s3 + $0x20] sm:$0xf]
      %v2502 = vld [vmem:[%s3 + $0x24] sm:$0xf]
      %v2503 = vld [vmem:[%s3 + $0x28] sm:$0xf]
      %v2504 = vld [vmem:[%s3 + $0x2c] sm:$0xf]
      %v2505 = vld [vmem:[%s3 + $0x30] sm:$0xf]
      %v2506 = vld [vmem:[%s3 + $0x34] sm:$0xf]
      %v2507 = vld [vmem:[%s3 + $0x38] sm:$0xf]
      %v2508 = vld [vmem:[%s3 + $0x3c] sm:$0xf]
      %v2509 = vld [vmem:[%s3 + $0x40] sm:$0xf]
      %v2510 = vld [vmem:[%s3 + $0x44] sm:$0xf]
      %v2511 = vld [vmem:[%s3 + $0x48] sm:$0xf]
      %v2512 = vld [vmem:[%s3 + $0x4c] sm:$0xf]
      %v2513 = vld [vmem:[%s3 + $0x50] sm:$0xf]
      %v2514 = vld [vmem:[%s3 + $0x54] sm:$0xf]
      %v2515 = vld [vmem:[%s3 + $0x58] sm:$0xf]
      %v2516 = vld [vmem:[%s3 + $0x5c] sm:$0xf]
      %v2517 = vld [vmem:[%s3 + $0x60] sm:$0xf]
      %v2518 = vld [vmem:[%s3 + $0x64] sm:$0xf]
      %v2519 = vld [vmem:[%s3 + $0x68] sm:$0xf]
      %v2520 = vld [vmem:[%s3 + $0x6c] sm:$0xf]
      %v2521 = vld [vmem:[%s3 + $0x70] sm:$0xf]
      %v2522 = vld [vmem:[%s3 + $0x74] sm:$0xf]
      %v2523 = vld [vmem:[%s3 + $0x78] sm:$0xf]
      %v2524 = vld [vmem:[%s3 + $0x7c] sm:$0xf]
      %v2525 = vld [vmem:[%s4] sm:$0xff]
      %v2526 = vld [vmem:[%s4 + $0x8] sm:$0xff]
      %v2527 = vld [vmem:[%s4 + $0x10] sm:$0xff]
      %v2528 = vld [vmem:[%s4 + $0x18] sm:$0xff]
      %v2561 = vunpack.c.l.b16 %v2493
      %v2562 = vunpack.c.l.b16 %v2494
      %v2563 = vunpack.c.l.b16 %v2495
      %v2564 = vunpack.c.l.b16 %v2496
      %v2565 = vunpack.c.l.b16 %v2497
      %v2566 = vunpack.c.l.b16 %v2498
      %v2567 = vunpack.c.l.b16 %v2499
      %v2568 = vunpack.c.l.b16 %v2500
      %v2569 = vunpack.c.l.b16 %v2501
      %v2570 = vunpack.c.l.b16 %v2502
      %v2571 = vunpack.c.l.b16 %v2503
      %v2572 = vunpack.c.l.b16 %v2504
      %v2573 = vunpack.c.l.b16 %v2505
      %v2574 = vunpack.c.l.b16 %v2506
      %v2575 = vunpack.c.l.b16 %v2507
      %v2576 = vunpack.c.l.b16 %v2508
      %v2577 = vunpack.c.l.b16 %v2509
      %v2578 = vunpack.c.l.b16 %v2510
      %v2579 = vunpack.c.l.b16 %v2511
      %v2580 = vunpack.c.l.b16 %v2512
      %v2581 = vunpack.c.l.b16 %v2513
      %v2582 = vunpack.c.l.b16 %v2514
      %v2583 = vunpack.c.l.b16 %v2515
      %v2584 = vunpack.c.l.b16 %v2516
      %v2585 = vunpack.c.l.b16 %v2517
      %v2586 = vunpack.c.l.b16 %v2518
      %v2587 = vunpack.c.l.b16 %v2519
      %v2588 = vunpack.c.l.b16 %v2520
      %v2589 = vunpack.c.l.b16 %v2521
      %v2590 = vunpack.c.l.b16 %v2522
      %v2591 = vunpack.c.l.b16 %v2523
      %v2592 = vunpack.c.l.b16 %v2524
      %v2593 = vpack.c.b16 %v2562, %v2561
      %v2594 = vpack.c.b16 %v2564, %v2563
      %v2595 = vpack.c.b16 %v2566, %v2565
      %v2596 = vpack.c.b16 %v2568, %v2567
      %v2597 = vpack.c.b16 %v2570, %v2569
      %v2598 = vpack.c.b16 %v2572, %v2571
      %v2599 = vpack.c.b16 %v2574, %v2573
      %v2600 = vpack.c.b16 %v2576, %v2575
      %v2601 = vpack.c.b16 %v2578, %v2577
      %v2602 = vpack.c.b16 %v2580, %v2579
      %v2603 = vpack.c.b16 %v2582, %v2581
      %v2604 = vpack.c.b16 %v2584, %v2583
      %v2605 = vpack.c.b16 %v2586, %v2585
      %v2606 = vpack.c.b16 %v2588, %v2587
      %v2607 = vpack.c.b16 %v2590, %v2589
      %v2608 = vpack.c.b16 %v2592, %v2591
      %v2613 = vunpack.c.l.b16 %v2525
      %v2614 = vunpack.c.h.b16 %v2525
      %v2615 = vunpack.c.l.b16 %v2526
      %v2616 = vunpack.c.h.b16 %v2526
      %v2617 = vunpack.c.l.b16 %v2527
      %v2618 = vunpack.c.h.b16 %v2527
      %v2619 = vunpack.c.l.b16 %v2528
      %v2620 = vunpack.c.h.b16 %v2528
      %v2621 = vpack.c.b16 %v2617, %v2613
      %v2622 = vpack.c.b16 %v2618, %v2614
      %v2623 = vpack.c.b16 %v2619, %v2615
      %v2624 = vpack.c.b16 %v2620, %v2616
      %vm2629 = vcmask 130048
      %v2631 = vsel %vm2629, %v2593, 0
      %v2634 = vsel %vm2629, %v2594, 0
      %v2637 = vsel %vm2629, %v2595, 0
      %v2640 = vsel %vm2629, %v2596, 0
      %v2643 = vsel %vm2629, %v2597, 0
      %v2646 = vsel %vm2629, %v2598, 0
      %v2649 = vsel %vm2629, %v2599, 0
      %v2652 = vsel %vm2629, %v2600, 0
      %v2655 = vsel %vm2629, %v2601, 0
      %v2658 = vsel %vm2629, %v2602, 0
      %v2661 = vsel %vm2629, %v2603, 0
      %v2664 = vsel %vm2629, %v2604, 0
      %v2667 = vsel %vm2629, %v2605, 0
      %v2670 = vsel %vm2629, %v2606, 0
      %v2673 = vsel %vm2629, %v2607, 0
      %v2676 = vsel %vm2629, %v2608, 0
      %2678 = vmatprep.subr.bf16.mxu0 %v2622
      %2679 = vmatpush1.bf16.msra.mxu0 %v2621
      %2680 = vmatprep.subr.bf16.mxu0 0
      %2681 = vmatpush1.bf16.msra.mxu0 0
      %2682 = vmatprep.subr.bf16.mxu0 0
      %2683 = vmatpush1.bf16.msra.mxu0 0
      %2684 = vmatprep.subr.bf16.mxu0 0
      %2685 = vmatpush1.bf16.msra.mxu0 0
      %2686 = vmatprep.subr.bf16.mxu0 0
      %2687 = vmatpush1.bf16.msra.mxu0 0
      %2688 = vmatprep.subr.bf16.mxu0 0
      %2689 = vmatpush1.bf16.msra.mxu0 0
      %2690 = vmatprep.subr.bf16.mxu0 0
      %2691 = vmatpush1.bf16.msra.mxu0 0
      %2692 = vmatprep.subr.bf16.mxu0 0
      %2693 = vmatpush1.bf16.msra.mxu0 0
      %2694 = vmatprep.subr.bf16.mxu0 0
      %2695 = vmatpush1.bf16.msra.mxu0 0
      %2696 = vmatprep.subr.bf16.mxu0 0
      %2697 = vmatpush1.bf16.msra.mxu0 0
      %2698 = vmatprep.subr.bf16.mxu0 0
      %2699 = vmatpush1.bf16.msra.mxu0 0
      %2700 = vmatprep.subr.bf16.mxu0 0
      %2701 = vmatpush1.bf16.msra.mxu0 0
      %2702 = vmatprep.subr.bf16.mxu0 0
      %2703 = vmatpush1.bf16.msra.mxu0 0
      %2704 = vmatprep.subr.bf16.mxu0 0
      %2705 = vmatpush1.bf16.msra.mxu0 0
      %2706 = vmatprep.subr.bf16.mxu0 0
      %2707 = vmatpush1.bf16.msra.mxu0 0
      %2708 = vmatprep.subr.bf16.mxu0 0
      %2709 = vmatpush1.bf16.msra.mxu0 0
      %2710 = vmatprep.mubr.bf16.mxu0 0
      %2711 = vmatmul.mubr.bf16.gmra.mrb[0].mxu0 %v2631
      %v2712 = vpop.f32.mrb[0].mxu0
      %v2713 = vadd.f32 0.0, %v2712
      %v2714 = vpop.f32.mrb[0].mxu0
      %v2715 = vadd.f32 0.0, %v2714
      %v2716 = vpop.f32.mrb[0].mxu0
      %v2717 = vadd.f32 0.0, %v2716
      %v2718 = vpop.f32.mrb[0].mxu0
      %v2719 = vadd.f32 0.0, %v2718
      %2720 = vmatprep.mubr.bf16.mxu0 0
      %2721 = vmatmul.mubr.bf16.gmra.mrb[0].mxu0 %v2634
      %v2722 = vpop.f32.mrb[0].mxu0
      %v2723 = vadd.f32 0.0, %v2722
      %v2724 = vpop.f32.mrb[0].mxu0
      %v2725 = vadd.f32 0.0, %v2724
      %v2726 = vpop.f32.mrb[0].mxu0
      %v2727 = vadd.f32 0.0, %v2726
      %v2728 = vpop.f32.mrb[0].mxu0
      %v2729 = vadd.f32 0.0, %v2728
      %2730 = vmatprep.mubr.bf16.mxu0 0
      %2731 = vmatmul.mubr.bf16.gmra.mrb[0].mxu0 %v2637
      %v2732 = vpop.f32.mrb[0].mxu0
      %v2733 = vadd.f32 0.0, %v2732
      %v2734 = vpop.f32.mrb[0].mxu0
      %v2735 = vadd.f32 0.0, %v2734
      %v2736 = vpop.f32.mrb[0].mxu0
      %v2737 = vadd.f32 0.0, %v2736
      %v2738 = vpop.f32.mrb[0].mxu0
      %v2739 = vadd.f32 0.0, %v2738
      %2740 = vmatprep.mubr.bf16.mxu0 0
      %2741 = vmatmul.mubr.bf16.gmra.mrb[0].mxu0 %v2640
      %v2742 = vpop.f32.mrb[0].mxu0
      %v2743 = vadd.f32 0.0, %v2742
      %v2744 = vpop.f32.mrb[0].mxu0
      %v2745 = vadd.f32 0.0, %v2744
      %v2746 = vpop.f32.mrb[0].mxu0
      %v2747 = vadd.f32 0.0, %v2746
      %v2748 = vpop.f32.mrb[0].mxu0
      %v2749 = vadd.f32 0.0, %v2748
      %2750 = vmatprep.mubr.bf16.mxu0 0
      %2751 = vmatmul.mubr.bf16.gmra.mrb[0].mxu0 %v2643
      %v2752 = vpop.f32.mrb[0].mxu0
      %v2753 = vadd.f32 0.0, %v2752
      %v2754 = vpop.f32.mrb[0].mxu0
      %v2755 = vadd.f32 0.0, %v2754
      %v2756 = vpop.f32.mrb[0].mxu0
      %v2757 = vadd.f32 0.0, %v2756
      %v2758 = vpop.f32.mrb[0].mxu0
      %v2759 = vadd.f32 0.0, %v2758
      %2760 = vmatprep.mubr.bf16.mxu0 0
      %2761 = vmatmul.mubr.bf16.gmra.mrb[0].mxu0 %v2646
      %v2762 = vpop.f32.mrb[0].mxu0
      %v2763 = vadd.f32 0.0, %v2762
      %v2764 = vpop.f32.mrb[0].mxu0
      %v2765 = vadd.f32 0.0, %v2764
      %v2766 = vpop.f32.mrb[0].mxu0
      %v2767 = vadd.f32 0.0, %v2766
      %v2768 = vpop.f32.mrb[0].mxu0
      %v2769 = vadd.f32 0.0, %v2768
      %2770 = vmatprep.mubr.bf16.mxu0 0
      %2771 = vmatmul.mubr.bf16.gmra.mrb[0].mxu0 %v2649
      %v2772 = vpop.f32.mrb[0].mxu0
      %v2773 = vadd.f32 0.0, %v2772
      %v2774 = vpop.f32.mrb[0].mxu0
      %v2775 = vadd.f32 0.0, %v2774
      %v2776 = vpop.f32.mrb[0].mxu0
      %v2777 = vadd.f32 0.0, %v2776
      %v2778 = vpop.f32.mrb[0].mxu0
      %v2779 = vadd.f32 0.0, %v2778
      %2780 = vmatprep.mubr.bf16.mxu0 0
      %2781 = vmatmul.mubr.bf16.gmra.mrb[0].mxu0 %v2652
      %v2782 = vpop.f32.mrb[0].mxu0
      %v2783 = vadd.f32 0.0, %v2782
      %v2784 = vpop.f32.mrb[0].mxu0
      %v2785 = vadd.f32 0.0, %v2784
      %v2786 = vpop.f32.mrb[0].mxu0
      %v2787 = vadd.f32 0.0, %v2786
      %v2788 = vpop.f32.mrb[0].mxu0
      %v2789 = vadd.f32 0.0, %v2788
      %2790 = vmatprep.mubr.bf16.mxu0 0
      %2791 = vmatmul.mubr.bf16.gmra.mrb[0].mxu0 %v2655
      %v2792 = vpop.f32.mrb[0].mxu0
      %v2793 = vadd.f32 0.0, %v2792
      %v2794 = vpop.f32.mrb[0].mxu0
      %v2795 = vadd.f32 0.0, %v2794
      %v2796 = vpop.f32.mrb[0].mxu0
      %v2797 = vadd.f32 0.0, %v2796
      %v2798 = vpop.f32.mrb[0].mxu0
      %v2799 = vadd.f32 0.0, %v2798
      %2800 = vmatprep.mubr.bf16.mxu0 0
      %2801 = vmatmul.mubr.bf16.gmra.mrb[0].mxu0 %v2658
      %v2802 = vpop.f32.mrb[0].mxu0
      %v2803 = vadd.f32 0.0, %v2802
      %v2804 = vpop.f32.mrb[0].mxu0
      %v2805 = vadd.f32 0.0, %v2804
      %v2806 = vpop.f32.mrb[0].mxu0
      %v2807 = vadd.f32 0.0, %v2806
      %v2808 = vpop.f32.mrb[0].mxu0
      %v2809 = vadd.f32 0.0, %v2808
      %2810 = vmatprep.mubr.bf16.mxu0 0
      %2811 = vmatmul.mubr.bf16.gmra.mrb[0].mxu0 %v2661
      %v2812 = vpop.f32.mrb[0].mxu0
      %v2813 = vadd.f32 0.0, %v2812
      %v2814 = vpop.f32.mrb[0].mxu0
      %v2815 = vadd.f32 0.0, %v2814
      %v2816 = vpop.f32.mrb[0].mxu0
      %v2817 = vadd.f32 0.0, %v2816
      %v2818 = vpop.f32.mrb[0].mxu0
      %v2819 = vadd.f32 0.0, %v2818
      %2820 = vmatprep.mubr.bf16.mxu0 0
      %2821 = vmatmul.mubr.bf16.gmra.mrb[0].mxu0 %v2664
      %v2822 = vpop.f32.mrb[0].mxu0
      %v2823 = vadd.f32 0.0, %v2822
      %v2824 = vpop.f32.mrb[0].mxu0
      %v2825 = vadd.f32 0.0, %v2824
      %v2826 = vpop.f32.mrb[0].mxu0
      %v2827 = vadd.f32 0.0, %v2826
      %v2828 = vpop.f32.mrb[0].mxu0
      %v2829 = vadd.f32 0.0, %v2828
      %2830 = vmatprep.mubr.bf16.mxu0 0
      %2831 = vmatmul.mubr.bf16.gmra.mrb[0].mxu0 %v2667
      %v2832 = vpop.f32.mrb[0].mxu0
      %v2833 = vadd.f32 0.0, %v2832
      %v2834 = vpop.f32.mrb[0].mxu0
      %v2835 = vadd.f32 0.0, %v2834
      %v2836 = vpop.f32.mrb[0].mxu0
      %v2837 = vadd.f32 0.0, %v2836
      %v2838 = vpop.f32.mrb[0].mxu0
      %v2839 = vadd.f32 0.0, %v2838
      %2840 = vmatprep.mubr.bf16.mxu0 0
      %2841 = vmatmul.mubr.bf16.gmra.mrb[0].mxu0 %v2670
      %v2842 = vpop.f32.mrb[0].mxu0
      %v2843 = vadd.f32 0.0, %v2842
      %v2844 = vpop.f32.mrb[0].mxu0
      %v2845 = vadd.f32 0.0, %v2844
      %v2846 = vpop.f32.mrb[0].mxu0
      %v2847 = vadd.f32 0.0, %v2846
      %v2848 = vpop.f32.mrb[0].mxu0
      %v2849 = vadd.f32 0.0, %v2848
      %2850 = vmatprep.mubr.bf16.mxu0 0
      %2851 = vmatmul.mubr.bf16.gmra.mrb[0].mxu0 %v2673
      %v2852 = vpop.f32.mrb[0].mxu0
      %v2853 = vadd.f32 0.0, %v2852
      %v2854 = vpop.f32.mrb[0].mxu0
      %v2855 = vadd.f32 0.0, %v2854
      %v2856 = vpop.f32.mrb[0].mxu0
      %v2857 = vadd.f32 0.0, %v2856
      %v2858 = vpop.f32.mrb[0].mxu0
      %v2859 = vadd.f32 0.0, %v2858
      %2860 = vmatprep.mubr.bf16.mxu0 0
      %2861 = vmatmul.mubr.bf16.gmra.mrb[0].mxu0 %v2676
      %v2862 = vpop.f32.mrb[0].mxu0
      %v2863 = vadd.f32 0.0, %v2862
      %v2864 = vpop.f32.mrb[0].mxu0
      %v2865 = vadd.f32 0.0, %v2864
      %v2866 = vpop.f32.mrb[0].mxu0
      %v2867 = vadd.f32 0.0, %v2866
      %v2868 = vpop.f32.mrb[0].mxu0
      %v2869 = vadd.f32 0.0, %v2868
      %2870 = vdwg.mxu0
      %2871 = vmatprep.subr.bf16.mxu0 %v2624
      %2872 = vmatpush1.bf16.msra.mxu0 %v2623
      %2873 = vmatprep.subr.bf16.mxu0 0
      %2874 = vmatpush1.bf16.msra.mxu0 0
      %2875 = vmatprep.subr.bf16.mxu0 0
      %2876 = vmatpush1.bf16.msra.mxu0 0
      %2877 = vmatprep.subr.bf16.mxu0 0
      %2878 = vmatpush1.bf16.msra.mxu0 0
      %2879 = vmatprep.subr.bf16.mxu0 0
      %2880 = vmatpush1.bf16.msra.mxu0 0
      %2881 = vmatprep.subr.bf16.mxu0 0
      %2882 = vmatpush1.bf16.msra.mxu0 0
      %2883 = vmatprep.subr.bf16.mxu0 0
      %2884 = vmatpush1.bf16.msra.mxu0 0
      %2885 = vmatprep.subr.bf16.mxu0 0
      %2886 = vmatpush1.bf16.msra.mxu0 0
      %2887 = vmatprep.subr.bf16.mxu0 0
      %2888 = vmatpush1.bf16.msra.mxu0 0
      %2889 = vmatprep.subr.bf16.mxu0 0
      %2890 = vmatpush1.bf16.msra.mxu0 0
      %2891 = vmatprep.subr.bf16.mxu0 0
      %2892 = vmatpush1.bf16.msra.mxu0 0
      %2893 = vmatprep.subr.bf16.mxu0 0
      %2894 = vmatpush1.bf16.msra.mxu0 0
      %2895 = vmatprep.subr.bf16.mxu0 0
      %2896 = vmatpush1.bf16.msra.mxu0 0
      %2897 = vmatprep.subr.bf16.mxu0 0
      %2898 = vmatpush1.bf16.msra.mxu0 0
      %2899 = vmatprep.subr.bf16.mxu0 0
      %2900 = vmatpush1.bf16.msra.mxu0 0
      %2901 = vmatprep.subr.bf16.mxu0 0
      %2902 = vmatpush1.bf16.msra.mxu0 0
      %2903 = vmatprep.mubr.bf16.mxu0 0
      %2904 = vmatmul.mubr.bf16.gmra.mrb[0].mxu0 %v2631
      %v2905 = vpop.f32.mrb[0].mxu0
      %v2906 = vadd.f32 0.0, %v2905
      %v2907 = vpop.f32.mrb[0].mxu0
      %v2908 = vadd.f32 0.0, %v2907
      %v2909 = vpop.f32.mrb[0].mxu0
      %v2910 = vadd.f32 0.0, %v2909
      %v2911 = vpop.f32.mrb[0].mxu0
      %v2912 = vadd.f32 0.0, %v2911
      %2913 = vmatprep.mubr.bf16.mxu0 0
      %2914 = vmatmul.mubr.bf16.gmra.mrb[0].mxu0 %v2634
      %v2915 = vpop.f32.mrb[0].mxu0
      %v2916 = vadd.f32 0.0, %v2915
      %v2917 = vpop.f32.mrb[0].mxu0
      %v2918 = vadd.f32 0.0, %v2917
      %v2919 = vpop.f32.mrb[0].mxu0
      %v2920 = vadd.f32 0.0, %v2919
      %v2921 = vpop.f32.mrb[0].mxu0
      %v2922 = vadd.f32 0.0, %v2921
      %2923 = vmatprep.mubr.bf16.mxu0 0
      %2924 = vmatmul.mubr.bf16.gmra.mrb[0].mxu0 %v2637
      %v2925 = vpop.f32.mrb[0].mxu0
      %v2926 = vadd.f32 0.0, %v2925
      %v2927 = vpop.f32.mrb[0].mxu0
      %v2928 = vadd.f32 0.0, %v2927
      %v2929 = vpop.f32.mrb[0].mxu0
      %v2930 = vadd.f32 0.0, %v2929
      %v2931 = vpop.f32.mrb[0].mxu0
      %v2932 = vadd.f32 0.0, %v2931
      %2933 = vmatprep.mubr.bf16.mxu0 0
      %2934 = vmatmul.mubr.bf16.gmra.mrb[0].mxu0 %v2640
      %v2935 = vpop.f32.mrb[0].mxu0
      %v2936 = vadd.f32 0.0, %v2935
      %v2937 = vpop.f32.mrb[0].mxu0
      %v2938 = vadd.f32 0.0, %v2937
      %v2939 = vpop.f32.mrb[0].mxu0
      %v2940 = vadd.f32 0.0, %v2939
      %v2941 = vpop.f32.mrb[0].mxu0
      %v2942 = vadd.f32 0.0, %v2941
      %2943 = vmatprep.mubr.bf16.mxu0 0
      %2944 = vmatmul.mubr.bf16.gmra.mrb[0].mxu0 %v2643
      %v2945 = vpop.f32.mrb[0].mxu0
      %v2946 = vadd.f32 0.0, %v2945
      %v2947 = vpop.f32.mrb[0].mxu0
      %v2948 = vadd.f32 0.0, %v2947
      %v2949 = vpop.f32.mrb[0].mxu0
      %v2950 = vadd.f32 0.0, %v2949
      %v2951 = vpop.f32.mrb[0].mxu0
      %v2952 = vadd.f32 0.0, %v2951
      %2953 = vmatprep.mubr.bf16.mxu0 0
      %2954 = vmatmul.mubr.bf16.gmra.mrb[0].mxu0 %v2646
      %v2955 = vpop.f32.mrb[0].mxu0
      %v2956 = vadd.f32 0.0, %v2955
      %v2957 = vpop.f32.mrb[0].mxu0
      %v2958 = vadd.f32 0.0, %v2957
      %v2959 = vpop.f32.mrb[0].mxu0
      %v2960 = vadd.f32 0.0, %v2959
      %v2961 = vpop.f32.mrb[0].mxu0
      %v2962 = vadd.f32 0.0, %v2961
      %2963 = vmatprep.mubr.bf16.mxu0 0
      %2964 = vmatmul.mubr.bf16.gmra.mrb[0].mxu0 %v2649
      %v2965 = vpop.f32.mrb[0].mxu0
      %v2966 = vadd.f32 0.0, %v2965
      %v2967 = vpop.f32.mrb[0].mxu0
      %v2968 = vadd.f32 0.0, %v2967
      %v2969 = vpop.f32.mrb[0].mxu0
      %v2970 = vadd.f32 0.0, %v2969
      %v2971 = vpop.f32.mrb[0].mxu0
      %v2972 = vadd.f32 0.0, %v2971
      %2973 = vmatprep.mubr.bf16.mxu0 0
      %2974 = vmatmul.mubr.bf16.gmra.mrb[0].mxu0 %v2652
      %v2975 = vpop.f32.mrb[0].mxu0
      %v2976 = vadd.f32 0.0, %v2975
      %v2977 = vpop.f32.mrb[0].mxu0
      %v2978 = vadd.f32 0.0, %v2977
      %v2979 = vpop.f32.mrb[0].mxu0
      %v2980 = vadd.f32 0.0, %v2979
      %v2981 = vpop.f32.mrb[0].mxu0
      %v2982 = vadd.f32 0.0, %v2981
      %2983 = vmatprep.mubr.bf16.mxu0 0
      %2984 = vmatmul.mubr.bf16.gmra.mrb[0].mxu0 %v2655
      %v2985 = vpop.f32.mrb[0].mxu0
      %v2986 = vadd.f32 0.0, %v2985
      %v2987 = vpop.f32.mrb[0].mxu0
      %v2988 = vadd.f32 0.0, %v2987
      %v2989 = vpop.f32.mrb[0].mxu0
      %v2990 = vadd.f32 0.0, %v2989
      %v2991 = vpop.f32.mrb[0].mxu0
      %v2992 = vadd.f32 0.0, %v2991
      %2993 = vmatprep.mubr.bf16.mxu0 0
      %2994 = vmatmul.mubr.bf16.gmra.mrb[0].mxu0 %v2658
      %v2995 = vpop.f32.mrb[0].mxu0
      %v2996 = vadd.f32 0.0, %v2995
      %v2997 = vpop.f32.mrb[0].mxu0
      %v2998 = vadd.f32 0.0, %v2997
      %v2999 = vpop.f32.mrb[0].mxu0
      %v3000 = vadd.f32 0.0, %v2999
      %v3001 = vpop.f32.mrb[0].mxu0
      %v3002 = vadd.f32 0.0, %v3001
      %3003 = vmatprep.mubr.bf16.mxu0 0
      %3004 = vmatmul.mubr.bf16.gmra.mrb[0].mxu0 %v2661
      %v3005 = vpop.f32.mrb[0].mxu0
      %v3006 = vadd.f32 0.0, %v3005
      %v3007 = vpop.f32.mrb[0].mxu0
      %v3008 = vadd.f32 0.0, %v3007
      %v3009 = vpop.f32.mrb[0].mxu0
      %v3010 = vadd.f32 0.0, %v3009
      %v3011 = vpop.f32.mrb[0].mxu0
      %v3012 = vadd.f32 0.0, %v3011
      %3013 = vmatprep.mubr.bf16.mxu0 0
      %3014 = vmatmul.mubr.bf16.gmra.mrb[0].mxu0 %v2664
      %v3015 = vpop.f32.mrb[0].mxu0
      %v3016 = vadd.f32 0.0, %v3015
      %v3017 = vpop.f32.mrb[0].mxu0
      %v3018 = vadd.f32 0.0, %v3017
      %v3019 = vpop.f32.mrb[0].mxu0
      %v3020 = vadd.f32 0.0, %v3019
      %v3021 = vpop.f32.mrb[0].mxu0
      %v3022 = vadd.f32 0.0, %v3021
      %3023 = vmatprep.mubr.bf16.mxu0 0
      %3024 = vmatmul.mubr.bf16.gmra.mrb[0].mxu0 %v2667
      %v3025 = vpop.f32.mrb[0].mxu0
      %v3026 = vadd.f32 0.0, %v3025
      %v3027 = vpop.f32.mrb[0].mxu0
      %v3028 = vadd.f32 0.0, %v3027
      %v3029 = vpop.f32.mrb[0].mxu0
      %v3030 = vadd.f32 0.0, %v3029
      %v3031 = vpop.f32.mrb[0].mxu0
      %v3032 = vadd.f32 0.0, %v3031
      %3033 = vmatprep.mubr.bf16.mxu0 0
      %3034 = vmatmul.mubr.bf16.gmra.mrb[0].mxu0 %v2670
      %v3035 = vpop.f32.mrb[0].mxu0
      %v3036 = vadd.f32 0.0, %v3035
      %v3037 = vpop.f32.mrb[0].mxu0
      %v3038 = vadd.f32 0.0, %v3037
      %v3039 = vpop.f32.mrb[0].mxu0
      %v3040 = vadd.f32 0.0, %v3039
      %v3041 = vpop.f32.mrb[0].mxu0
      %v3042 = vadd.f32 0.0, %v3041
      %3043 = vmatprep.mubr.bf16.mxu0 0
      %3044 = vmatmul.mubr.bf16.gmra.mrb[0].mxu0 %v2673
      %v3045 = vpop.f32.mrb[0].mxu0
      %v3046 = vadd.f32 0.0, %v3045
      %v3047 = vpop.f32.mrb[0].mxu0
      %v3048 = vadd.f32 0.0, %v3047
      %v3049 = vpop.f32.mrb[0].mxu0
      %v3050 = vadd.f32 0.0, %v3049
      %v3051 = vpop.f32.mrb[0].mxu0
      %v3052 = vadd.f32 0.0, %v3051
      %3053 = vmatprep.mubr.bf16.mxu0 0
      %3054 = vmatmul.mubr.bf16.gmra.mrb[0].mxu0 %v2676
      %v3055 = vpop.f32.mrb[0].mxu0
      %v3056 = vadd.f32 0.0, %v3055
      %v3057 = vpop.f32.mrb[0].mxu0
      %v3058 = vadd.f32 0.0, %v3057
      %v3059 = vpop.f32.mrb[0].mxu0
      %v3060 = vadd.f32 0.0, %v3059
      %v3061 = vpop.f32.mrb[0].mxu0
      %v3062 = vadd.f32 0.0, %v3061
      %3063 = vdwg.mxu0
      %v3064 = vld [vmem:[#allocation2] sm:$0xff]
      %v3065 = vld [vmem:[#allocation2 + $0x8] sm:$0xff]
      %v3066 = vld [vmem:[#allocation2 + $0x10] sm:$0xff]
      %v3067 = vld [vmem:[#allocation2 + $0x18] sm:$0xff]
      %v3068 = vld [vmem:[#allocation2 + $0x20] sm:$0xff]
      %v3069 = vld [vmem:[#allocation2 + $0x28] sm:$0xff]
      %v3070 = vld [vmem:[#allocation2 + $0x30] sm:$0xff]
      %v3071 = vld [vmem:[#allocation2 + $0x38] sm:$0xff]
      %v3072 = vld [vmem:[#allocation2 + $0x40] sm:$0xff]
      %v3073 = vld [vmem:[#allocation2 + $0x48] sm:$0xff]
      %v3074 = vld [vmem:[#allocation2 + $0x50] sm:$0xff]
      %v3075 = vld [vmem:[#allocation2 + $0x58] sm:$0xff]
      %v3076 = vld [vmem:[#allocation2 + $0x60] sm:$0xff]
      %v3077 = vld [vmem:[#allocation2 + $0x68] sm:$0xff]
      %v3078 = vld [vmem:[#allocation2 + $0x70] sm:$0xff]
      %v3079 = vld [vmem:[#allocation2 + $0x78] sm:$0xff]
      %v3080 = vld [vmem:[#allocation2 + $0x80] sm:$0xff]
      %v3081 = vld [vmem:[#allocation2 + $0x88] sm:$0xff]
      %v3082 = vld [vmem:[#allocation2 + $0x90] sm:$0xff]
      %v3083 = vld [vmem:[#allocation2 + $0x98] sm:$0xff]
      %v3084 = vld [vmem:[#allocation2 + $0xa0] sm:$0xff]
      %v3085 = vld [vmem:[#allocation2 + $0xa8] sm:$0xff]
      %v3086 = vld [vmem:[#allocation2 + $0xb0] sm:$0xff]
      %v3087 = vld [vmem:[#allocation2 + $0xb8] sm:$0xff]
      %v3088 = vld [vmem:[#allocation2 + $0xc0] sm:$0xff]
      %v3089 = vld [vmem:[#allocation2 + $0xc8] sm:$0xff]
      %v3090 = vld [vmem:[#allocation2 + $0xd0] sm:$0xff]
      %v3091 = vld [vmem:[#allocation2 + $0xd8] sm:$0xff]
      %v3092 = vld [vmem:[#allocation2 + $0xe0] sm:$0xff]
      %v3093 = vld [vmem:[#allocation2 + $0xe8] sm:$0xff]
      %v3094 = vld [vmem:[#allocation2 + $0xf0] sm:$0xff]
      %v3095 = vld [vmem:[#allocation2 + $0xf8] sm:$0xff]
      %v3096 = vld [vmem:[#allocation2 + $0x100] sm:$0xff]
      %v3097 = vld [vmem:[#allocation2 + $0x108] sm:$0xff]
      %v3098 = vld [vmem:[#allocation2 + $0x110] sm:$0xff]
      %v3099 = vld [vmem:[#allocation2 + $0x118] sm:$0xff]
      %v3100 = vld [vmem:[#allocation2 + $0x120] sm:$0xff]
      %v3101 = vld [vmem:[#allocation2 + $0x128] sm:$0xff]
      %v3102 = vld [vmem:[#allocation2 + $0x130] sm:$0xff]
      %v3103 = vld [vmem:[#allocation2 + $0x138] sm:$0xff]
      %v3104 = vld [vmem:[#allocation2 + $0x140] sm:$0xff]
      %v3105 = vld [vmem:[#allocation2 + $0x148] sm:$0xff]
      %v3106 = vld [vmem:[#allocation2 + $0x150] sm:$0xff]
      %v3107 = vld [vmem:[#allocation2 + $0x158] sm:$0xff]
      %v3108 = vld [vmem:[#allocation2 + $0x160] sm:$0xff]
      %v3109 = vld [vmem:[#allocation2 + $0x168] sm:$0xff]
      %v3110 = vld [vmem:[#allocation2 + $0x170] sm:$0xff]
      %v3111 = vld [vmem:[#allocation2 + $0x178] sm:$0xff]
      %v3112 = vld [vmem:[#allocation2 + $0x180] sm:$0xff]
      %v3113 = vld [vmem:[#allocation2 + $0x188] sm:$0xff]
      %v3114 = vld [vmem:[#allocation2 + $0x190] sm:$0xff]
      %v3115 = vld [vmem:[#allocation2 + $0x198] sm:$0xff]
      %v3116 = vld [vmem:[#allocation2 + $0x1a0] sm:$0xff]
      %v3117 = vld [vmem:[#allocation2 + $0x1a8] sm:$0xff]
      %v3118 = vld [vmem:[#allocation2 + $0x1b0] sm:$0xff]
      %v3119 = vld [vmem:[#allocation2 + $0x1b8] sm:$0xff]
      %v3120 = vld [vmem:[#allocation2 + $0x1c0] sm:$0xff]
      %v3121 = vld [vmem:[#allocation2 + $0x1c8] sm:$0xff]
      %v3122 = vld [vmem:[#allocation2 + $0x1d0] sm:$0xff]
      %v3123 = vld [vmem:[#allocation2 + $0x1d8] sm:$0xff]
      %v3124 = vld [vmem:[#allocation2 + $0x1e0] sm:$0xff]
      %v3125 = vld [vmem:[#allocation2 + $0x1e8] sm:$0xff]
      %v3126 = vld [vmem:[#allocation2 + $0x1f0] sm:$0xff]
      %v3127 = vld [vmem:[#allocation2 + $0x1f8] sm:$0xff]
      %v3128 = vld [vmem:[#allocation2 + $0x200] sm:$0xff]
      %v3129 = vld [vmem:[#allocation2 + $0x208] sm:$0xff]
      %v3130 = vld [vmem:[#allocation2 + $0x210] sm:$0xff]
      %v3131 = vld [vmem:[#allocation2 + $0x218] sm:$0xff]
      %v3132 = vld [vmem:[#allocation2 + $0x220] sm:$0xff]
      %v3133 = vld [vmem:[#allocation2 + $0x228] sm:$0xff]
      %v3134 = vld [vmem:[#allocation2 + $0x230] sm:$0xff]
      %v3135 = vld [vmem:[#allocation2 + $0x238] sm:$0xff]
      %v3136 = vld [vmem:[#allocation2 + $0x240] sm:$0xff]
      %v3137 = vld [vmem:[#allocation2 + $0x248] sm:$0xff]
      %v3138 = vld [vmem:[#allocation2 + $0x250] sm:$0xff]
      %v3139 = vld [vmem:[#allocation2 + $0x258] sm:$0xff]
      %v3140 = vld [vmem:[#allocation2 + $0x260] sm:$0xff]
      %v3141 = vld [vmem:[#allocation2 + $0x268] sm:$0xff]
      %v3142 = vld [vmem:[#allocation2 + $0x270] sm:$0xff]
      %v3143 = vld [vmem:[#allocation2 + $0x278] sm:$0xff]
      %v3144 = vld [vmem:[#allocation2 + $0x280] sm:$0xff]
      %v3145 = vld [vmem:[#allocation2 + $0x288] sm:$0xff]
      %v3146 = vld [vmem:[#allocation2 + $0x290] sm:$0xff]
      %v3147 = vld [vmem:[#allocation2 + $0x298] sm:$0xff]
      %v3148 = vld [vmem:[#allocation2 + $0x2a0] sm:$0xff]
      %v3149 = vld [vmem:[#allocation2 + $0x2a8] sm:$0xff]
      %v3150 = vld [vmem:[#allocation2 + $0x2b0] sm:$0xff]
      %v3151 = vld [vmem:[#allocation2 + $0x2b8] sm:$0xff]
      %v3152 = vld [vmem:[#allocation2 + $0x2c0] sm:$0xff]
      %v3153 = vld [vmem:[#allocation2 + $0x2c8] sm:$0xff]
      %v3154 = vld [vmem:[#allocation2 + $0x2d0] sm:$0xff]
      %v3155 = vld [vmem:[#allocation2 + $0x2d8] sm:$0xff]
      %v3156 = vld [vmem:[#allocation2 + $0x2e0] sm:$0xff]
      %v3157 = vld [vmem:[#allocation2 + $0x2e8] sm:$0xff]
      %v3158 = vld [vmem:[#allocation2 + $0x2f0] sm:$0xff]
      %v3159 = vld [vmem:[#allocation2 + $0x2f8] sm:$0xff]
      %v3160 = vld [vmem:[#allocation2 + $0x300] sm:$0xff]
      %v3161 = vld [vmem:[#allocation2 + $0x308] sm:$0xff]
      %v3162 = vld [vmem:[#allocation2 + $0x310] sm:$0xff]
      %v3163 = vld [vmem:[#allocation2 + $0x318] sm:$0xff]
      %v3164 = vld [vmem:[#allocation2 + $0x320] sm:$0xff]
      %v3165 = vld [vmem:[#allocation2 + $0x328] sm:$0xff]
      %v3166 = vld [vmem:[#allocation2 + $0x330] sm:$0xff]
      %v3167 = vld [vmem:[#allocation2 + $0x338] sm:$0xff]
      %v3168 = vld [vmem:[#allocation2 + $0x340] sm:$0xff]
      %v3169 = vld [vmem:[#allocation2 + $0x348] sm:$0xff]
      %v3170 = vld [vmem:[#allocation2 + $0x350] sm:$0xff]
      %v3171 = vld [vmem:[#allocation2 + $0x358] sm:$0xff]
      %v3172 = vld [vmem:[#allocation2 + $0x360] sm:$0xff]
      %v3173 = vld [vmem:[#allocation2 + $0x368] sm:$0xff]
      %v3174 = vld [vmem:[#allocation2 + $0x370] sm:$0xff]
      %v3175 = vld [vmem:[#allocation2 + $0x378] sm:$0xff]
      %v3176 = vld [vmem:[#allocation2 + $0x380] sm:$0xff]
      %v3177 = vld [vmem:[#allocation2 + $0x388] sm:$0xff]
      %v3178 = vld [vmem:[#allocation2 + $0x390] sm:$0xff]
      %v3179 = vld [vmem:[#allocation2 + $0x398] sm:$0xff]
      %v3180 = vld [vmem:[#allocation2 + $0x3a0] sm:$0xff]
      %v3181 = vld [vmem:[#allocation2 + $0x3a8] sm:$0xff]
      %v3182 = vld [vmem:[#allocation2 + $0x3b0] sm:$0xff]
      %v3183 = vld [vmem:[#allocation2 + $0x3b8] sm:$0xff]
      %v3184 = vld [vmem:[#allocation2 + $0x3c0] sm:$0xff]
      %v3185 = vld [vmem:[#allocation2 + $0x3c8] sm:$0xff]
      %v3186 = vld [vmem:[#allocation2 + $0x3d0] sm:$0xff]
      %v3187 = vld [vmem:[#allocation2 + $0x3d8] sm:$0xff]
      %v3188 = vld [vmem:[#allocation2 + $0x3e0] sm:$0xff]
      %v3189 = vld [vmem:[#allocation2 + $0x3e8] sm:$0xff]
      %v3190 = vld [vmem:[#allocation2 + $0x3f0] sm:$0xff]
      %v3191 = vld [vmem:[#allocation2 + $0x3f8] sm:$0xff]
      %v3192 = vld [vmem:[%s2] sm:$0xf]
      %v3194 = vlaneseq
      %v3195 = vshrl.u32 %v3194, 7
      %v3196 = vsub.s32 0, %v3195
      %v3197 = vrot.slane %v3192, %v3196
      %v3198 = vlaneseq
      %v3199 = vshrl.u32 %v3198, 7
      %v3200 = vsub.s32 1, %v3199
      %v3201 = vrot.slane %v3192, %v3200
      %v3202 = vlaneseq
      %v3203 = vshrl.u32 %v3202, 7
      %v3204 = vsub.s32 2, %v3203
      %v3205 = vrot.slane %v3192, %v3204
      %v3206 = vlaneseq
      %v3207 = vshrl.u32 %v3206, 7
      %v3208 = vsub.s32 3, %v3207
      %v3209 = vrot.slane %v3192, %v3208
      %v3214 = vadd.f32 %v3064, %v3197
      %v3215 = vadd.f32 %v3065, %v3201
      %v3216 = vadd.f32 %v3066, %v3205
      %v3217 = vadd.f32 %v3067, %v3209
      %v3218 = vadd.f32 %v3068, %v3197
      %v3219 = vadd.f32 %v3069, %v3201
      %v3220 = vadd.f32 %v3070, %v3205
      %v3221 = vadd.f32 %v3071, %v3209
      %v3222 = vadd.f32 %v3072, %v3197
      %v3223 = vadd.f32 %v3073, %v3201
      %v3224 = vadd.f32 %v3074, %v3205
      %v3225 = vadd.f32 %v3075, %v3209
      %v3226 = vadd.f32 %v3076, %v3197
      %v3227 = vadd.f32 %v3077, %v3201
      %v3228 = vadd.f32 %v3078, %v3205
      %v3229 = vadd.f32 %v3079, %v3209
      %v3230 = vadd.f32 %v3080, %v3197
      %v3231 = vadd.f32 %v3081, %v3201
      %v3232 = vadd.f32 %v3082, %v3205
      %v3233 = vadd.f32 %v3083, %v3209
      %v3234 = vadd.f32 %v3084, %v3197
      %v3235 = vadd.f32 %v3085, %v3201
      %v3236 = vadd.f32 %v3086, %v3205
      %v3237 = vadd.f32 %v3087, %v3209
      %v3238 = vadd.f32 %v3088, %v3197
      %v3239 = vadd.f32 %v3089, %v3201
      %v3240 = vadd.f32 %v3090, %v3205
      %v3241 = vadd.f32 %v3091, %v3209
      %v3242 = vadd.f32 %v3092, %v3197
      %v3243 = vadd.f32 %v3093, %v3201
      %v3244 = vadd.f32 %v3094, %v3205
      %v3245 = vadd.f32 %v3095, %v3209
      %v3246 = vadd.f32 %v3096, %v3197
      %v3247 = vadd.f32 %v3097, %v3201
      %v3248 = vadd.f32 %v3098, %v3205
      %v3249 = vadd.f32 %v3099, %v3209
      %v3250 = vadd.f32 %v3100, %v3197
      %v3251 = vadd.f32 %v3101, %v3201
      %v3252 = vadd.f32 %v3102, %v3205
      %v3253 = vadd.f32 %v3103, %v3209
      %v3254 = vadd.f32 %v3104, %v3197
      %v3255 = vadd.f32 %v3105, %v3201
      %v3256 = vadd.f32 %v3106, %v3205
      %v3257 = vadd.f32 %v3107, %v3209
      %v3258 = vadd.f32 %v3108, %v3197
      %v3259 = vadd.f32 %v3109, %v3201
      %v3260 = vadd.f32 %v3110, %v3205
      %v3261 = vadd.f32 %v3111, %v3209
      %v3262 = vadd.f32 %v3112, %v3197
      %v3263 = vadd.f32 %v3113, %v3201
      %v3264 = vadd.f32 %v3114, %v3205
      %v3265 = vadd.f32 %v3115, %v3209
      %v3266 = vadd.f32 %v3116, %v3197
      %v3267 = vadd.f32 %v3117, %v3201
      %v3268 = vadd.f32 %v3118, %v3205
      %v3269 = vadd.f32 %v3119, %v3209
      %v3270 = vadd.f32 %v3120, %v3197
      %v3271 = vadd.f32 %v3121, %v3201
      %v3272 = vadd.f32 %v3122, %v3205
      %v3273 = vadd.f32 %v3123, %v3209
      %v3274 = vadd.f32 %v3124, %v3197
      %v3275 = vadd.f32 %v3125, %v3201
      %v3276 = vadd.f32 %v3126, %v3205
      %v3277 = vadd.f32 %v3127, %v3209
      %v3278 = vadd.f32 %v3128, %v3197
      %v3279 = vadd.f32 %v3129, %v3201
      %v3280 = vadd.f32 %v3130, %v3205
      %v3281 = vadd.f32 %v3131, %v3209
      %v3282 = vadd.f32 %v3132, %v3197
      %v3283 = vadd.f32 %v3133, %v3201
      %v3284 = vadd.f32 %v3134, %v3205
      %v3285 = vadd.f32 %v3135, %v3209
      %v3286 = vadd.f32 %v3136, %v3197
      %v3287 = vadd.f32 %v3137, %v3201
      %v3288 = vadd.f32 %v3138, %v3205
      %v3289 = vadd.f32 %v3139, %v3209
      %v3290 = vadd.f32 %v3140, %v3197
      %v3291 = vadd.f32 %v3141, %v3201
      %v3292 = vadd.f32 %v3142, %v3205
      %v3293 = vadd.f32 %v3143, %v3209
      %v3294 = vadd.f32 %v3144, %v3197
      %v3295 = vadd.f32 %v3145, %v3201
      %v3296 = vadd.f32 %v3146, %v3205
      %v3297 = vadd.f32 %v3147, %v3209
      %v3298 = vadd.f32 %v3148, %v3197
      %v3299 = vadd.f32 %v3149, %v3201
      %v3300 = vadd.f32 %v3150, %v3205
      %v3301 = vadd.f32 %v3151, %v3209
      %v3302 = vadd.f32 %v3152, %v3197
      %v3303 = vadd.f32 %v3153, %v3201
      %v3304 = vadd.f32 %v3154, %v3205
      %v3305 = vadd.f32 %v3155, %v3209
      %v3306 = vadd.f32 %v3156, %v3197
      %v3307 = vadd.f32 %v3157, %v3201
      %v3308 = vadd.f32 %v3158, %v3205
      %v3309 = vadd.f32 %v3159, %v3209
      %v3310 = vadd.f32 %v3160, %v3197
      %v3311 = vadd.f32 %v3161, %v3201
      %v3312 = vadd.f32 %v3162, %v3205
      %v3313 = vadd.f32 %v3163, %v3209
      %v3314 = vadd.f32 %v3164, %v3197
      %v3315 = vadd.f32 %v3165, %v3201
      %v3316 = vadd.f32 %v3166, %v3205
      %v3317 = vadd.f32 %v3167, %v3209
      %v3318 = vadd.f32 %v3168, %v3197
      %v3319 = vadd.f32 %v3169, %v3201
      %v3320 = vadd.f32 %v3170, %v3205
      %v3321 = vadd.f32 %v3171, %v3209
      %v3322 = vadd.f32 %v3172, %v3197
      %v3323 = vadd.f32 %v3173, %v3201
      %v3324 = vadd.f32 %v3174, %v3205
      %v3325 = vadd.f32 %v3175, %v3209
      %v3326 = vadd.f32 %v3176, %v3197
      %v3327 = vadd.f32 %v3177, %v3201
      %v3328 = vadd.f32 %v3178, %v3205
      %v3329 = vadd.f32 %v3179, %v3209
      %v3330 = vadd.f32 %v3180, %v3197
      %v3331 = vadd.f32 %v3181, %v3201
      %v3332 = vadd.f32 %v3182, %v3205
      %v3333 = vadd.f32 %v3183, %v3209
      %v3334 = vadd.f32 %v3184, %v3197
      %v3335 = vadd.f32 %v3185, %v3201
      %v3336 = vadd.f32 %v3186, %v3205
      %v3337 = vadd.f32 %v3187, %v3209
      %v3338 = vadd.f32 %v3188, %v3197
      %v3339 = vadd.f32 %v3189, %v3201
      %v3340 = vadd.f32 %v3190, %v3205
      %v3341 = vadd.f32 %v3191, %v3209
      %v3342 = vadd.f32 %v3214, %v2713
      %v3343 = vadd.f32 %v3215, %v2715
      %v3344 = vadd.f32 %v3216, %v2906
      %v3345 = vadd.f32 %v3217, %v2908
      %v3346 = vadd.f32 %v3218, %v2717
      %v3347 = vadd.f32 %v3219, %v2719
      %v3348 = vadd.f32 %v3220, %v2910
      %v3349 = vadd.f32 %v3221, %v2912
      %v3350 = vadd.f32 %v3222, %v2723
      %v3351 = vadd.f32 %v3223, %v2725
      %v3352 = vadd.f32 %v3224, %v2916
      %v3353 = vadd.f32 %v3225, %v2918
      %v3354 = vadd.f32 %v3226, %v2727
      %v3355 = vadd.f32 %v3227, %v2729
      %v3356 = vadd.f32 %v3228, %v2920
      %v3357 = vadd.f32 %v3229, %v2922
      %v3358 = vadd.f32 %v3230, %v2733
      %v3359 = vadd.f32 %v3231, %v2735
      %v3360 = vadd.f32 %v3232, %v2926
      %v3361 = vadd.f32 %v3233, %v2928
      %v3362 = vadd.f32 %v3234, %v2737
      %v3363 = vadd.f32 %v3235, %v2739
      %v3364 = vadd.f32 %v3236, %v2930
      %v3365 = vadd.f32 %v3237, %v2932
      %v3366 = vadd.f32 %v3238, %v2743
      %v3367 = vadd.f32 %v3239, %v2745
      %v3368 = vadd.f32 %v3240, %v2936
      %v3369 = vadd.f32 %v3241, %v2938
      %v3370 = vadd.f32 %v3242, %v2747
      %v3371 = vadd.f32 %v3243, %v2749
      %v3372 = vadd.f32 %v3244, %v2940
      %v3373 = vadd.f32 %v3245, %v2942
      %v3374 = vadd.f32 %v3246, %v2753
      %v3375 = vadd.f32 %v3247, %v2755
      %v3376 = vadd.f32 %v3248, %v2946
      %v3377 = vadd.f32 %v3249, %v2948
      %v3378 = vadd.f32 %v3250, %v2757
      %v3379 = vadd.f32 %v3251, %v2759
      %v3380 = vadd.f32 %v3252, %v2950
      %v3381 = vadd.f32 %v3253, %v2952
      %v3382 = vadd.f32 %v3254, %v2763
      %v3383 = vadd.f32 %v3255, %v2765
      %v3384 = vadd.f32 %v3256, %v2956
      %v3385 = vadd.f32 %v3257, %v2958
      %v3386 = vadd.f32 %v3258, %v2767
      %v3387 = vadd.f32 %v3259, %v2769
      %v3388 = vadd.f32 %v3260, %v2960
      %v3389 = vadd.f32 %v3261, %v2962
      %v3390 = vadd.f32 %v3262, %v2773
      %v3391 = vadd.f32 %v3263, %v2775
      %v3392 = vadd.f32 %v3264, %v2966
      %v3393 = vadd.f32 %v3265, %v2968
      %v3394 = vadd.f32 %v3266, %v2777
      %v3395 = vadd.f32 %v3267, %v2779
      %v3396 = vadd.f32 %v3268, %v2970
      %v3397 = vadd.f32 %v3269, %v2972
      %v3398 = vadd.f32 %v3270, %v2783
      %v3399 = vadd.f32 %v3271, %v2785
      %v3400 = vadd.f32 %v3272, %v2976
      %v3401 = vadd.f32 %v3273, %v2978
      %v3402 = vadd.f32 %v3274, %v2787
      %v3403 = vadd.f32 %v3275, %v2789
      %v3404 = vadd.f32 %v3276, %v2980
      %v3405 = vadd.f32 %v3277, %v2982
      %v3406 = vadd.f32 %v3278, %v2793
      %v3407 = vadd.f32 %v3279, %v2795
      %v3408 = vadd.f32 %v3280, %v2986
      %v3409 = vadd.f32 %v3281, %v2988
      %v3410 = vadd.f32 %v3282, %v2797
      %v3411 = vadd.f32 %v3283, %v2799
      %v3412 = vadd.f32 %v3284, %v2990
      %v3413 = vadd.f32 %v3285, %v2992
      %v3414 = vadd.f32 %v3286, %v2803
      %v3415 = vadd.f32 %v3287, %v2805
      %v3416 = vadd.f32 %v3288, %v2996
      %v3417 = vadd.f32 %v3289, %v2998
      %v3418 = vadd.f32 %v3290, %v2807
      %v3419 = vadd.f32 %v3291, %v2809
      %v3420 = vadd.f32 %v3292, %v3000
      %v3421 = vadd.f32 %v3293, %v3002
      %v3422 = vadd.f32 %v3294, %v2813
      %v3423 = vadd.f32 %v3295, %v2815
      %v3424 = vadd.f32 %v3296, %v3006
      %v3425 = vadd.f32 %v3297, %v3008
      %v3426 = vadd.f32 %v3298, %v2817
      %v3427 = vadd.f32 %v3299, %v2819
      %v3428 = vadd.f32 %v3300, %v3010
      %v3429 = vadd.f32 %v3301, %v3012
      %v3430 = vadd.f32 %v3302, %v2823
      %v3431 = vadd.f32 %v3303, %v2825
      %v3432 = vadd.f32 %v3304, %v3016
      %v3433 = vadd.f32 %v3305, %v3018
      %v3434 = vadd.f32 %v3306, %v2827
      %v3435 = vadd.f32 %v3307, %v2829
      %v3436 = vadd.f32 %v3308, %v3020
      %v3437 = vadd.f32 %v3309, %v3022
      %v3438 = vadd.f32 %v3310, %v2833
      %v3439 = vadd.f32 %v3311, %v2835
      %v3440 = vadd.f32 %v3312, %v3026
      %v3441 = vadd.f32 %v3313, %v3028
      %v3442 = vadd.f32 %v3314, %v2837
      %v3443 = vadd.f32 %v3315, %v2839
      %v3444 = vadd.f32 %v3316, %v3030
      %v3445 = vadd.f32 %v3317, %v3032
      %v3446 = vadd.f32 %v3318, %v2843
      %v3447 = vadd.f32 %v3319, %v2845
      %v3448 = vadd.f32 %v3320, %v3036
      %v3449 = vadd.f32 %v3321, %v3038
      %v3450 = vadd.f32 %v3322, %v2847
      %v3451 = vadd.f32 %v3323, %v2849
      %v3452 = vadd.f32 %v3324, %v3040
      %v3453 = vadd.f32 %v3325, %v3042
      %v3454 = vadd.f32 %v3326, %v2853
      %v3455 = vadd.f32 %v3327, %v2855
      %v3456 = vadd.f32 %v3328, %v3046
      %v3457 = vadd.f32 %v3329, %v3048
      %v3458 = vadd.f32 %v3330, %v2857
      %v3459 = vadd.f32 %v3331, %v2859
      %v3460 = vadd.f32 %v3332, %v3050
      %v3461 = vadd.f32 %v3333, %v3052
      %v3462 = vadd.f32 %v3334, %v2863
      %v3463 = vadd.f32 %v3335, %v2865
      %v3464 = vadd.f32 %v3336, %v3056
      %v3465 = vadd.f32 %v3337, %v3058
      %v3466 = vadd.f32 %v3338, %v2867
      %v3467 = vadd.f32 %v3339, %v2869
      %v3468 = vadd.f32 %v3340, %v3060
      %v3469 = vadd.f32 %v3341, %v3062
      %3470 = vst [vmem:[#allocation8] sm:$0xff] %v3342
      %3471 = vst [vmem:[#allocation8 + $0x8] sm:$0xff] %v3343
      %3472 = vst [vmem:[#allocation8 + $0x10] sm:$0xff] %v3344
      %3473 = vst [vmem:[#allocation8 + $0x18] sm:$0xff] %v3345
      %3474 = vst [vmem:[#allocation8 + $0x20] sm:$0xff] %v3346
      %3475 = vst [vmem:[#allocation8 + $0x28] sm:$0xff] %v3347
      %3476 = vst [vmem:[#allocation8 + $0x30] sm:$0xff] %v3348
      %3477 = vst [vmem:[#allocation8 + $0x38] sm:$0xff] %v3349
      %3478 = vst [vmem:[#allocation8 + $0x40] sm:$0xff] %v3350
      %3479 = vst [vmem:[#allocation8 + $0x48] sm:$0xff] %v3351
      %3480 = vst [vmem:[#allocation8 + $0x50] sm:$0xff] %v3352
      %3481 = vst [vmem:[#allocation8 + $0x58] sm:$0xff] %v3353
      %3482 = vst [vmem:[#allocation8 + $0x60] sm:$0xff] %v3354
      %3483 = vst [vmem:[#allocation8 + $0x68] sm:$0xff] %v3355
      %3484 = vst [vmem:[#allocation8 + $0x70] sm:$0xff] %v3356
      %3485 = vst [vmem:[#allocation8 + $0x78] sm:$0xff] %v3357
      %3486 = vst [vmem:[#allocation8 + $0x80] sm:$0xff] %v3358
      %3487 = vst [vmem:[#allocation8 + $0x88] sm:$0xff] %v3359
      %3488 = vst [vmem:[#allocation8 + $0x90] sm:$0xff] %v3360
      %3489 = vst [vmem:[#allocation8 + $0x98] sm:$0xff] %v3361
      %3490 = vst [vmem:[#allocation8 + $0xa0] sm:$0xff] %v3362
      %3491 = vst [vmem:[#allocation8 + $0xa8] sm:$0xff] %v3363
      %3492 = vst [vmem:[#allocation8 + $0xb0] sm:$0xff] %v3364
      %3493 = vst [vmem:[#allocation8 + $0xb8] sm:$0xff] %v3365
      %3494 = vst [vmem:[#allocation8 + $0xc0] sm:$0xff] %v3366
      %3495 = vst [vmem:[#allocation8 + $0xc8] sm:$0xff] %v3367
      %3496 = vst [vmem:[#allocation8 + $0xd0] sm:$0xff] %v3368
      %3497 = vst [vmem:[#allocation8 + $0xd8] sm:$0xff] %v3369
      %3498 = vst [vmem:[#allocation8 + $0xe0] sm:$0xff] %v3370
      %3499 = vst [vmem:[#allocation8 + $0xe8] sm:$0xff] %v3371
      %3500 = vst [vmem:[#allocation8 + $0xf0] sm:$0xff] %v3372
      %3501 = vst [vmem:[#allocation8 + $0xf8] sm:$0xff] %v3373
      %3502 = vst [vmem:[#allocation8 + $0x100] sm:$0xff] %v3374
      %3503 = vst [vmem:[#allocation8 + $0x108] sm:$0xff] %v3375
      %3504 = vst [vmem:[#allocation8 + $0x110] sm:$0xff] %v3376
      %3505 = vst [vmem:[#allocation8 + $0x118] sm:$0xff] %v3377
      %3506 = vst [vmem:[#allocation8 + $0x120] sm:$0xff] %v3378
      %3507 = vst [vmem:[#allocation8 + $0x128] sm:$0xff] %v3379
      %3508 = vst [vmem:[#allocation8 + $0x130] sm:$0xff] %v3380
      %3509 = vst [vmem:[#allocation8 + $0x138] sm:$0xff] %v3381
      %3510 = vst [vmem:[#allocation8 + $0x140] sm:$0xff] %v3382
      %3511 = vst [vmem:[#allocation8 + $0x148] sm:$0xff] %v3383
      %3512 = vst [vmem:[#allocation8 + $0x150] sm:$0xff] %v3384
      %3513 = vst [vmem:[#allocation8 + $0x158] sm:$0xff] %v3385
      %3514 = vst [vmem:[#allocation8 + $0x160] sm:$0xff] %v3386
      %3515 = vst [vmem:[#allocation8 + $0x168] sm:$0xff] %v3387
      %3516 = vst [vmem:[#allocation8 + $0x170] sm:$0xff] %v3388
      %3517 = vst [vmem:[#allocation8 + $0x178] sm:$0xff] %v3389
      %3518 = vst [vmem:[#allocation8 + $0x180] sm:$0xff] %v3390
      %3519 = vst [vmem:[#allocation8 + $0x188] sm:$0xff] %v3391
      %3520 = vst [vmem:[#allocation8 + $0x190] sm:$0xff] %v3392
      %3521 = vst [vmem:[#allocation8 + $0x198] sm:$0xff] %v3393
      %3522 = vst [vmem:[#allocation8 + $0x1a0] sm:$0xff] %v3394
      %3523 = vst [vmem:[#allocation8 + $0x1a8] sm:$0xff] %v3395
      %3524 = vst [vmem:[#allocation8 + $0x1b0] sm:$0xff] %v3396
      %3525 = vst [vmem:[#allocation8 + $0x1b8] sm:$0xff] %v3397
      %3526 = vst [vmem:[#allocation8 + $0x1c0] sm:$0xff] %v3398
      %3527 = vst [vmem:[#allocation8 + $0x1c8] sm:$0xff] %v3399
      %3528 = vst [vmem:[#allocation8 + $0x1d0] sm:$0xff] %v3400
      %3529 = vst [vmem:[#allocation8 + $0x1d8] sm:$0xff] %v3401
      %3530 = vst [vmem:[#allocation8 + $0x1e0] sm:$0xff] %v3402
      %3531 = vst [vmem:[#allocation8 + $0x1e8] sm:$0xff] %v3403
      %3532 = vst [vmem:[#allocation8 + $0x1f0] sm:$0xff] %v3404
      %3533 = vst [vmem:[#allocation8 + $0x1f8] sm:$0xff] %v3405
      %3534 = vst [vmem:[#allocation8 + $0x200] sm:$0xff] %v3406
      %3535 = vst [vmem:[#allocation8 + $0x208] sm:$0xff] %v3407
      %3536 = vst [vmem:[#allocation8 + $0x210] sm:$0xff] %v3408
      %3537 = vst [vmem:[#allocation8 + $0x218] sm:$0xff] %v3409
      %3538 = vst [vmem:[#allocation8 + $0x220] sm:$0xff] %v3410
      %3539 = vst [vmem:[#allocation8 + $0x228] sm:$0xff] %v3411
      %3540 = vst [vmem:[#allocation8 + $0x230] sm:$0xff] %v3412
      %3541 = vst [vmem:[#allocation8 + $0x238] sm:$0xff] %v3413
      %3542 = vst [vmem:[#allocation8 + $0x240] sm:$0xff] %v3414
      %3543 = vst [vmem:[#allocation8 + $0x248] sm:$0xff] %v3415
      %3544 = vst [vmem:[#allocation8 + $0x250] sm:$0xff] %v3416
      %3545 = vst [vmem:[#allocation8 + $0x258] sm:$0xff] %v3417
      %3546 = vst [vmem:[#allocation8 + $0x260] sm:$0xff] %v3418
      %3547 = vst [vmem:[#allocation8 + $0x268] sm:$0xff] %v3419
      %3548 = vst [vmem:[#allocation8 + $0x270] sm:$0xff] %v3420
      %3549 = vst [vmem:[#allocation8 + $0x278] sm:$0xff] %v3421
      %3550 = vst [vmem:[#allocation8 + $0x280] sm:$0xff] %v3422
      %3551 = vst [vmem:[#allocation8 + $0x288] sm:$0xff] %v3423
      %3552 = vst [vmem:[#allocation8 + $0x290] sm:$0xff] %v3424
      %3553 = vst [vmem:[#allocation8 + $0x298] sm:$0xff] %v3425
      %3554 = vst [vmem:[#allocation8 + $0x2a0] sm:$0xff] %v3426
      %3555 = vst [vmem:[#allocation8 + $0x2a8] sm:$0xff] %v3427
      %3556 = vst [vmem:[#allocation8 + $0x2b0] sm:$0xff] %v3428
      %3557 = vst [vmem:[#allocation8 + $0x2b8] sm:$0xff] %v3429
      %3558 = vst [vmem:[#allocation8 + $0x2c0] sm:$0xff] %v3430
      %3559 = vst [vmem:[#allocation8 + $0x2c8] sm:$0xff] %v3431
      %3560 = vst [vmem:[#allocation8 + $0x2d0] sm:$0xff] %v3432
      %3561 = vst [vmem:[#allocation8 + $0x2d8] sm:$0xff] %v3433
      %3562 = vst [vmem:[#allocation8 + $0x2e0] sm:$0xff] %v3434
      %3563 = vst [vmem:[#allocation8 + $0x2e8] sm:$0xff] %v3435
      %3564 = vst [vmem:[#allocation8 + $0x2f0] sm:$0xff] %v3436
      %3565 = vst [vmem:[#allocation8 + $0x2f8] sm:$0xff] %v3437
      %3566 = vst [vmem:[#allocation8 + $0x300] sm:$0xff] %v3438
      %3567 = vst [vmem:[#allocation8 + $0x308] sm:$0xff] %v3439
      %3568 = vst [vmem:[#allocation8 + $0x310] sm:$0xff] %v3440
      %3569 = vst [vmem:[#allocation8 + $0x318] sm:$0xff] %v3441
      %3570 = vst [vmem:[#allocation8 + $0x320] sm:$0xff] %v3442
      %3571 = vst [vmem:[#allocation8 + $0x328] sm:$0xff] %v3443
      %3572 = vst [vmem:[#allocation8 + $0x330] sm:$0xff] %v3444
      %3573 = vst [vmem:[#allocation8 + $0x338] sm:$0xff] %v3445
      %3574 = vst [vmem:[#allocation8 + $0x340] sm:$0xff] %v3446
      %3575 = vst [vmem:[#allocation8 + $0x348] sm:$0xff] %v3447
      %3576 = vst [vmem:[#allocation8 + $0x350] sm:$0xff] %v3448
      %3577 = vst [vmem:[#allocation8 + $0x358] sm:$0xff] %v3449
      %3578 = vst [vmem:[#allocation8 + $0x360] sm:$0xff] %v3450
      %3579 = vst [vmem:[#allocation8 + $0x368] sm:$0xff] %v3451
      %3580 = vst [vmem:[#allocation8 + $0x370] sm:$0xff] %v3452
      %3581 = vst [vmem:[#allocation8 + $0x378] sm:$0xff] %v3453
      %3582 = vst [vmem:[#allocation8 + $0x380] sm:$0xff] %v3454
      %3583 = vst [vmem:[#allocation8 + $0x388] sm:$0xff] %v3455
      %3584 = vst [vmem:[#allocation8 + $0x390] sm:$0xff] %v3456
      %3585 = vst [vmem:[#allocation8 + $0x398] sm:$0xff] %v3457
      %3586 = vst [vmem:[#allocation8 + $0x3a0] sm:$0xff] %v3458
      %3587 = vst [vmem:[#allocation8 + $0x3a8] sm:$0xff] %v3459
      %3588 = vst [vmem:[#allocation8 + $0x3b0] sm:$0xff] %v3460
      %3589 = vst [vmem:[#allocation8 + $0x3b8] sm:$0xff] %v3461
      %3590 = vst [vmem:[#allocation8 + $0x3c0] sm:$0xff] %v3462
      %3591 = vst [vmem:[#allocation8 + $0x3c8] sm:$0xff] %v3463
      %3592 = vst [vmem:[#allocation8 + $0x3d0] sm:$0xff] %v3464
      %3593 = vst [vmem:[#allocation8 + $0x3d8] sm:$0xff] %v3465
      %3594 = vst [vmem:[#allocation8 + $0x3e0] sm:$0xff] %v3466
      %3595 = vst [vmem:[#allocation8 + $0x3e8] sm:$0xff] %v3467
      %3596 = vst [vmem:[#allocation8 + $0x3f0] sm:$0xff] %v3468
      %3597 = vst [vmem:[#allocation8 + $0x3f8] sm:$0xff] %v3469
    $region37: #{tpu_custom_call.1} parent=1 // pred_fallthru
      _
    // Predicated region
    $region38: #{tpu_custom_call.1} parent=1 // pred_check
      _
    $region39: #{tpu_custom_call.1} parent=1 // pred_check_branch
      %3599 = sbr.rel (0) target = $region41
    $region40: #{tpu_custom_call.1} parent=1 // pred_region
      %s3601 = ssub.s32 16384, 16384
      %3602 = vsyncadd [#allocation5], %s3601
      %s3603 = sshll.u32 [#allocation8], 4
      %s3604 = int_to_ptr.vmem [resolvable:$true] %s3603
      %3609 = dma.vmem_to_hbm [thread:$0]  %s3604, 16384, %s5, [#allocation5], 512, 512, 32
    $region41: #{tpu_custom_call.1} parent=1 // pred_fallthru
      _
    // Predicated region
    $region42: #{tpu_custom_call.1} parent=1 // pred_check
      _
    $region43: #{tpu_custom_call.1} parent=1 // pred_check_branch
      %3611 = sbr.rel (0) target = $region45
    $region44: #{tpu_custom_call.1} parent=1 // pred_region
      %3612 = dma.done [#allocation5], 16384
    $region45: #{tpu_custom_call.1} parent=1 // pred_fallthru
      _
    %3613 = vsyncpa [#allocation4], 1
    %3614 = vsyncpa [#allocation7], 1
    %3615 = vsyncpa [#allocation5], 1

</llo_original>
